<compile_context>
chip_gen: v7x
topology: tpu7x:2x2x1
jax: 0.10.0
libtpu: 0.0.40
codegen_flags: <defaults>
</compile_context>

<pallas_src>
import math

import jax
import jax.numpy as jnp
from jax.experimental import pallas as pl
from jax.experimental.pallas import tpu as pltpu

_LANE = 128


def _ceil_to(v, m):
    return ((v + m - 1) // m) * m


def _vmem_limit_bytes():
    # Generation-aware scoped-VMEM limit: ~75% of physical VMEM per core
    # (v5e/v6e: 128 MiB -> 96 MiB, v7x: 64 MiB -> 48 MiB).  Fallback is safe everywhere.
    try:
        cap = getattr(pltpu.get_tpu_info(), "vmem_capacity_bytes", None)
        if cap:
            return int(cap) * 3 // 4
    except Exception:
        pass
    return 48 * 1024 * 1024


# --------------------------- in-kernel math helpers ---------------------------

_ERF_A1 = 0.254829592
_ERF_A2 = -0.284496736
_ERF_A3 = 1.421413741
_ERF_A4 = -1.453152027
_ERF_A5 = 1.061405429
_ERF_P = 0.3275911
_INV_SQRT2 = 1.0 / math.sqrt(2.0)


def _erf(x):
    # Abramowitz & Stegun 7.1.26.  The reciprocal is routed to the EUP slot
    # (approx vrcp); this costs ~1e-4-level relative error, well inside tolerance.
    s = jnp.sign(x)
    ax = jnp.abs(x)
    t = pl.reciprocal(1.0 + _ERF_P * ax, approx=True)
    poly = ((((_ERF_A5 * t + _ERF_A4) * t + _ERF_A3) * t + _ERF_A2) * t + _ERF_A1) * t
    return s * (1.0 - poly * jnp.exp(-ax * ax))


def _gelu_exact(x):
    # matches torch.nn.GELU() default (erf form, not tanh approximation)
    return 0.5 * x * (1.0 + _erf(x * _INV_SQRT2))


# --------------------------------- kernels ------------------------------------

def _conv_stats_kernel(x_ref, w_ref, y_ref, s1_ref, s2_ref):
    # x_ref : (1, th+k-1, w_pad, cin_p)   haloed input row-tile (matmul dtype)
    # w_ref : (k, k*cin_p, cout_p)        dw-fused conv weights (matmul dtype)
    # y_ref : (1, th, wo, cout_p)         pre-BN conv output (matmul dtype)
    # s1/s2 : (1, 1, cout_p)              per-tile channel sum / sum-of-squares (f32)
    _, th, wo, cout_p = y_ref.shape
    k = w_ref.shape[0]
    cin_p = x_ref.shape[-1]

    acc = None
    for dh in range(k):
        # Fuse the k "dw" taps into a single dot: contraction K = k*cin_p fills the
        # 256-wide MXU contraction on v6e/v7x (vs. half-filled at K = cin_p) and cuts
        # the vmatmul push count 3x.
        lhs = jnp.concatenate(
            [x_ref[0, dh:dh + th, dw:dw + wo, :] for dw in range(k)], axis=-1)
        lhs = lhs.reshape(th * wo, k * cin_p)
        contrib = jnp.dot(lhs, w_ref[dh], preferred_element_type=jnp.float32)
        acc = contrib if acc is None else acc + contrib

    # NOTE: no conv bias here — a per-channel bias before training-mode BatchNorm
    # cancels exactly (it shifts activations and batch mean equally).
    y_ref[...] = acc.reshape(1, th, wo, cout_p).astype(y_ref.dtype)
    s1_ref[...] = jnp.sum(acc, axis=0, keepdims=True)[None]
    s2_ref[...] = jnp.sum(acc * acc, axis=0, keepdims=True)[None]


def _bn_gelu_kernel(y_ref, scale_ref, shift_ref, o_ref):
    z = y_ref[...].astype(jnp.float32) * scale_ref[...] + shift_ref[...]
    o_ref[...] = _gelu_exact(z)


def _bn_gelu_residual_kernel(y_ref, scale_ref, shift_ref, r_ref, o_ref):
    z = y_ref[...].astype(jnp.float32) * scale_ref[...] + shift_ref[...]
    g = _gelu_exact(z)
    cin = r_ref.shape[-1]
    if cin == o_ref.shape[-1]:
        o_ref[...] = g + r_ref[...]
    else:
        # residual lives in the first `cin` lanes; lanes >= cin are sliced off by
        # the wrapper, so a narrow masked overwrite is enough (no padded HBM copy).
        o_ref[...] = g
        o_ref[:, :cin] = g[:, :cin] + r_ref[...]


# ------------------------------ tile sizing -----------------------------------

def _pass1_tile_bytes(th, w_pad, wo, cin_p, cout_p, k, item):
    in_tile = (th + k - 1) * w_pad * cin_p * item      # haloed input tile
    y_tile = th * wo * cout_p * item                   # pre-BN output tile
    acc = th * wo * cout_p * 4                         # f32 accumulator value
    lhs = th * wo * k * cin_p * item                   # fused-tap LHS temporary
    return 2 * in_tile + 2 * y_tile + acc + 2 * lhs


def _pick_row_tile(n, ho, w_pad, wo, cin_p, cout_p, k, item, budget):
    """Largest divisor of ho fitting the VMEM budget; prefer >= 2 total grid steps."""
    fitting = [th for th in range(ho, 0, -1)
               if ho % th == 0
               and _pass1_tile_bytes(th, w_pad, wo, cin_p, cout_p, k, item) <= budget]
    if not fitting:
        return 1
    th = fitting[0]
    if n * (ho // th) < 2:          # keep both v7x TensorCores busy when n == 1
        for cand in fitting:
            if ho // cand >= 2:
                return cand
    return th


def _pick_pass2_rows(m, bytes_per_row, budget):
    cap = max(budget // max(bytes_per_row, 1), 1)
    if m > 8:
        cap = min(cap, max(m // 2, 8))   # keep at least 2 grid steps when possible
    cap = max(min(cap, m), 1)
    fallback = 1
    for d in range(cap, 0, -1):
        if m % d == 0:
            if d % 8 == 0:
                return d
            if fallback == 1:
                fallback = d
    return fallback


# --------------------------------- wrapper ------------------------------------

def conv_block(x_nchw, weight, bias, gamma, beta, *, stride=1, padding=1,
               residual=False, eps=1e-5, matmul_dtype=jnp.bfloat16):
    """PyTorch-equivalent ConvBlock forward (training-mode BatchNorm).

    x_nchw: (N, Cin, H, W); weight: (Cout, Cin, K, K).
    matmul_dtype=bf16 (default) uses the bf16-native MXU with f32 accumulation and
    halves matmul/intermediate DMA bytes; pass jnp.float32 for tight numeric parity.
    `bias` is accepted for API parity but unused: a conv bias cancels exactly under
    training-mode BatchNorm (output is bit-for-bit equivalent up to rounding).
    """
    # TODO(synk): only stride=1 (the module default) is implemented.
    assert stride == 1
    n, cin, h, w = x_nchw.shape
    cout, _, k, _ = weight.shape
    ho = h + 2 * padding - (k - 1)
    wo = w + 2 * padding - (k - 1)
    w_pad = w + 2 * padding
    residual = bool(residual) and cin == cout and ho == h and wo == w

    cin_p = _ceil_to(cin, _LANE)    # lane-dense loads + full MXU contraction columns
    cout_p = _ceil_to(cout, _LANE)  # lane-dense (unmasked) stores
    item = jnp.dtype(matmul_dtype).itemsize

    vmem_limit = _vmem_limit_bytes()
    weight_bytes = 2 * k * k * cin_p * cout_p * item   # double-buffered resident weights
    budget = max(int(0.70 * (vmem_limit - weight_bytes)), 2 * 1024 * 1024)

    th = _pick_row_tile(n, ho, w_pad, wo, cin_p, cout_p, k, item, budget)
    r = ho // th
    t = n * r

    # ---- boundary glue: NCHW -> NHWC, spatial + channel pad, cast to matmul dtype ----
    # TODO(synk): keeping activations NHWC end-to-end across the network would remove
    # the two boundary transposes (each a full HBM pass).
    x_nhwc = jnp.transpose(x_nchw, (0, 2, 3, 1)).astype(jnp.float32)
    xp = jnp.pad(x_nhwc.astype(matmul_dtype),
                 ((0, 0), (padding, padding), (padding, padding), (0, cin_p - cin)))
    if r == 1:
        # Whole-image row range per batch item: no haloed gather, no extra HBM copy.
        x_in = xp                                   # (n, th+k-1, w_pad, cin_p)
    else:
        # TODO(synk): replace this wrapper-side haloed gather with manual halo DMA
        # (memory_space=pl.ANY); with the larger VMEM budget r == 1 for all but very
        # large images, so this fallback is rarely hit.
        row_idx = jnp.arange(r)[:, None] * th + jnp.arange(th + k - 1)[None, :]
        x_in = xp[:, row_idx].reshape(t, th + k - 1, w_pad, cin_p)

    # dw-fused weights: (k, k*cin_p, cout_p), w_fused[dh, dw*cin_p + c, o] = W[o,c,dh,dw]
    w_kkio = jnp.transpose(weight, (2, 3, 1, 0)).astype(jnp.float32)
    w_kkio = jnp.pad(w_kkio, ((0, 0), (0, 0), (0, cin_p - cin), (0, cout_p - cout)))
    w_fused = w_kkio.reshape(k, k * cin_p, cout_p).astype(matmul_dtype)

    gamma_p = jnp.pad(gamma.astype(jnp.float32), (0, cout_p - cout))
    beta_p = jnp.pad(beta.astype(jnp.float32), (0, cout_p - cout))

    cparams = pltpu.CompilerParams(dimension_semantics=("parallel",),
                                   vmem_limit_bytes=vmem_limit)

    # ---- pass 1: conv (fused dw taps), per-tile channel sum / sum-of-squares -------
    y_t, s1_t, s2_t = pl.pallas_call(
        _conv_stats_kernel,
        grid=(t,),
        in_specs=[
            pl.BlockSpec((1, th + k - 1, w_pad, cin_p), lambda i: (i, 0, 0, 0)),
            # TODO(synk): constant-index weights still get two pipeline buffers; a
            # single-buffered spec would free one weight copy of VMEM for large C.
            pl.BlockSpec((k, k * cin_p, cout_p), lambda i: (0, 0, 0)),
        ],
        out_specs=[
            pl.BlockSpec((1, th, wo, cout_p), lambda i: (i, 0, 0, 0)),
            pl.BlockSpec((1, 1, cout_p), lambda i: (i, 0, 0)),
            pl.BlockSpec((1, 1, cout_p), lambda i: (i, 0, 0)),
        ],
        out_shape=(
            jax.ShapeDtypeStruct((t, th, wo, cout_p), matmul_dtype),
            jax.ShapeDtypeStruct((t, 1, cout_p), jnp.float32),
            jax.ShapeDtypeStruct((t, 1, cout_p), jnp.float32),
        ),
        compiler_params=cparams,
    )(x_in, w_fused)

    # ---- fold BatchNorm (global training batch stats) into per-channel affine ------
    # O(C) reduction of per-tile partials; biased variance, like nn.BatchNorm2d.
    # TODO(synk): E[x^2]-E[x]^2 in f32 can cancel for very large counts; Welford-style
    # merging of the per-tile partials would be more robust.
    count = float(n * ho * wo)
    s1 = jnp.sum(s1_t, axis=(0, 1))
    s2 = jnp.sum(s2_t, axis=(0, 1))
    mean = s1 / count
    var = jnp.maximum(s2 / count - mean * mean, 0.0)
    inv_std = jax.lax.rsqrt(var + eps)
    scale = (gamma_p * inv_std).reshape(1, cout_p)
    shift = (beta_p - mean * gamma_p * inv_std).reshape(1, cout_p)

    # ---- pass 2: normalize + exact GELU (+ residual), flattened (N*H*W, C) ----------
    m = n * ho * wo
    y2 = y_t.reshape(m, cout_p)                      # contiguous -> free reshape
    bytes_per_row = cout_p * (2 * item + 2 * 4 + 3 * 4)
    if residual:
        bytes_per_row += 2 * cin * 4
    tm2 = _pick_pass2_rows(m, bytes_per_row, budget)
    g2 = m // tm2

    pass2_in_specs = [
        pl.BlockSpec((tm2, cout_p), lambda i: (i, 0)),
        pl.BlockSpec((1, cout_p), lambda i: (0, 0)),
        pl.BlockSpec((1, cout_p), lambda i: (0, 0)),
    ]
    pass2_args = [y2, scale, shift]
    if residual:
        # Reuse the original f32 activations directly (row order matches y2); no
        # materialized residual copy, no channel padding.
        r2 = x_nhwc.reshape(m, cin)
        pass2_in_specs.append(pl.BlockSpec((tm2, cin), lambda i: (i, 0)))
        pass2_args.append(r2)
        kernel2 = _bn_gelu_residual_kernel
    else:
        kernel2 = _bn_gelu_kernel

    out2 = pl.pallas_call(
        kernel2,
        grid=(g2,),
        in_specs=pass2_in_specs,
        out_specs=pl.BlockSpec((tm2, cout_p), lambda i: (i, 0)),
        out_shape=jax.ShapeDtypeStruct((m, cout_p), jnp.float32),
        compiler_params=cparams,
    )(*pass2_args)

    out_nhwc = out2.reshape(n, ho, wo, cout_p)[..., :cout]
    return jnp.transpose(out_nhwc, (0, 3, 1, 2))     # back to NCHW at the boundary


# -------------------------------- reference ------------------------------------

def _reference(x, weight, bias, gamma, beta, residual, eps=1e-5):
    y = jax.lax.conv_general_dilated(
        x, weight, window_strides=(1, 1), padding=((1, 1), (1, 1)),
        dimension_numbers=("NCHW", "OIHW", "NCHW"))
    y = y + bias[None, :, None, None]
    mean = jnp.mean(y, axis=(0, 2, 3), keepdims=True)
    var = jnp.mean((y - mean) ** 2, axis=(0, 2, 3), keepdims=True)
    y = (y - mean) / jnp.sqrt(var + eps) * gamma[None, :, None, None] \
        + beta[None, :, None, None]
    y = 0.5 * y * (1.0 + jax.scipy.special.erf(y / jnp.sqrt(2.0)))
    if residual:
        y = y + x
    return y


if __name__ == "__main__":
    key = jax.random.PRNGKey(0)
    k1, k2, k3, k4, k5, k6, k7 = jax.random.split(key, 7)

    # --- test 1: Cin != Cout (residual disabled, as in the module) -------------
    n, cin, h, w = 2, 4, 16, 16
    cout = 8
    x = jax.random.normal(k1, (n, cin, h, w), jnp.float32)
    weight = 0.1 * jax.random.normal(k2, (cout, cin, 3, 3), jnp.float32)
    bias = 0.1 * jax.random.normal(k3, (cout,), jnp.float32)
    gamma = 1.0 + 0.1 * jax.random.normal(k6, (cout,), jnp.float32)
    beta = 0.1 * jax.random.normal(k7, (cout,), jnp.float32)

    ref = _reference(x, weight, bias, gamma, beta, residual=False)

    # default path: bf16 matmul inputs, f32 accumulation
    out = jax.block_until_ready(
        conv_block(x, weight, bias, gamma, beta, residual=False))
    assert out.shape == (n, cout, h, w), out.shape
    err = float(jnp.max(jnp.abs(out - ref)))
    assert jnp.allclose(out, ref, atol=3e-2, rtol=3e-2), err

    # float32 matmul path: tight tolerance
    out32 = jax.block_until_ready(
        conv_block(x, weight, bias, gamma, beta, residual=False,
                   matmul_dtype=jnp.float32))
    err32 = float(jnp.max(jnp.abs(out32 - ref)))
    assert jnp.allclose(out32, ref, atol=2e-3, rtol=2e-3), err32

    # --- test 2: residual path (Cin == Cout) -----------------------------------
    cin2 = cout2 = 8
    x2 = jax.random.normal(k4, (n, cin2, h, w), jnp.float32)
    weight2 = 0.1 * jax.random.normal(k5, (cout2, cin2, 3, 3), jnp.float32)
    out2 = jax.block_until_ready(
        conv_block(x2, weight2, bias, gamma, beta, residual=True))
    ref2 = _reference(x2, weight2, bias, gamma, beta, residual=True)
    assert out2.shape == (n, cout2, h, w), out2.shape
    err2 = float(jnp.max(jnp.abs(out2 - ref2)))
    assert jnp.allclose(out2, ref2, atol=3e-2, rtol=3e-2), err2

    print("KERNEL_OK")
</pallas_src>

<mosaic_0001>
module attributes {stable_mosaic.version = 11 : i64} {
  func.func @_conv_stats_kernel(%arg0: i32, %arg1: memref<1x18x18x128xbf16, #tpu.memory_space<vmem>>, %arg2: memref<3x384x128xbf16, #tpu.memory_space<vmem>>, %arg3: memref<1x16x16x128xbf16, #tpu.memory_space<vmem>>, %arg4: memref<1x1x128xf32, #tpu.memory_space<vmem>>, %arg5: memref<1x1x128xf32, #tpu.memory_space<vmem>>) attributes {dimension_semantics = [#tpu.dimension_semantics<parallel>], iteration_bounds = array<i64: 2>, scalar_prefetch = 0 : i64, scratch_operands = 0 : i64, tpu.core_type = #tpu.core_type<tc>, window_params = [{transform_indices = @transform_0, window_bounds = array<i64: 1, 18, 18, 128>}, {pipeline_mode = #tpu.pipeline_mode<synchronous>, transform_indices = @transform_1, window_bounds = array<i64: 3, 384, 128>}, {transform_indices = @transform_2, window_bounds = array<i64: 1, 16, 16, 128>}, {transform_indices = @transform_3, window_bounds = array<i64: 1, 1, 128>}, {transform_indices = @transform_4, window_bounds = array<i64: 1, 1, 128>}]} {
    %c0 = arith.constant 0 : index
    %c0_0 = arith.constant 0 : index
    %c0_1 = arith.constant 0 : index
    %c0_2 = arith.constant 0 : index
    %0 = vector.load %arg1[%c0, %c0_0, %c0_1, %c0_2] : memref<1x18x18x128xbf16, #tpu.memory_space<vmem>>, vector<1x16x16x128xbf16>
    %1 = vector.shape_cast %0 : vector<1x16x16x128xbf16> to vector<16x16x128xbf16>
    %c0_3 = arith.constant 0 : index
    %c0_4 = arith.constant 0 : index
    %c1 = arith.constant 1 : index
    %c0_5 = arith.constant 0 : index
    %2 = vector.load %arg1[%c0_3, %c0_4, %c1, %c0_5] : memref<1x18x18x128xbf16, #tpu.memory_space<vmem>>, vector<1x16x16x128xbf16>
    %3 = vector.shape_cast %2 : vector<1x16x16x128xbf16> to vector<16x16x128xbf16>
    %c0_6 = arith.constant 0 : index
    %c0_7 = arith.constant 0 : index
    %c2 = arith.constant 2 : index
    %c0_8 = arith.constant 0 : index
    %4 = vector.load %arg1[%c0_6, %c0_7, %c2, %c0_8] : memref<1x18x18x128xbf16, #tpu.memory_space<vmem>>, vector<1x16x16x128xbf16>
    %5 = vector.shape_cast %4 : vector<1x16x16x128xbf16> to vector<16x16x128xbf16>
    %6 = tpu.concatenate %1, %3, %5 in 2 : vector<16x16x128xbf16>, vector<16x16x128xbf16>, vector<16x16x128xbf16> -> vector<16x16x384xbf16>
    %7 = vector.shape_cast %6 : vector<16x16x384xbf16> to vector<256x384xbf16>
    %c0_9 = arith.constant 0 : index
    %c0_10 = arith.constant 0 : index
    %c0_11 = arith.constant 0 : index
    %8 = vector.load %arg2[%c0_9, %c0_10, %c0_11] : memref<3x384x128xbf16, #tpu.memory_space<vmem>>, vector<1x384x128xbf16>
    %9 = vector.shape_cast %8 : vector<1x384x128xbf16> to vector<384x128xbf16>
    %cst = arith.constant dense<0.000000e+00> : vector<256x128xf32>
    %10 = tpu.matmul %7, %9, %cst {dimension_numbers = #tpu.dot_dimension_numbers<[1], [0], [0], [1], [0, 0, 1, 1], [], []>} : vector<256x384xbf16>, vector<384x128xbf16>, vector<256x128xf32> -> vector<256x128xf32>
    %c0_12 = arith.constant 0 : index
    %c1_13 = arith.constant 1 : index
    %c0_14 = arith.constant 0 : index
    %c0_15 = arith.constant 0 : index
    %11 = vector.load %arg1[%c0_12, %c1_13, %c0_14, %c0_15] : memref<1x18x18x128xbf16, #tpu.memory_space<vmem>>, vector<1x16x16x128xbf16>
    %12 = vector.shape_cast %11 : vector<1x16x16x128xbf16> to vector<16x16x128xbf16>
    %c0_16 = arith.constant 0 : index
    %c1_17 = arith.constant 1 : index
    %c1_18 = arith.constant 1 : index
    %c0_19 = arith.constant 0 : index
    %13 = vector.load %arg1[%c0_16, %c1_17, %c1_18, %c0_19] : memref<1x18x18x128xbf16, #tpu.memory_space<vmem>>, vector<1x16x16x128xbf16>
    %14 = vector.shape_cast %13 : vector<1x16x16x128xbf16> to vector<16x16x128xbf16>
    %c0_20 = arith.constant 0 : index
    %c1_21 = arith.constant 1 : index
    %c2_22 = arith.constant 2 : index
    %c0_23 = arith.constant 0 : index
    %15 = vector.load %arg1[%c0_20, %c1_21, %c2_22, %c0_23] : memref<1x18x18x128xbf16, #tpu.memory_space<vmem>>, vector<1x16x16x128xbf16>
    %16 = vector.shape_cast %15 : vector<1x16x16x128xbf16> to vector<16x16x128xbf16>
    %17 = tpu.concatenate %12, %14, %16 in 2 : vector<16x16x128xbf16>, vector<16x16x128xbf16>, vector<16x16x128xbf16> -> vector<16x16x384xbf16>
    %18 = vector.shape_cast %17 : vector<16x16x384xbf16> to vector<256x384xbf16>
    %c1_24 = arith.constant 1 : index
    %c0_25 = arith.constant 0 : index
    %c0_26 = arith.constant 0 : index
    %19 = vector.load %arg2[%c1_24, %c0_25, %c0_26] : memref<3x384x128xbf16, #tpu.memory_space<vmem>>, vector<1x384x128xbf16>
    %20 = vector.shape_cast %19 : vector<1x384x128xbf16> to vector<384x128xbf16>
    %cst_27 = arith.constant dense<0.000000e+00> : vector<256x128xf32>
    %21 = tpu.matmul %18, %20, %cst_27 {dimension_numbers = #tpu.dot_dimension_numbers<[1], [0], [0], [1], [0, 0, 1, 1], [], []>} : vector<256x384xbf16>, vector<384x128xbf16>, vector<256x128xf32> -> vector<256x128xf32>
    %22 = arith.addf %10, %21 : vector<256x128xf32>
    %c0_28 = arith.constant 0 : index
    %c2_29 = arith.constant 2 : index
    %c0_30 = arith.constant 0 : index
    %c0_31 = arith.constant 0 : index
    %23 = vector.load %arg1[%c0_28, %c2_29, %c0_30, %c0_31] : memref<1x18x18x128xbf16, #tpu.memory_space<vmem>>, vector<1x16x16x128xbf16>
    %24 = vector.shape_cast %23 : vector<1x16x16x128xbf16> to vector<16x16x128xbf16>
    %c0_32 = arith.constant 0 : index
    %c2_33 = arith.constant 2 : index
    %c1_34 = arith.constant 1 : index
    %c0_35 = arith.constant 0 : index
    %25 = vector.load %arg1[%c0_32, %c2_33, %c1_34, %c0_35] : memref<1x18x18x128xbf16, #tpu.memory_space<vmem>>, vector<1x16x16x128xbf16>
    %26 = vector.shape_cast %25 : vector<1x16x16x128xbf16> to vector<16x16x128xbf16>
    %c0_36 = arith.constant 0 : index
    %c2_37 = arith.constant 2 : index
    %c2_38 = arith.constant 2 : index
    %c0_39 = arith.constant 0 : index
    %27 = vector.load %arg1[%c0_36, %c2_37, %c2_38, %c0_39] : memref<1x18x18x128xbf16, #tpu.memory_space<vmem>>, vector<1x16x16x128xbf16>
    %28 = vector.shape_cast %27 : vector<1x16x16x128xbf16> to vector<16x16x128xbf16>
    %29 = tpu.concatenate %24, %26, %28 in 2 : vector<16x16x128xbf16>, vector<16x16x128xbf16>, vector<16x16x128xbf16> -> vector<16x16x384xbf16>
    %30 = vector.shape_cast %29 : vector<16x16x384xbf16> to vector<256x384xbf16>
    %c2_40 = arith.constant 2 : index
    %c0_41 = arith.constant 0 : index
    %c0_42 = arith.constant 0 : index
    %31 = vector.load %arg2[%c2_40, %c0_41, %c0_42] : memref<3x384x128xbf16, #tpu.memory_space<vmem>>, vector<1x384x128xbf16>
    %32 = vector.shape_cast %31 : vector<1x384x128xbf16> to vector<384x128xbf16>
    %cst_43 = arith.constant dense<0.000000e+00> : vector<256x128xf32>
    %33 = tpu.matmul %30, %32, %cst_43 {dimension_numbers = #tpu.dot_dimension_numbers<[1], [0], [0], [1], [0, 0, 1, 1], [], []>} : vector<256x384xbf16>, vector<384x128xbf16>, vector<256x128xf32> -> vector<256x128xf32>
    %34 = arith.addf %22, %33 : vector<256x128xf32>
    %35 = vector.shape_cast %34 : vector<256x128xf32> to vector<1x16x16x128xf32>
    %36 = arith.truncf %35 : vector<1x16x16x128xf32> to vector<1x16x16x128xbf16>
    %c0_44 = arith.constant 0 : index
    %c0_45 = arith.constant 0 : index
    %c0_46 = arith.constant 0 : index
    %c0_47 = arith.constant 0 : index
    %37 = vector.load %arg3[%c0_44, %c0_45, %c0_46, %c0_47] : memref<1x16x16x128xbf16, #tpu.memory_space<vmem>>, vector<1x16x16x128xbf16>
    tpu.vector_store %arg3[%c0_44, %c0_45, %c0_46, %c0_47], %36 {strides = array<i32>} : memref<1x16x16x128xbf16, #tpu.memory_space<vmem>>, vector<1x16x16x128xbf16>,
    %cst_48 = arith.constant dense<0.000000e+00> : vector<128xf32>
    %38 = vector.multi_reduction <add>, %34, %cst_48 [0] : vector<256x128xf32> to vector<128xf32>
    %39 = vector.shape_cast %38 : vector<128xf32> to vector<1x128xf32>
    %40 = vector.shape_cast %39 : vector<1x128xf32> to vector<1x1x128xf32>
    %c0_49 = arith.constant 0 : index
    %c0_50 = arith.constant 0 : index
    %c0_51 = arith.constant 0 : index
    %41 = vector.load %arg4[%c0_49, %c0_50, %c0_51] : memref<1x1x128xf32, #tpu.memory_space<vmem>>, vector<1x1x128xf32>
    tpu.vector_store %arg4[%c0_49, %c0_50, %c0_51], %40 {strides = array<i32>} : memref<1x1x128xf32, #tpu.memory_space<vmem>>, vector<1x1x128xf32>,
    %42 = arith.mulf %34, %34 : vector<256x128xf32>
    %cst_52 = arith.constant dense<0.000000e+00> : vector<128xf32>
    %43 = vector.multi_reduction <add>, %42, %cst_52 [0] : vector<256x128xf32> to vector<128xf32>
    %44 = vector.shape_cast %43 : vector<128xf32> to vector<1x128xf32>
    %45 = vector.shape_cast %44 : vector<1x128xf32> to vector<1x1x128xf32>
    %c0_53 = arith.constant 0 : index
    %c0_54 = arith.constant 0 : index
    %c0_55 = arith.constant 0 : index
    %46 = vector.load %arg5[%c0_53, %c0_54, %c0_55] : memref<1x1x128xf32, #tpu.memory_space<vmem>>, vector<1x1x128xf32>
    tpu.vector_store %arg5[%c0_53, %c0_54, %c0_55], %45 {strides = array<i32>} : memref<1x1x128xf32, #tpu.memory_space<vmem>>, vector<1x1x128xf32>,
    return
  }
  func.func @transform_0(%arg0: i32) -> (i32, i32, i32, i32) {
    %c0_i32 = arith.constant 0 : i32
    %c0_i32_0 = arith.constant 0 : i32
    %c0_i32_1 = arith.constant 0 : i32
    %c0_i32_2 = arith.constant 0 : i32
    return %arg0, %c0_i32, %c0_i32_0, %c0_i32_1 : i32, i32, i32, i32
  }
  func.func @transform_1(%arg0: i32) -> (i32, i32, i32) {
    %c0_i32 = arith.constant 0 : i32
    %c0_i32_0 = arith.constant 0 : i32
    %c0_i32_1 = arith.constant 0 : i32
    %c0_i32_2 = arith.constant 0 : i32
    return %c0_i32, %c0_i32_0, %c0_i32_1 : i32, i32, i32
  }
  func.func @transform_2(%arg0: i32) -> (i32, i32, i32, i32) {
    %c0_i32 = arith.constant 0 : i32
    %c0_i32_0 = arith.constant 0 : i32
    %c0_i32_1 = arith.constant 0 : i32
    %c0_i32_2 = arith.constant 0 : i32
    return %arg0, %c0_i32, %c0_i32_0, %c0_i32_1 : i32, i32, i32, i32
  }
  func.func @transform_3(%arg0: i32) -> (i32, i32, i32) {
    %c0_i32 = arith.constant 0 : i32
    %c0_i32_0 = arith.constant 0 : i32
    %c0_i32_1 = arith.constant 0 : i32
    return %arg0, %c0_i32, %c0_i32_0 : i32, i32, i32
  }
  func.func @transform_4(%arg0: i32) -> (i32, i32, i32) {
    %c0_i32 = arith.constant 0 : i32
    %c0_i32_0 = arith.constant 0 : i32
    %c0_i32_1 = arith.constant 0 : i32
    return %arg0, %c0_i32, %c0_i32_0 : i32, i32, i32
  }
}

</mosaic_0001>

<llo_original>
// kernel: tpu_custom_call.1
$region0: #{tpu_custom_call.1}
  #allocation0 [shape = 'u32[]', space=smem, size = 0x4, offset = 0x4, fixed_abs, tag = 'smem constant byte address 0x4 - core index']
  #allocation1 [shape = 'u32[144,128]{1,0:T(1,128)}', space=vmem, size = 0x12000, scoped, tag = 'internal scratch']
  %s0 = inlined_call_operand.vmem [shape: bf16[2,18,18,128], index: 0, kind: input, shape index: {}]
  %s1 = inlined_call_operand.vmem [shape: bf16[3,384,128], index: 1, kind: input, shape index: {}]
  %s2 = inlined_call_operand.hbm [shape: bf16[2,16,16,128], index: 2, kind: output, shape index: {0}]
  %s3 = inlined_call_operand.hbm [shape: f32[2,1,128], index: 3, kind: output, shape index: {1}]
  %s4 = inlined_call_operand.hbm [shape: f32[2,1,128], index: 4, kind: output, shape index: {2}]
  %5 = xla_tuple %s2, %s3, %s4
  %s6 = sld [smem:[#allocation0]]
  $region57: #{tpu_custom_call.1} parent=0
    _
  %s8 = ssub.s32 1, %s6
  %s9 = scalar_select 0, %s8, %s6
  $region1: #{tpu_custom_call.1} parent=0
    #allocation2 [shape = 'u8[131072]{0}', space=vmem, size = 0x20000, scoped, tag = 'output window, operand 0']
    #allocation3 [shape = 's32[2]{0}', space=sflag, size = 0x8, scoped, tag = 'scoped memory for tpu_custom_call.1']
    #allocation4 [shape = 'u8[1024]{0}', space=vmem, size = 0x400, scoped, tag = 'output window, operand 1']
    #allocation5 [shape = 's32[2]{0}', space=sflag, size = 0x8, scoped, tag = 'scoped memory for tpu_custom_call.1']
    #allocation6 [shape = 'u8[1024]{0}', space=vmem, size = 0x400, scoped, tag = 'output window, operand 2']
    %10 = vsyncpa [#allocation3], 0
    %s11 = scalar_lea.sflag [#allocation3], 1
    %12 = vsyncpa %s11, 0
    %13 = vsyncpa [#allocation5], 0
    %s14 = scalar_lea.sflag [#allocation5], 1
    %15 = vsyncpa %s14, 0
    loop: start=0, step=1, limit=4
    $region2: #{tpu_custom_call.1} parent=1 // loop_pre_header
      _
    $region3: #{tpu_custom_call.1} parent=1 // loop_header
      %s17 = sphi 0, %s21
      %p18 = scmp.ge.s32.totalorder %s17, 4
      %s27 = sphi 0, %s29
      %s30 = sphi 0, %s27
      %s31 = sphi 0, %s30
      %s47 = sphi 0, %s31
      %s51 = sphi 0, %s51
      %s53 = sphi 0, %s51
      %s54 = sphi 0, %s53
      %s68 = sphi 0, %s54
      %s74 = sphi 0, %s76
      %s77 = sphi 0, %s74
      %s78 = sphi 0, %s77
      %s94 = sphi 0, %s78
      %s100 = sphi 0, %s102
      %s103 = sphi 0, %s100
      %s104 = sphi 0, %s103
      %s120 = sphi 0, %s104
      %s126 = sphi 0, %s128
      %s129 = sphi 0, %s126
      %s130 = sphi 0, %s129
      %s146 = sphi 0, %s130
    $region4: #{tpu_custom_call.1} parent=1 // loop_header_branch
      %20 = sbr.rel (%p18) target = $region8
    $region5: #{tpu_custom_call.1} parent=1 // loop_body
      %s22 = ssub.s32 %s17, 1
      %s23 = ssub.s32 %s17, 2
      %s24 = sadd.s32 %s17, 1
      %s25 = ssub.s32 %s17, %s24
      %p26 = scmp.eq.s32.totalorder %s25, 0
      %s28 = sadd.s32 %s27, 1
      %s29 = scalar_select %p26, %s27, %s28
      %p32 = pneg %p26
      %p33 = scmp.eq.s32.totalorder %s17, 1
      %p34 = por %p32, %p33
      %p35 = scmp.ne.s32.totalorder %s27, %s30
      %p36 = scmp.eq.s32.totalorder %s17, 0
      %p37 = por %p35, %p36
      %p38 = scmp.ne.s32.totalorder %s27, %s30
      %p39 = scmp.eq.s32.totalorder %s22, 1
      %p40 = por %p38, %p39
      %p41 = scmp.ne.s32.totalorder %s30, %s31
      %p42 = scmp.eq.s32.totalorder %s22, 0
      %p43 = por %p41, %p42
      %p44 = scmp.ne.s32.totalorder %s30, %s31
      %p45 = scmp.eq.s32.totalorder %s23, 1
      %p46 = por %p44, %p45
      %p48 = scmp.ne.s32.totalorder %s31, %s47
      %p49 = scmp.eq.s32.totalorder %s23, 0
      %p50 = por %p48, %p49
      %s52 = sadd.s32 %s51, 1
      %p55 = scmp.eq.s32.totalorder %s17, 1
      %p56 = scmp.ne.s32.totalorder %s51, %s53
      %p57 = scmp.eq.s32.totalorder %s17, 0
      %p58 = por %p56, %p57
      %p59 = scmp.ne.s32.totalorder %s51, %s53
      %p60 = scmp.eq.s32.totalorder %s22, 1
      %p61 = por %p59, %p60
      %p62 = scmp.ne.s32.totalorder %s53, %s54
      %p63 = scmp.eq.s32.totalorder %s22, 0
      %p64 = por %p62, %p63
      %p65 = scmp.ne.s32.totalorder %s53, %s54
      %p66 = scmp.eq.s32.totalorder %s23, 1
      %p67 = por %p65, %p66
      %p69 = scmp.ne.s32.totalorder %s54, %s68
      %p70 = scmp.eq.s32.totalorder %s23, 0
      %p71 = por %p69, %p70
      %s72 = ssub.s32 %s17, %s24
      %p73 = scmp.eq.s32.totalorder %s72, 0
      %s75 = sadd.s32 %s74, 1
      %s76 = scalar_select %p73, %s74, %s75
      %p79 = pneg %p73
      %p80 = scmp.eq.s32.totalorder %s17, 1
      %p81 = por %p79, %p80
      %p82 = scmp.ne.s32.totalorder %s74, %s77
      %p83 = scmp.eq.s32.totalorder %s17, 0
      %p84 = por %p82, %p83
      %p85 = scmp.ne.s32.totalorder %s74, %s77
      %p86 = scmp.eq.s32.totalorder %s22, 1
      %p87 = por %p85, %p86
      %p88 = scmp.ne.s32.totalorder %s77, %s78
      %p89 = scmp.eq.s32.totalorder %s22, 0
      %p90 = por %p88, %p89
      %p91 = scmp.ne.s32.totalorder %s77, %s78
      %p92 = scmp.eq.s32.totalorder %s23, 1
      %p93 = por %p91, %p92
      %p95 = scmp.ne.s32.totalorder %s78, %s94
      %p96 = scmp.eq.s32.totalorder %s23, 0
      %p97 = por %p95, %p96
      %s98 = ssub.s32 %s17, %s24
      %p99 = scmp.eq.s32.totalorder %s98, 0
      %s101 = sadd.s32 %s100, 1
      %s102 = scalar_select %p99, %s100, %s101
      %p105 = pneg %p99
      %p106 = scmp.eq.s32.totalorder %s17, 1
      %p107 = por %p105, %p106
      %p108 = scmp.ne.s32.totalorder %s100, %s103
      %p109 = scmp.eq.s32.totalorder %s17, 0
      %p110 = por %p108, %p109
      %p111 = scmp.ne.s32.totalorder %s100, %s103
      %p112 = scmp.eq.s32.totalorder %s22, 1
      %p113 = por %p111, %p112
      %p114 = scmp.ne.s32.totalorder %s103, %s104
      %p115 = scmp.eq.s32.totalorder %s22, 0
      %p116 = por %p114, %p115
      %p117 = scmp.ne.s32.totalorder %s103, %s104
      %p118 = scmp.eq.s32.totalorder %s23, 1
      %p119 = por %p117, %p118
      %p121 = scmp.ne.s32.totalorder %s104, %s120
      %p122 = scmp.eq.s32.totalorder %s23, 0
      %p123 = por %p121, %p122
      %s124 = ssub.s32 %s17, %s24
      %p125 = scmp.eq.s32.totalorder %s124, 0
      %s127 = sadd.s32 %s126, 1
      %s128 = scalar_select %p125, %s126, %s127
      %p131 = pneg %p125
      %p132 = scmp.eq.s32.totalorder %s17, 1
      %p133 = por %p131, %p132
      %p134 = scmp.ne.s32.totalorder %s126, %s129
      %p135 = scmp.eq.s32.totalorder %s17, 0
      %p136 = por %p134, %p135
      %p137 = scmp.ne.s32.totalorder %s126, %s129
      %p138 = scmp.eq.s32.totalorder %s22, 1
      %p139 = por %p137, %p138
      %p140 = scmp.ne.s32.totalorder %s129, %s130
      %p141 = scmp.eq.s32.totalorder %s22, 0
      %p142 = por %p140, %p141
      %p143 = scmp.ne.s32.totalorder %s129, %s130
      %p144 = scmp.eq.s32.totalorder %s23, 1
      %p145 = por %p143, %p144
      %p147 = scmp.ne.s32.totalorder %s130, %s146
      %p148 = scmp.eq.s32.totalorder %s23, 0
      %p149 = por %p147, %p148
      %p150 = scmp.le.s32.totalorder 1, %s17
      %p151 = scmp.lt.s32.totalorder %s17, 3
      %p152 = pnand %p150, %p151
      %p153 = pneg %p152
      // Predicated region
      $region9: #{tpu_custom_call.1} parent=5 // pred_check
        _
      $region10: #{tpu_custom_call.1} parent=5 // pred_check_branch
        %155 = sbr.rel (%p152) target = $region12
      $region11: #{tpu_custom_call.1} parent=5 // pred_region
        %s156 = ssub.s32 %s17, 1
        // Predicated region
        $region13: #{tpu_custom_call.1} parent=11 // pred_check
          %p157 = pneg %p64
        $region14: #{tpu_custom_call.1} parent=11 // pred_check_branch
          %159 = sbr.rel (%p157) target = $region16
        $region15: #{tpu_custom_call.1} parent=11 // pred_region
          _
        $region16: #{tpu_custom_call.1} parent=11 // pred_fallthru
          _
      $region12: #{tpu_custom_call.1} parent=5 // pred_fallthru
        _
      %p160 = scmp.lt.s32.totalorder %s17, 2
      // Predicated region
      $region17: #{tpu_custom_call.1} parent=5 // pred_check
        %p161 = pneg %p160
      $region18: #{tpu_custom_call.1} parent=5 // pred_check_branch
        %163 = sbr.rel (%p161) target = $region20
      $region19: #{tpu_custom_call.1} parent=5 // pred_region
        // Predicated region
        $region21: #{tpu_custom_call.1} parent=19 // pred_check
          %p164 = pneg %p37
        $region22: #{tpu_custom_call.1} parent=19 // pred_check_branch
          %166 = sbr.rel (%p164) target = $region24
        $region23: #{tpu_custom_call.1} parent=19 // pred_region
          %p167 = scmp.lt.s32.totalorder %s17, 1
          %s168 = scalar_select %p167, %s17, 1
          %s169 = smul.addr %s168, 54
          %s170 = smul.addr %s169, 4
          %s171 = scalar_lea.vmem %s0, %s170
        $region24: #{tpu_custom_call.1} parent=19 // pred_fallthru
          _
      $region20: #{tpu_custom_call.1} parent=5 // pred_fallthru
        _
      %p172 = scmp.le.s32.totalorder 1, %s17
      %p173 = scmp.lt.s32.totalorder %s17, 3
      %p174 = pnand %p172, %p173
      %p175 = pneg %p174
      // Predicated region
      $region25: #{tpu_custom_call.1} parent=5 // pred_check
        _
      $region26: #{tpu_custom_call.1} parent=5 // pred_check_branch
        %177 = sbr.rel (%p174) target = $region28
      $region27: #{tpu_custom_call.1} parent=5 // pred_region
        %s178 = ssub.s32 %s17, 1
        %p179 = scmp.lt.s32.totalorder %s22, 1
        %s180 = scalar_select %p179, %s22, 1
        %s181 = smul.addr %s180, 54
        %s182 = smul.addr %s181, 4
        %s183 = scalar_lea.vmem %s0, %s182
        %p184 = pneg %p43
        %p185 = pneg %p40
        %p186 = pneg %p64
        %p187 = pneg %p61
        %p188 = pneg %p90
        %p189 = pneg %p87
        %s190 = sand.u32 %s77, 1
        %s191 = scalar_lea.sflag [#allocation3], %s190
        %s192 = sand.u32 %s77, 1
        %s193 = smul.addr %s192, 128
        %s194 = scalar_lea.vmem [#allocation2], %s193
        %p195 = pneg %p116
        %p196 = pneg %p113
        %s197 = sand.u32 %s22, 1
        %s198 = scalar_lea.sflag [#allocation5], %s197
        %s199 = sand.u32 %s103, 1
        %s200 = scalar_lea.vmem [#allocation4], %s199
        %p201 = pneg %p142
        %p202 = pneg %p139
        %s203 = sand.u32 %s22, 1
        %s204 = scalar_lea.sflag [#allocation5], %s203
        %s205 = sand.u32 %s129, 1
        %s206 = scalar_lea.vmem [#allocation6], %s205
        %p207 = scmp.lt.s32.totalorder %s22, 1
        %s208 = scalar_select %p207, %s22, 1
        %s209 = smul.addr %s208, 54
        %s210 = smul.addr %s209, 4
        %s211 = scalar_lea.vmem %s0, %s210
        %v213 = vld [vmem:[%s211] sm:$0xf]
        %v214 = vld [vmem:[%s211 + $0x4] sm:$0xf]
        %v215 = vld [vmem:[%s211 + $0xc] sm:$0xf]
        %v216 = vld [vmem:[%s211 + $0x10] sm:$0xf]
        %v217 = vld [vmem:[%s211 + $0x18] sm:$0xf]
        %v218 = vld [vmem:[%s211 + $0x1c] sm:$0xf]
        %v219 = vld [vmem:[%s211 + $0x24] sm:$0xf]
        %v220 = vld [vmem:[%s211 + $0x28] sm:$0xf]
        %v221 = vld [vmem:[%s211 + $0x30] sm:$0xf]
        %v222 = vld [vmem:[%s211 + $0x34] sm:$0xf]
        %v223 = vld [vmem:[%s211 + $0x3c] sm:$0xf]
        %v224 = vld [vmem:[%s211 + $0x40] sm:$0xf]
        %v225 = vld [vmem:[%s211 + $0x48] sm:$0xf]
        %v226 = vld [vmem:[%s211 + $0x4c] sm:$0xf]
        %v227 = vld [vmem:[%s211 + $0x54] sm:$0xf]
        %v228 = vld [vmem:[%s211 + $0x58] sm:$0xf]
        %v229 = vld [vmem:[%s211 + $0x60] sm:$0xf]
        %v230 = vld [vmem:[%s211 + $0x64] sm:$0xf]
        %v231 = vld [vmem:[%s211 + $0x6c] sm:$0xf]
        %v232 = vld [vmem:[%s211 + $0x70] sm:$0xf]
        %v233 = vld [vmem:[%s211 + $0x78] sm:$0xf]
        %v234 = vld [vmem:[%s211 + $0x7c] sm:$0xf]
        %v235 = vld [vmem:[%s211 + $0x84] sm:$0xf]
        %v236 = vld [vmem:[%s211 + $0x88] sm:$0xf]
        %v237 = vld [vmem:[%s211 + $0x90] sm:$0xf]
        %v238 = vld [vmem:[%s211 + $0x94] sm:$0xf]
        %v239 = vld [vmem:[%s211 + $0x9c] sm:$0xf]
        %v240 = vld [vmem:[%s211 + $0xa0] sm:$0xf]
        %v241 = vld [vmem:[%s211 + $0xa8] sm:$0xf]
        %v242 = vld [vmem:[%s211 + $0xac] sm:$0xf]
        %v243 = vld [vmem:[%s211 + $0xb4] sm:$0xf]
        %v244 = vld [vmem:[%s211 + $0xb8] sm:$0xf]
        %v245 = vld [vmem:[%s211 + $0x8] sm:$0x1]
        %v246 = vld [vmem:[%s211 + $0x14] sm:$0x1]
        %v247 = vld [vmem:[%s211 + $0x20] sm:$0x1]
        %v248 = vld [vmem:[%s211 + $0x2c] sm:$0x1]
        %v249 = vld [vmem:[%s211 + $0x38] sm:$0x1]
        %v250 = vld [vmem:[%s211 + $0x44] sm:$0x1]
        %v251 = vld [vmem:[%s211 + $0x50] sm:$0x1]
        %v252 = vld [vmem:[%s211 + $0x5c] sm:$0x1]
        %v253 = vld [vmem:[%s211 + $0x68] sm:$0x1]
        %v254 = vld [vmem:[%s211 + $0x74] sm:$0x1]
        %v255 = vld [vmem:[%s211 + $0x80] sm:$0x1]
        %v256 = vld [vmem:[%s211 + $0x8c] sm:$0x1]
        %v257 = vld [vmem:[%s211 + $0x98] sm:$0x1]
        %v258 = vld [vmem:[%s211 + $0xa4] sm:$0x1]
        %v259 = vld [vmem:[%s211 + $0xb0] sm:$0x1]
        %v260 = vld [vmem:[%s211 + $0xbc] sm:$0x1]
        %v261 = vld [vmem:[%s211] sm:$0xe]
        %v262 = vld [vmem:[%s211 + $0xc] sm:$0xe]
        %v263 = vld [vmem:[%s211 + $0x18] sm:$0xe]
        %v264 = vld [vmem:[%s211 + $0x24] sm:$0xe]
        %v265 = vld [vmem:[%s211 + $0x30] sm:$0xe]
        %v266 = vld [vmem:[%s211 + $0x3c] sm:$0xe]
        %v267 = vld [vmem:[%s211 + $0x48] sm:$0xe]
        %v268 = vld [vmem:[%s211 + $0x54] sm:$0xe]
        %v269 = vld [vmem:[%s211 + $0x60] sm:$0xe]
        %v270 = vld [vmem:[%s211 + $0x6c] sm:$0xe]
        %v271 = vld [vmem:[%s211 + $0x78] sm:$0xe]
        %v272 = vld [vmem:[%s211 + $0x84] sm:$0xe]
        %v273 = vld [vmem:[%s211 + $0x90] sm:$0xe]
        %v274 = vld [vmem:[%s211 + $0x9c] sm:$0xe]
        %v275 = vld [vmem:[%s211 + $0xa8] sm:$0xe]
        %v276 = vld [vmem:[%s211 + $0xb4] sm:$0xe]
        %v309 = vunpack.c.l.b16 %v213
        %v310 = vunpack.c.l.b16 %v214
        %v311 = vunpack.c.l.b16 %v215
        %v312 = vunpack.c.l.b16 %v216
        %v313 = vunpack.c.l.b16 %v217
        %v314 = vunpack.c.l.b16 %v218
        %v315 = vunpack.c.l.b16 %v219
        %v316 = vunpack.c.l.b16 %v220
        %v317 = vunpack.c.l.b16 %v221
        %v318 = vunpack.c.l.b16 %v222
        %v319 = vunpack.c.l.b16 %v223
        %v320 = vunpack.c.l.b16 %v224
        %v321 = vunpack.c.l.b16 %v225
        %v322 = vunpack.c.l.b16 %v226
        %v323 = vunpack.c.l.b16 %v227
        %v324 = vunpack.c.l.b16 %v228
        %v325 = vunpack.c.l.b16 %v229
        %v326 = vunpack.c.l.b16 %v230
        %v327 = vunpack.c.l.b16 %v231
        %v328 = vunpack.c.l.b16 %v232
        %v329 = vunpack.c.l.b16 %v233
        %v330 = vunpack.c.l.b16 %v234
        %v331 = vunpack.c.l.b16 %v235
        %v332 = vunpack.c.l.b16 %v236
        %v333 = vunpack.c.l.b16 %v237
        %v334 = vunpack.c.l.b16 %v238
        %v335 = vunpack.c.l.b16 %v239
        %v336 = vunpack.c.l.b16 %v240
        %v337 = vunpack.c.l.b16 %v241
        %v338 = vunpack.c.l.b16 %v242
        %v339 = vunpack.c.l.b16 %v243
        %v340 = vunpack.c.l.b16 %v244
        %v341 = vpack.c.b16 %v310, %v309
        %v342 = vpack.c.b16 %v312, %v311
        %v343 = vpack.c.b16 %v314, %v313
        %v344 = vpack.c.b16 %v316, %v315
        %v345 = vpack.c.b16 %v318, %v317
        %v346 = vpack.c.b16 %v320, %v319
        %v347 = vpack.c.b16 %v322, %v321
        %v348 = vpack.c.b16 %v324, %v323
        %v349 = vpack.c.b16 %v326, %v325
        %v350 = vpack.c.b16 %v328, %v327
        %v351 = vpack.c.b16 %v330, %v329
        %v352 = vpack.c.b16 %v332, %v331
        %v353 = vpack.c.b16 %v334, %v333
        %v354 = vpack.c.b16 %v336, %v335
        %v355 = vpack.c.b16 %v338, %v337
        %v356 = vpack.c.b16 %v340, %v339
        %v389 = vunpack.c.l.b16 %v245
        %v390 = vunpack.c.l.b16 %v246
        %v391 = vunpack.c.l.b16 %v247
        %v392 = vunpack.c.l.b16 %v248
        %v393 = vunpack.c.l.b16 %v249
        %v394 = vunpack.c.l.b16 %v250
        %v395 = vunpack.c.l.b16 %v251
        %v396 = vunpack.c.l.b16 %v252
        %v397 = vunpack.c.l.b16 %v253
        %v398 = vunpack.c.l.b16 %v254
        %v399 = vunpack.c.l.b16 %v255
        %v400 = vunpack.c.l.b16 %v256
        %v401 = vunpack.c.l.b16 %v257
        %v402 = vunpack.c.l.b16 %v258
        %v403 = vunpack.c.l.b16 %v259
        %v404 = vunpack.c.l.b16 %v260
        %v405 = vpack.c.b16 %v389, %v389
        %v406 = vpack.c.b16 %v390, %v390
        %v407 = vpack.c.b16 %v391, %v391
        %v408 = vpack.c.b16 %v392, %v392
        %v409 = vpack.c.b16 %v393, %v393
        %v410 = vpack.c.b16 %v394, %v394
        %v411 = vpack.c.b16 %v395, %v395
        %v412 = vpack.c.b16 %v396, %v396
        %v413 = vpack.c.b16 %v397, %v397
        %v414 = vpack.c.b16 %v398, %v398
        %v415 = vpack.c.b16 %v399, %v399
        %v416 = vpack.c.b16 %v400, %v400
        %v417 = vpack.c.b16 %v401, %v401
        %v418 = vpack.c.b16 %v402, %v402
        %v419 = vpack.c.b16 %v403, %v403
        %v420 = vpack.c.b16 %v404, %v404
        %vm421 = vsmask.f32 7424
        %v423 = vshrl.u32 %v341, 16
        %v425 = vshll.u32 %v341, 16
        %v427 = vrot.slane %v425, 1
        %v428 = vor.u32 %v423, %v427
        %v430 = vshll.u32 %v405, 16
        %v432 = vrot.slane %v430, 1
        %v433 = vsel %vm421, %v428, %v432
        %v435 = vshrl.u32 %v342, 16
        %v437 = vshll.u32 %v342, 16
        %v439 = vrot.slane %v437, 1
        %v440 = vor.u32 %v435, %v439
        %v442 = vshll.u32 %v406, 16
        %v444 = vrot.slane %v442, 1
        %v445 = vsel %vm421, %v440, %v444
        %v447 = vshrl.u32 %v343, 16
        %v449 = vshll.u32 %v343, 16
        %v451 = vrot.slane %v449, 1
        %v452 = vor.u32 %v447, %v451
        %v454 = vshll.u32 %v407, 16
        %v456 = vrot.slane %v454, 1
        %v457 = vsel %vm421, %v452, %v456
        %v459 = vshrl.u32 %v344, 16
        %v461 = vshll.u32 %v344, 16
        %v463 = vrot.slane %v461, 1
        %v464 = vor.u32 %v459, %v463
        %v466 = vshll.u32 %v408, 16
        %v468 = vrot.slane %v466, 1
        %v469 = vsel %vm421, %v464, %v468
        %v471 = vshrl.u32 %v345, 16
        %v473 = vshll.u32 %v345, 16
        %v475 = vrot.slane %v473, 1
        %v476 = vor.u32 %v471, %v475
        %v478 = vshll.u32 %v409, 16
        %v480 = vrot.slane %v478, 1
        %v481 = vsel %vm421, %v476, %v480
        %v483 = vshrl.u32 %v346, 16
        %v485 = vshll.u32 %v346, 16
        %v487 = vrot.slane %v485, 1
        %v488 = vor.u32 %v483, %v487
        %v490 = vshll.u32 %v410, 16
        %v492 = vrot.slane %v490, 1
        %v493 = vsel %vm421, %v488, %v492
        %v495 = vshrl.u32 %v347, 16
        %v497 = vshll.u32 %v347, 16
        %v499 = vrot.slane %v497, 1
        %v500 = vor.u32 %v495, %v499
        %v502 = vshll.u32 %v411, 16
        %v504 = vrot.slane %v502, 1
        %v505 = vsel %vm421, %v500, %v504
        %v507 = vshrl.u32 %v348, 16
        %v509 = vshll.u32 %v348, 16
        %v511 = vrot.slane %v509, 1
        %v512 = vor.u32 %v507, %v511
        %v514 = vshll.u32 %v412, 16
        %v516 = vrot.slane %v514, 1
        %v517 = vsel %vm421, %v512, %v516
        %v519 = vshrl.u32 %v349, 16
        %v521 = vshll.u32 %v349, 16
        %v523 = vrot.slane %v521, 1
        %v524 = vor.u32 %v519, %v523
        %v526 = vshll.u32 %v413, 16
        %v528 = vrot.slane %v526, 1
        %v529 = vsel %vm421, %v524, %v528
        %v531 = vshrl.u32 %v350, 16
        %v533 = vshll.u32 %v350, 16
        %v535 = vrot.slane %v533, 1
        %v536 = vor.u32 %v531, %v535
        %v538 = vshll.u32 %v414, 16
        %v540 = vrot.slane %v538, 1
        %v541 = vsel %vm421, %v536, %v540
        %v543 = vshrl.u32 %v351, 16
        %v545 = vshll.u32 %v351, 16
        %v547 = vrot.slane %v545, 1
        %v548 = vor.u32 %v543, %v547
        %v550 = vshll.u32 %v415, 16
        %v552 = vrot.slane %v550, 1
        %v553 = vsel %vm421, %v548, %v552
        %v555 = vshrl.u32 %v352, 16
        %v557 = vshll.u32 %v352, 16
        %v559 = vrot.slane %v557, 1
        %v560 = vor.u32 %v555, %v559
        %v562 = vshll.u32 %v416, 16
        %v564 = vrot.slane %v562, 1
        %v565 = vsel %vm421, %v560, %v564
        %v567 = vshrl.u32 %v353, 16
        %v569 = vshll.u32 %v353, 16
        %v571 = vrot.slane %v569, 1
        %v572 = vor.u32 %v567, %v571
        %v574 = vshll.u32 %v417, 16
        %v576 = vrot.slane %v574, 1
        %v577 = vsel %vm421, %v572, %v576
        %v579 = vshrl.u32 %v354, 16
        %v581 = vshll.u32 %v354, 16
        %v583 = vrot.slane %v581, 1
        %v584 = vor.u32 %v579, %v583
        %v586 = vshll.u32 %v418, 16
        %v588 = vrot.slane %v586, 1
        %v589 = vsel %vm421, %v584, %v588
        %v591 = vshrl.u32 %v355, 16
        %v593 = vshll.u32 %v355, 16
        %v595 = vrot.slane %v593, 1
        %v596 = vor.u32 %v591, %v595
        %v598 = vshll.u32 %v419, 16
        %v600 = vrot.slane %v598, 1
        %v601 = vsel %vm421, %v596, %v600
        %v603 = vshrl.u32 %v356, 16
        %v605 = vshll.u32 %v356, 16
        %v607 = vrot.slane %v605, 1
        %v608 = vor.u32 %v603, %v607
        %v610 = vshll.u32 %v420, 16
        %v612 = vrot.slane %v610, 1
        %v613 = vsel %vm421, %v608, %v612
        %v646 = vunpack.c.l.b16 %v261
        %v647 = vunpack.c.l.b16 %v262
        %v648 = vunpack.c.l.b16 %v263
        %v649 = vunpack.c.l.b16 %v264
        %v650 = vunpack.c.l.b16 %v265
        %v651 = vunpack.c.l.b16 %v266
        %v652 = vunpack.c.l.b16 %v267
        %v653 = vunpack.c.l.b16 %v268
        %v654 = vunpack.c.l.b16 %v269
        %v655 = vunpack.c.l.b16 %v270
        %v656 = vunpack.c.l.b16 %v271
        %v657 = vunpack.c.l.b16 %v272
        %v658 = vunpack.c.l.b16 %v273
        %v659 = vunpack.c.l.b16 %v274
        %v660 = vunpack.c.l.b16 %v275
        %v661 = vunpack.c.l.b16 %v276
        %v662 = vpack.c.b16 %v310, %v646
        %v663 = vpack.c.b16 %v312, %v647
        %v664 = vpack.c.b16 %v314, %v648
        %v665 = vpack.c.b16 %v316, %v649
        %v666 = vpack.c.b16 %v318, %v650
        %v667 = vpack.c.b16 %v320, %v651
        %v668 = vpack.c.b16 %v322, %v652
        %v669 = vpack.c.b16 %v324, %v653
        %v670 = vpack.c.b16 %v326, %v654
        %v671 = vpack.c.b16 %v328, %v655
        %v672 = vpack.c.b16 %v330, %v656
        %v673 = vpack.c.b16 %v332, %v657
        %v674 = vpack.c.b16 %v334, %v658
        %v675 = vpack.c.b16 %v336, %v659
        %v676 = vpack.c.b16 %v338, %v660
        %v677 = vpack.c.b16 %v340, %v661
        %vm678 = vcmask 1046528
        %v679 = vrot.slane %v662, 1
        %v680 = vrot.slane %v405, 1
        %v681 = vsel %vm678, %v679, %v680
        %v682 = vrot.slane %v663, 1
        %v683 = vrot.slane %v406, 1
        %v684 = vsel %vm678, %v682, %v683
        %v685 = vrot.slane %v664, 1
        %v686 = vrot.slane %v407, 1
        %v687 = vsel %vm678, %v685, %v686
        %v688 = vrot.slane %v665, 1
        %v689 = vrot.slane %v408, 1
        %v690 = vsel %vm678, %v688, %v689
        %v691 = vrot.slane %v666, 1
        %v692 = vrot.slane %v409, 1
        %v693 = vsel %vm678, %v691, %v692
        %v694 = vrot.slane %v667, 1
        %v695 = vrot.slane %v410, 1
        %v696 = vsel %vm678, %v694, %v695
        %v697 = vrot.slane %v668, 1
        %v698 = vrot.slane %v411, 1
        %v699 = vsel %vm678, %v697, %v698
        %v700 = vrot.slane %v669, 1
        %v701 = vrot.slane %v412, 1
        %v702 = vsel %vm678, %v700, %v701
        %v703 = vrot.slane %v670, 1
        %v704 = vrot.slane %v413, 1
        %v705 = vsel %vm678, %v703, %v704
        %v706 = vrot.slane %v671, 1
        %v707 = vrot.slane %v414, 1
        %v708 = vsel %vm678, %v706, %v707
        %v709 = vrot.slane %v672, 1
        %v710 = vrot.slane %v415, 1
        %v711 = vsel %vm678, %v709, %v710
        %v712 = vrot.slane %v673, 1
        %v713 = vrot.slane %v416, 1
        %v714 = vsel %vm678, %v712, %v713
        %v715 = vrot.slane %v674, 1
        %v716 = vrot.slane %v417, 1
        %v717 = vsel %vm678, %v715, %v716
        %v718 = vrot.slane %v675, 1
        %v719 = vrot.slane %v418, 1
        %v720 = vsel %vm678, %v718, %v719
        %v721 = vrot.slane %v676, 1
        %v722 = vrot.slane %v419, 1
        %v723 = vsel %vm678, %v721, %v722
        %v724 = vrot.slane %v677, 1
        %v725 = vrot.slane %v420, 1
        %v726 = vsel %vm678, %v724, %v725
        %v743 = vld [vmem:[%s1] sm:$0xf]
        %v744 = vld [vmem:[%s1 + $0x4] sm:$0xf]
        %v745 = vld [vmem:[%s1 + $0x8] sm:$0xf]
        %v746 = vld [vmem:[%s1 + $0xc] sm:$0xf]
        %v747 = vld [vmem:[%s1 + $0x10] sm:$0xf]
        %v748 = vld [vmem:[%s1 + $0x14] sm:$0xf]
        %v749 = vld [vmem:[%s1 + $0x18] sm:$0xf]
        %v750 = vld [vmem:[%s1 + $0x1c] sm:$0xf]
        %v751 = vld [vmem:[%s1 + $0x20] sm:$0xf]
        %v752 = vld [vmem:[%s1 + $0x24] sm:$0xf]
        %v753 = vld [vmem:[%s1 + $0x28] sm:$0xf]
        %v754 = vld [vmem:[%s1 + $0x2c] sm:$0xf]
        %v755 = vld [vmem:[%s1 + $0x30] sm:$0xf]
        %v756 = vld [vmem:[%s1 + $0x34] sm:$0xf]
        %v757 = vld [vmem:[%s1 + $0x38] sm:$0xf]
        %v758 = vld [vmem:[%s1 + $0x3c] sm:$0xf]
        %v759 = vld [vmem:[%s1 + $0x40] sm:$0xf]
        %v760 = vld [vmem:[%s1 + $0x44] sm:$0xf]
        %v761 = vld [vmem:[%s1 + $0x48] sm:$0xf]
        %v762 = vld [vmem:[%s1 + $0x4c] sm:$0xf]
        %v763 = vld [vmem:[%s1 + $0x50] sm:$0xf]
        %v764 = vld [vmem:[%s1 + $0x54] sm:$0xf]
        %v765 = vld [vmem:[%s1 + $0x58] sm:$0xf]
        %v766 = vld [vmem:[%s1 + $0x5c] sm:$0xf]
        %v767 = vld [vmem:[%s1 + $0x60] sm:$0xf]
        %v768 = vld [vmem:[%s1 + $0x64] sm:$0xf]
        %v769 = vld [vmem:[%s1 + $0x68] sm:$0xf]
        %v770 = vld [vmem:[%s1 + $0x6c] sm:$0xf]
        %v771 = vld [vmem:[%s1 + $0x70] sm:$0xf]
        %v772 = vld [vmem:[%s1 + $0x74] sm:$0xf]
        %v773 = vld [vmem:[%s1 + $0x78] sm:$0xf]
        %v774 = vld [vmem:[%s1 + $0x7c] sm:$0xf]
        %v775 = vld [vmem:[%s1 + $0x80] sm:$0xf]
        %v776 = vld [vmem:[%s1 + $0x84] sm:$0xf]
        %v777 = vld [vmem:[%s1 + $0x88] sm:$0xf]
        %v778 = vld [vmem:[%s1 + $0x8c] sm:$0xf]
        %v779 = vld [vmem:[%s1 + $0x90] sm:$0xf]
        %v780 = vld [vmem:[%s1 + $0x94] sm:$0xf]
        %v781 = vld [vmem:[%s1 + $0x98] sm:$0xf]
        %v782 = vld [vmem:[%s1 + $0x9c] sm:$0xf]
        %v783 = vld [vmem:[%s1 + $0xa0] sm:$0xf]
        %v784 = vld [vmem:[%s1 + $0xa4] sm:$0xf]
        %v785 = vld [vmem:[%s1 + $0xa8] sm:$0xf]
        %v786 = vld [vmem:[%s1 + $0xac] sm:$0xf]
        %v787 = vld [vmem:[%s1 + $0xb0] sm:$0xf]
        %v788 = vld [vmem:[%s1 + $0xb4] sm:$0xf]
        %v789 = vld [vmem:[%s1 + $0xb8] sm:$0xf]
        %v790 = vld [vmem:[%s1 + $0xbc] sm:$0xf]
        %s791 = scalar_lea.vmem %s211, 12
        %v792 = vld [vmem:[%s791] sm:$0xf]
        %v793 = vld [vmem:[%s791 + $0x4] sm:$0xf]
        %v794 = vld [vmem:[%s791 + $0xc] sm:$0xf]
        %v795 = vld [vmem:[%s791 + $0x10] sm:$0xf]
        %v796 = vld [vmem:[%s791 + $0x18] sm:$0xf]
        %v797 = vld [vmem:[%s791 + $0x1c] sm:$0xf]
        %v798 = vld [vmem:[%s791 + $0x24] sm:$0xf]
        %v799 = vld [vmem:[%s791 + $0x28] sm:$0xf]
        %v800 = vld [vmem:[%s791 + $0x30] sm:$0xf]
        %v801 = vld [vmem:[%s791 + $0x34] sm:$0xf]
        %v802 = vld [vmem:[%s791 + $0x3c] sm:$0xf]
        %v803 = vld [vmem:[%s791 + $0x40] sm:$0xf]
        %v804 = vld [vmem:[%s791 + $0x48] sm:$0xf]
        %v805 = vld [vmem:[%s791 + $0x4c] sm:$0xf]
        %v806 = vld [vmem:[%s791 + $0x54] sm:$0xf]
        %v807 = vld [vmem:[%s791 + $0x58] sm:$0xf]
        %v808 = vld [vmem:[%s791 + $0x60] sm:$0xf]
        %v809 = vld [vmem:[%s791 + $0x64] sm:$0xf]
        %v810 = vld [vmem:[%s791 + $0x6c] sm:$0xf]
        %v811 = vld [vmem:[%s791 + $0x70] sm:$0xf]
        %v812 = vld [vmem:[%s791 + $0x78] sm:$0xf]
        %v813 = vld [vmem:[%s791 + $0x7c] sm:$0xf]
        %v814 = vld [vmem:[%s791 + $0x84] sm:$0xf]
        %v815 = vld [vmem:[%s791 + $0x88] sm:$0xf]
        %v816 = vld [vmem:[%s791 + $0x90] sm:$0xf]
        %v817 = vld [vmem:[%s791 + $0x94] sm:$0xf]
        %v818 = vld [vmem:[%s791 + $0x9c] sm:$0xf]
        %v819 = vld [vmem:[%s791 + $0xa0] sm:$0xf]
        %v820 = vld [vmem:[%s791 + $0xa8] sm:$0xf]
        %v821 = vld [vmem:[%s791 + $0xac] sm:$0xf]
        %v822 = vld [vmem:[%s791 + $0xb4] sm:$0xf]
        %v823 = vld [vmem:[%s791 + $0xb8] sm:$0xf]
        %v824 = vld [vmem:[%s791 + $0x8] sm:$0x1]
        %v825 = vld [vmem:[%s791 + $0x14] sm:$0x1]
        %v826 = vld [vmem:[%s791 + $0x20] sm:$0x1]
        %v827 = vld [vmem:[%s791 + $0x2c] sm:$0x1]
        %v828 = vld [vmem:[%s791 + $0x38] sm:$0x1]
        %v829 = vld [vmem:[%s791 + $0x44] sm:$0x1]
        %v830 = vld [vmem:[%s791 + $0x50] sm:$0x1]
        %v831 = vld [vmem:[%s791 + $0x5c] sm:$0x1]
        %v832 = vld [vmem:[%s791 + $0x68] sm:$0x1]
        %v833 = vld [vmem:[%s791 + $0x74] sm:$0x1]
        %v834 = vld [vmem:[%s791 + $0x80] sm:$0x1]
        %v835 = vld [vmem:[%s791 + $0x8c] sm:$0x1]
        %v836 = vld [vmem:[%s791 + $0x98] sm:$0x1]
        %v837 = vld [vmem:[%s791 + $0xa4] sm:$0x1]
        %v838 = vld [vmem:[%s791 + $0xb0] sm:$0x1]
        %v839 = vld [vmem:[%s791 + $0xbc] sm:$0x1]
        %v840 = vld [vmem:[%s791] sm:$0xe]
        %v841 = vld [vmem:[%s791 + $0xc] sm:$0xe]
        %v842 = vld [vmem:[%s791 + $0x18] sm:$0xe]
        %v843 = vld [vmem:[%s791 + $0x24] sm:$0xe]
        %v844 = vld [vmem:[%s791 + $0x30] sm:$0xe]
        %v845 = vld [vmem:[%s791 + $0x3c] sm:$0xe]
        %v846 = vld [vmem:[%s791 + $0x48] sm:$0xe]
        %v847 = vld [vmem:[%s791 + $0x54] sm:$0xe]
        %v848 = vld [vmem:[%s791 + $0x60] sm:$0xe]
        %v849 = vld [vmem:[%s791 + $0x6c] sm:$0xe]
        %v850 = vld [vmem:[%s791 + $0x78] sm:$0xe]
        %v851 = vld [vmem:[%s791 + $0x84] sm:$0xe]
        %v852 = vld [vmem:[%s791 + $0x90] sm:$0xe]
        %v853 = vld [vmem:[%s791 + $0x9c] sm:$0xe]
        %v854 = vld [vmem:[%s791 + $0xa8] sm:$0xe]
        %v855 = vld [vmem:[%s791 + $0xb4] sm:$0xe]
        %v888 = vunpack.c.l.b16 %v792
        %v889 = vunpack.c.l.b16 %v793
        %v890 = vunpack.c.l.b16 %v794
        %v891 = vunpack.c.l.b16 %v795
        %v892 = vunpack.c.l.b16 %v796
        %v893 = vunpack.c.l.b16 %v797
        %v894 = vunpack.c.l.b16 %v798
        %v895 = vunpack.c.l.b16 %v799
        %v896 = vunpack.c.l.b16 %v800
        %v897 = vunpack.c.l.b16 %v801
        %v898 = vunpack.c.l.b16 %v802
        %v899 = vunpack.c.l.b16 %v803
        %v900 = vunpack.c.l.b16 %v804
        %v901 = vunpack.c.l.b16 %v805
        %v902 = vunpack.c.l.b16 %v806
        %v903 = vunpack.c.l.b16 %v807
        %v904 = vunpack.c.l.b16 %v808
        %v905 = vunpack.c.l.b16 %v809
        %v906 = vunpack.c.l.b16 %v810
        %v907 = vunpack.c.l.b16 %v811
        %v908 = vunpack.c.l.b16 %v812
        %v909 = vunpack.c.l.b16 %v813
        %v910 = vunpack.c.l.b16 %v814
        %v911 = vunpack.c.l.b16 %v815
        %v912 = vunpack.c.l.b16 %v816
        %v913 = vunpack.c.l.b16 %v817
        %v914 = vunpack.c.l.b16 %v818
        %v915 = vunpack.c.l.b16 %v819
        %v916 = vunpack.c.l.b16 %v820
        %v917 = vunpack.c.l.b16 %v821
        %v918 = vunpack.c.l.b16 %v822
        %v919 = vunpack.c.l.b16 %v823
        %v920 = vpack.c.b16 %v889, %v888
        %v921 = vpack.c.b16 %v891, %v890
        %v922 = vpack.c.b16 %v893, %v892
        %v923 = vpack.c.b16 %v895, %v894
        %v924 = vpack.c.b16 %v897, %v896
        %v925 = vpack.c.b16 %v899, %v898
        %v926 = vpack.c.b16 %v901, %v900
        %v927 = vpack.c.b16 %v903, %v902
        %v928 = vpack.c.b16 %v905, %v904
        %v929 = vpack.c.b16 %v907, %v906
        %v930 = vpack.c.b16 %v909, %v908
        %v931 = vpack.c.b16 %v911, %v910
        %v932 = vpack.c.b16 %v913, %v912
        %v933 = vpack.c.b16 %v915, %v914
        %v934 = vpack.c.b16 %v917, %v916
        %v935 = vpack.c.b16 %v919, %v918
        %v968 = vunpack.c.l.b16 %v824
        %v969 = vunpack.c.l.b16 %v825
        %v970 = vunpack.c.l.b16 %v826
        %v971 = vunpack.c.l.b16 %v827
        %v972 = vunpack.c.l.b16 %v828
        %v973 = vunpack.c.l.b16 %v829
        %v974 = vunpack.c.l.b16 %v830
        %v975 = vunpack.c.l.b16 %v831
        %v976 = vunpack.c.l.b16 %v832
        %v977 = vunpack.c.l.b16 %v833
        %v978 = vunpack.c.l.b16 %v834
        %v979 = vunpack.c.l.b16 %v835
        %v980 = vunpack.c.l.b16 %v836
        %v981 = vunpack.c.l.b16 %v837
        %v982 = vunpack.c.l.b16 %v838
        %v983 = vunpack.c.l.b16 %v839
        %v984 = vpack.c.b16 %v968, %v968
        %v985 = vpack.c.b16 %v969, %v969
        %v986 = vpack.c.b16 %v970, %v970
        %v987 = vpack.c.b16 %v971, %v971
        %v988 = vpack.c.b16 %v972, %v972
        %v989 = vpack.c.b16 %v973, %v973
        %v990 = vpack.c.b16 %v974, %v974
        %v991 = vpack.c.b16 %v975, %v975
        %v992 = vpack.c.b16 %v976, %v976
        %v993 = vpack.c.b16 %v977, %v977
        %v994 = vpack.c.b16 %v978, %v978
        %v995 = vpack.c.b16 %v979, %v979
        %v996 = vpack.c.b16 %v980, %v980
        %v997 = vpack.c.b16 %v981, %v981
        %v998 = vpack.c.b16 %v982, %v982
        %v999 = vpack.c.b16 %v983, %v983
        %v1001 = vshrl.u32 %v920, 16
        %v1003 = vshll.u32 %v920, 16
        %v1005 = vrot.slane %v1003, 1
        %v1006 = vor.u32 %v1001, %v1005
        %v1008 = vshll.u32 %v984, 16
        %v1010 = vrot.slane %v1008, 1
        %v1011 = vsel %vm421, %v1006, %v1010
        %v1013 = vshrl.u32 %v921, 16
        %v1015 = vshll.u32 %v921, 16
        %v1017 = vrot.slane %v1015, 1
        %v1018 = vor.u32 %v1013, %v1017
        %v1020 = vshll.u32 %v985, 16
        %v1022 = vrot.slane %v1020, 1
        %v1023 = vsel %vm421, %v1018, %v1022
        %v1025 = vshrl.u32 %v922, 16
        %v1027 = vshll.u32 %v922, 16
        %v1029 = vrot.slane %v1027, 1
        %v1030 = vor.u32 %v1025, %v1029
        %v1032 = vshll.u32 %v986, 16
        %v1034 = vrot.slane %v1032, 1
        %v1035 = vsel %vm421, %v1030, %v1034
        %v1037 = vshrl.u32 %v923, 16
        %v1039 = vshll.u32 %v923, 16
        %v1041 = vrot.slane %v1039, 1
        %v1042 = vor.u32 %v1037, %v1041
        %v1044 = vshll.u32 %v987, 16
        %v1046 = vrot.slane %v1044, 1
        %v1047 = vsel %vm421, %v1042, %v1046
        %v1049 = vshrl.u32 %v924, 16
        %v1051 = vshll.u32 %v924, 16
        %v1053 = vrot.slane %v1051, 1
        %v1054 = vor.u32 %v1049, %v1053
        %v1056 = vshll.u32 %v988, 16
        %v1058 = vrot.slane %v1056, 1
        %v1059 = vsel %vm421, %v1054, %v1058
        %v1061 = vshrl.u32 %v925, 16
        %v1063 = vshll.u32 %v925, 16
        %v1065 = vrot.slane %v1063, 1
        %v1066 = vor.u32 %v1061, %v1065
        %v1068 = vshll.u32 %v989, 16
        %v1070 = vrot.slane %v1068, 1
        %v1071 = vsel %vm421, %v1066, %v1070
        %v1073 = vshrl.u32 %v926, 16
        %v1075 = vshll.u32 %v926, 16
        %v1077 = vrot.slane %v1075, 1
        %v1078 = vor.u32 %v1073, %v1077
        %v1080 = vshll.u32 %v990, 16
        %v1082 = vrot.slane %v1080, 1
        %v1083 = vsel %vm421, %v1078, %v1082
        %v1085 = vshrl.u32 %v927, 16
        %v1087 = vshll.u32 %v927, 16
        %v1089 = vrot.slane %v1087, 1
        %v1090 = vor.u32 %v1085, %v1089
        %v1092 = vshll.u32 %v991, 16
        %v1094 = vrot.slane %v1092, 1
        %v1095 = vsel %vm421, %v1090, %v1094
        %v1097 = vshrl.u32 %v928, 16
        %v1099 = vshll.u32 %v928, 16
        %v1101 = vrot.slane %v1099, 1
        %v1102 = vor.u32 %v1097, %v1101
        %v1104 = vshll.u32 %v992, 16
        %v1106 = vrot.slane %v1104, 1
        %v1107 = vsel %vm421, %v1102, %v1106
        %v1109 = vshrl.u32 %v929, 16
        %v1111 = vshll.u32 %v929, 16
        %v1113 = vrot.slane %v1111, 1
        %v1114 = vor.u32 %v1109, %v1113
        %v1116 = vshll.u32 %v993, 16
        %v1118 = vrot.slane %v1116, 1
        %v1119 = vsel %vm421, %v1114, %v1118
        %v1121 = vshrl.u32 %v930, 16
        %v1123 = vshll.u32 %v930, 16
        %v1125 = vrot.slane %v1123, 1
        %v1126 = vor.u32 %v1121, %v1125
        %v1128 = vshll.u32 %v994, 16
        %v1130 = vrot.slane %v1128, 1
        %v1131 = vsel %vm421, %v1126, %v1130
        %v1133 = vshrl.u32 %v931, 16
        %v1135 = vshll.u32 %v931, 16
        %v1137 = vrot.slane %v1135, 1
        %v1138 = vor.u32 %v1133, %v1137
        %v1140 = vshll.u32 %v995, 16
        %v1142 = vrot.slane %v1140, 1
        %v1143 = vsel %vm421, %v1138, %v1142
        %v1145 = vshrl.u32 %v932, 16
        %v1147 = vshll.u32 %v932, 16
        %v1149 = vrot.slane %v1147, 1
        %v1150 = vor.u32 %v1145, %v1149
        %v1152 = vshll.u32 %v996, 16
        %v1154 = vrot.slane %v1152, 1
        %v1155 = vsel %vm421, %v1150, %v1154
        %v1157 = vshrl.u32 %v933, 16
        %v1159 = vshll.u32 %v933, 16
        %v1161 = vrot.slane %v1159, 1
        %v1162 = vor.u32 %v1157, %v1161
        %v1164 = vshll.u32 %v997, 16
        %v1166 = vrot.slane %v1164, 1
        %v1167 = vsel %vm421, %v1162, %v1166
        %v1169 = vshrl.u32 %v934, 16
        %v1171 = vshll.u32 %v934, 16
        %v1173 = vrot.slane %v1171, 1
        %v1174 = vor.u32 %v1169, %v1173
        %v1176 = vshll.u32 %v998, 16
        %v1178 = vrot.slane %v1176, 1
        %v1179 = vsel %vm421, %v1174, %v1178
        %v1181 = vshrl.u32 %v935, 16
        %v1183 = vshll.u32 %v935, 16
        %v1185 = vrot.slane %v1183, 1
        %v1186 = vor.u32 %v1181, %v1185
        %v1188 = vshll.u32 %v999, 16
        %v1190 = vrot.slane %v1188, 1
        %v1191 = vsel %vm421, %v1186, %v1190
        %v1224 = vunpack.c.l.b16 %v840
        %v1225 = vunpack.c.l.b16 %v841
        %v1226 = vunpack.c.l.b16 %v842
        %v1227 = vunpack.c.l.b16 %v843
        %v1228 = vunpack.c.l.b16 %v844
        %v1229 = vunpack.c.l.b16 %v845
        %v1230 = vunpack.c.l.b16 %v846
        %v1231 = vunpack.c.l.b16 %v847
        %v1232 = vunpack.c.l.b16 %v848
        %v1233 = vunpack.c.l.b16 %v849
        %v1234 = vunpack.c.l.b16 %v850
        %v1235 = vunpack.c.l.b16 %v851
        %v1236 = vunpack.c.l.b16 %v852
        %v1237 = vunpack.c.l.b16 %v853
        %v1238 = vunpack.c.l.b16 %v854
        %v1239 = vunpack.c.l.b16 %v855
        %v1240 = vpack.c.b16 %v889, %v1224
        %v1241 = vpack.c.b16 %v891, %v1225
        %v1242 = vpack.c.b16 %v893, %v1226
        %v1243 = vpack.c.b16 %v895, %v1227
        %v1244 = vpack.c.b16 %v897, %v1228
        %v1245 = vpack.c.b16 %v899, %v1229
        %v1246 = vpack.c.b16 %v901, %v1230
        %v1247 = vpack.c.b16 %v903, %v1231
        %v1248 = vpack.c.b16 %v905, %v1232
        %v1249 = vpack.c.b16 %v907, %v1233
        %v1250 = vpack.c.b16 %v909, %v1234
        %v1251 = vpack.c.b16 %v911, %v1235
        %v1252 = vpack.c.b16 %v913, %v1236
        %v1253 = vpack.c.b16 %v915, %v1237
        %v1254 = vpack.c.b16 %v917, %v1238
        %v1255 = vpack.c.b16 %v919, %v1239
        %v1256 = vrot.slane %v1240, 1
        %v1257 = vrot.slane %v984, 1
        %v1258 = vsel %vm678, %v1256, %v1257
        %v1259 = vrot.slane %v1241, 1
        %v1260 = vrot.slane %v985, 1
        %v1261 = vsel %vm678, %v1259, %v1260
        %v1262 = vrot.slane %v1242, 1
        %v1263 = vrot.slane %v986, 1
        %v1264 = vsel %vm678, %v1262, %v1263
        %v1265 = vrot.slane %v1243, 1
        %v1266 = vrot.slane %v987, 1
        %v1267 = vsel %vm678, %v1265, %v1266
        %v1268 = vrot.slane %v1244, 1
        %v1269 = vrot.slane %v988, 1
        %v1270 = vsel %vm678, %v1268, %v1269
        %v1271 = vrot.slane %v1245, 1
        %v1272 = vrot.slane %v989, 1
        %v1273 = vsel %vm678, %v1271, %v1272
        %v1274 = vrot.slane %v1246, 1
        %v1275 = vrot.slane %v990, 1
        %v1276 = vsel %vm678, %v1274, %v1275
        %v1277 = vrot.slane %v1247, 1
        %v1278 = vrot.slane %v991, 1
        %v1279 = vsel %vm678, %v1277, %v1278
        %v1280 = vrot.slane %v1248, 1
        %v1281 = vrot.slane %v992, 1
        %v1282 = vsel %vm678, %v1280, %v1281
        %v1283 = vrot.slane %v1249, 1
        %v1284 = vrot.slane %v993, 1
        %v1285 = vsel %vm678, %v1283, %v1284
        %v1286 = vrot.slane %v1250, 1
        %v1287 = vrot.slane %v994, 1
        %v1288 = vsel %vm678, %v1286, %v1287
        %v1289 = vrot.slane %v1251, 1
        %v1290 = vrot.slane %v995, 1
        %v1291 = vsel %vm678, %v1289, %v1290
        %v1292 = vrot.slane %v1252, 1
        %v1293 = vrot.slane %v996, 1
        %v1294 = vsel %vm678, %v1292, %v1293
        %v1295 = vrot.slane %v1253, 1
        %v1296 = vrot.slane %v997, 1
        %v1297 = vsel %vm678, %v1295, %v1296
        %v1298 = vrot.slane %v1254, 1
        %v1299 = vrot.slane %v998, 1
        %v1300 = vsel %vm678, %v1298, %v1299
        %v1301 = vrot.slane %v1255, 1
        %v1302 = vrot.slane %v999, 1
        %v1303 = vsel %vm678, %v1301, %v1302
        %s1320 = scalar_lea.vmem %s1, 192
        %v1321 = vld [vmem:[%s1320] sm:$0xf]
        %v1322 = vld [vmem:[%s1320 + $0x4] sm:$0xf]
        %v1323 = vld [vmem:[%s1320 + $0x8] sm:$0xf]
        %v1324 = vld [vmem:[%s1320 + $0xc] sm:$0xf]
        %v1325 = vld [vmem:[%s1320 + $0x10] sm:$0xf]
        %v1326 = vld [vmem:[%s1320 + $0x14] sm:$0xf]
        %v1327 = vld [vmem:[%s1320 + $0x18] sm:$0xf]
        %v1328 = vld [vmem:[%s1320 + $0x1c] sm:$0xf]
        %v1329 = vld [vmem:[%s1320 + $0x20] sm:$0xf]
        %v1330 = vld [vmem:[%s1320 + $0x24] sm:$0xf]
        %v1331 = vld [vmem:[%s1320 + $0x28] sm:$0xf]
        %v1332 = vld [vmem:[%s1320 + $0x2c] sm:$0xf]
        %v1333 = vld [vmem:[%s1320 + $0x30] sm:$0xf]
        %v1334 = vld [vmem:[%s1320 + $0x34] sm:$0xf]
        %v1335 = vld [vmem:[%s1320 + $0x38] sm:$0xf]
        %v1336 = vld [vmem:[%s1320 + $0x3c] sm:$0xf]
        %v1337 = vld [vmem:[%s1320 + $0x40] sm:$0xf]
        %v1338 = vld [vmem:[%s1320 + $0x44] sm:$0xf]
        %v1339 = vld [vmem:[%s1320 + $0x48] sm:$0xf]
        %v1340 = vld [vmem:[%s1320 + $0x4c] sm:$0xf]
        %v1341 = vld [vmem:[%s1320 + $0x50] sm:$0xf]
        %v1342 = vld [vmem:[%s1320 + $0x54] sm:$0xf]
        %v1343 = vld [vmem:[%s1320 + $0x58] sm:$0xf]
        %v1344 = vld [vmem:[%s1320 + $0x5c] sm:$0xf]
        %v1345 = vld [vmem:[%s1320 + $0x60] sm:$0xf]
        %v1346 = vld [vmem:[%s1320 + $0x64] sm:$0xf]
        %v1347 = vld [vmem:[%s1320 + $0x68] sm:$0xf]
        %v1348 = vld [vmem:[%s1320 + $0x6c] sm:$0xf]
        %v1349 = vld [vmem:[%s1320 + $0x70] sm:$0xf]
        %v1350 = vld [vmem:[%s1320 + $0x74] sm:$0xf]
        %v1351 = vld [vmem:[%s1320 + $0x78] sm:$0xf]
        %v1352 = vld [vmem:[%s1320 + $0x7c] sm:$0xf]
        %v1353 = vld [vmem:[%s1320 + $0x80] sm:$0xf]
        %v1354 = vld [vmem:[%s1320 + $0x84] sm:$0xf]
        %v1355 = vld [vmem:[%s1320 + $0x88] sm:$0xf]
        %v1356 = vld [vmem:[%s1320 + $0x8c] sm:$0xf]
        %v1357 = vld [vmem:[%s1320 + $0x90] sm:$0xf]
        %v1358 = vld [vmem:[%s1320 + $0x94] sm:$0xf]
        %v1359 = vld [vmem:[%s1320 + $0x98] sm:$0xf]
        %v1360 = vld [vmem:[%s1320 + $0x9c] sm:$0xf]
        %v1361 = vld [vmem:[%s1320 + $0xa0] sm:$0xf]
        %v1362 = vld [vmem:[%s1320 + $0xa4] sm:$0xf]
        %v1363 = vld [vmem:[%s1320 + $0xa8] sm:$0xf]
        %v1364 = vld [vmem:[%s1320 + $0xac] sm:$0xf]
        %v1365 = vld [vmem:[%s1320 + $0xb0] sm:$0xf]
        %v1366 = vld [vmem:[%s1320 + $0xb4] sm:$0xf]
        %v1367 = vld [vmem:[%s1320 + $0xb8] sm:$0xf]
        %v1368 = vld [vmem:[%s1320 + $0xbc] sm:$0xf]
        %v1417 = vunpack.c.l.b16 %v1321
        %v1418 = vunpack.c.l.b16 %v1322
        %v1419 = vunpack.c.l.b16 %v1323
        %v1420 = vunpack.c.l.b16 %v1324
        %v1421 = vunpack.c.l.b16 %v1325
        %v1422 = vunpack.c.l.b16 %v1326
        %v1423 = vunpack.c.l.b16 %v1327
        %v1424 = vunpack.c.l.b16 %v1328
        %v1425 = vunpack.c.l.b16 %v1329
        %v1426 = vunpack.c.l.b16 %v1330
        %v1427 = vunpack.c.l.b16 %v1331
        %v1428 = vunpack.c.l.b16 %v1332
        %v1429 = vunpack.c.l.b16 %v1333
        %v1430 = vunpack.c.l.b16 %v1334
        %v1431 = vunpack.c.l.b16 %v1335
        %v1432 = vunpack.c.l.b16 %v1336
        %v1433 = vunpack.c.l.b16 %v1337
        %v1434 = vunpack.c.l.b16 %v1338
        %v1435 = vunpack.c.l.b16 %v1339
        %v1436 = vunpack.c.l.b16 %v1340
        %v1437 = vunpack.c.l.b16 %v1341
        %v1438 = vunpack.c.l.b16 %v1342
        %v1439 = vunpack.c.l.b16 %v1343
        %v1440 = vunpack.c.l.b16 %v1344
        %v1441 = vunpack.c.l.b16 %v1345
        %v1442 = vunpack.c.l.b16 %v1346
        %v1443 = vunpack.c.l.b16 %v1347
        %v1444 = vunpack.c.l.b16 %v1348
        %v1445 = vunpack.c.l.b16 %v1349
        %v1446 = vunpack.c.l.b16 %v1350
        %v1447 = vunpack.c.l.b16 %v1351
        %v1448 = vunpack.c.l.b16 %v1352
        %v1449 = vunpack.c.l.b16 %v1353
        %v1450 = vunpack.c.l.b16 %v1354
        %v1451 = vunpack.c.l.b16 %v1355
        %v1452 = vunpack.c.l.b16 %v1356
        %v1453 = vunpack.c.l.b16 %v1357
        %v1454 = vunpack.c.l.b16 %v1358
        %v1455 = vunpack.c.l.b16 %v1359
        %v1456 = vunpack.c.l.b16 %v1360
        %v1457 = vunpack.c.l.b16 %v1361
        %v1458 = vunpack.c.l.b16 %v1362
        %v1459 = vunpack.c.l.b16 %v1363
        %v1460 = vunpack.c.l.b16 %v1364
        %v1461 = vunpack.c.l.b16 %v1365
        %v1462 = vunpack.c.l.b16 %v1366
        %v1463 = vunpack.c.l.b16 %v1367
        %v1464 = vunpack.c.l.b16 %v1368
        %v1465 = vpack.c.b16 %v1418, %v1417
        %v1466 = vpack.c.b16 %v1420, %v1419
        %v1467 = vpack.c.b16 %v1422, %v1421
        %v1468 = vpack.c.b16 %v1424, %v1423
        %v1469 = vpack.c.b16 %v1426, %v1425
        %v1470 = vpack.c.b16 %v1428, %v1427
        %v1471 = vpack.c.b16 %v1430, %v1429
        %v1472 = vpack.c.b16 %v1432, %v1431
        %v1473 = vpack.c.b16 %v1434, %v1433
        %v1474 = vpack.c.b16 %v1436, %v1435
        %v1475 = vpack.c.b16 %v1438, %v1437
        %v1476 = vpack.c.b16 %v1440, %v1439
        %v1477 = vpack.c.b16 %v1442, %v1441
        %v1478 = vpack.c.b16 %v1444, %v1443
        %v1479 = vpack.c.b16 %v1446, %v1445
        %v1480 = vpack.c.b16 %v1448, %v1447
        %v1481 = vpack.c.b16 %v1450, %v1449
        %v1482 = vpack.c.b16 %v1452, %v1451
        %v1483 = vpack.c.b16 %v1454, %v1453
        %v1484 = vpack.c.b16 %v1456, %v1455
        %v1485 = vpack.c.b16 %v1458, %v1457
        %v1486 = vpack.c.b16 %v1460, %v1459
        %v1487 = vpack.c.b16 %v1462, %v1461
        %v1488 = vpack.c.b16 %v1464, %v1463
        %1513 = vmatprep.subr.bf16.mxu0 0
        %1514 = vmatpush1.bf16.msra.mxu0 %v1465
        %1515 = vmatprep.subr.bf16.mxu0 0
        %1516 = vmatpush1.bf16.msra.mxu0 %v1466
        %1517 = vmatprep.subr.bf16.mxu0 0
        %1518 = vmatpush1.bf16.msra.mxu0 %v1467
        %1519 = vmatprep.subr.bf16.mxu0 0
        %1520 = vmatpush1.bf16.msra.mxu0 %v1468
        %1521 = vmatprep.subr.bf16.mxu0 0
        %1522 = vmatpush1.bf16.msra.mxu0 %v1469
        %1523 = vmatprep.subr.bf16.mxu0 0
        %1524 = vmatpush1.bf16.msra.mxu0 %v1470
        %1525 = vmatprep.subr.bf16.mxu0 0
        %1526 = vmatpush1.bf16.msra.mxu0 %v1471
        %1527 = vmatprep.subr.bf16.mxu0 0
        %1528 = vmatpush1.bf16.msra.mxu0 %v1472
        %1529 = vmatprep.subr.bf16.mxu0 0
        %1530 = vmatpush1.bf16.msra.mxu0 %v1473
        %1531 = vmatprep.subr.bf16.mxu0 0
        %1532 = vmatpush1.bf16.msra.mxu0 %v1474
        %1533 = vmatprep.subr.bf16.mxu0 0
        %1534 = vmatpush1.bf16.msra.mxu0 %v1475
        %1535 = vmatprep.subr.bf16.mxu0 0
        %1536 = vmatpush1.bf16.msra.mxu0 %v1476
        %1537 = vmatprep.subr.bf16.mxu0 0
        %1538 = vmatpush1.bf16.msra.mxu0 %v1477
        %1539 = vmatprep.subr.bf16.mxu0 0
        %1540 = vmatpush1.bf16.msra.mxu0 %v1478
        %1541 = vmatprep.subr.bf16.mxu0 0
        %1542 = vmatpush1.bf16.msra.mxu0 %v1479
        %1543 = vmatprep.subr.bf16.mxu0 0
        %1544 = vmatpush1.bf16.msra.mxu0 %v1480
        %1545 = vmatprep.mubr.bf16.mxu0 %v1011
        %1546 = vmatmul.mubr.bf16.gmra.mrb[0].mxu0 %v920
        %v1547 = vpop.f32.mrb[0].mxu0
        %v1548 = vadd.f32 0.0, %v1547
        %v1549 = vpop.f32.mrb[0].mxu0
        %v1550 = vpop.f32.mrb[0].mxu0
        %v1551 = vadd.f32 0.0, %v1550
        %v1552 = vpop.f32.mrb[0].mxu0
        %1553 = vmatprep.mubr.bf16.mxu0 %v1023
        %1554 = vmatmul.mubr.bf16.gmra.mrb[0].mxu0 %v921
        %v1555 = vpop.f32.mrb[0].mxu0
        %v1556 = vadd.f32 0.0, %v1555
        %v1557 = vpop.f32.mrb[0].mxu0
        %v1558 = vpop.f32.mrb[0].mxu0
        %v1559 = vadd.f32 0.0, %v1558
        %v1560 = vpop.f32.mrb[0].mxu0
        %1561 = vmatprep.mubr.bf16.mxu0 %v1035
        %1562 = vmatmul.mubr.bf16.gmra.mrb[0].mxu0 %v922
        %v1563 = vpop.f32.mrb[0].mxu0
        %v1564 = vadd.f32 0.0, %v1563
        %v1565 = vpop.f32.mrb[0].mxu0
        %v1566 = vpop.f32.mrb[0].mxu0
        %v1567 = vadd.f32 0.0, %v1566
        %v1568 = vpop.f32.mrb[0].mxu0
        %1569 = vmatprep.mubr.bf16.mxu0 %v1047
        %1570 = vmatmul.mubr.bf16.gmra.mrb[0].mxu0 %v923
        %v1571 = vpop.f32.mrb[0].mxu0
        %v1572 = vadd.f32 0.0, %v1571
        %v1573 = vpop.f32.mrb[0].mxu0
        %v1574 = vpop.f32.mrb[0].mxu0
        %v1575 = vadd.f32 0.0, %v1574
        %v1576 = vpop.f32.mrb[0].mxu0
        %1577 = vmatprep.mubr.bf16.mxu0 %v1059
        %1578 = vmatmul.mubr.bf16.gmra.mrb[0].mxu0 %v924
        %v1579 = vpop.f32.mrb[0].mxu0
        %v1580 = vadd.f32 0.0, %v1579
        %v1581 = vpop.f32.mrb[0].mxu0
        %v1582 = vpop.f32.mrb[0].mxu0
        %v1583 = vadd.f32 0.0, %v1582
        %v1584 = vpop.f32.mrb[0].mxu0
        %1585 = vmatprep.mubr.bf16.mxu0 %v1071
        %1586 = vmatmul.mubr.bf16.gmra.mrb[0].mxu0 %v925
        %v1587 = vpop.f32.mrb[0].mxu0
        %v1588 = vadd.f32 0.0, %v1587
        %v1589 = vpop.f32.mrb[0].mxu0
        %v1590 = vpop.f32.mrb[0].mxu0
        %v1591 = vadd.f32 0.0, %v1590
        %v1592 = vpop.f32.mrb[0].mxu0
        %1593 = vmatprep.mubr.bf16.mxu0 %v1083
        %1594 = vmatmul.mubr.bf16.gmra.mrb[0].mxu0 %v926
        %v1595 = vpop.f32.mrb[0].mxu0
        %v1596 = vadd.f32 0.0, %v1595
        %v1597 = vpop.f32.mrb[0].mxu0
        %v1598 = vpop.f32.mrb[0].mxu0
        %v1599 = vadd.f32 0.0, %v1598
        %v1600 = vpop.f32.mrb[0].mxu0
        %1601 = vmatprep.mubr.bf16.mxu0 %v1095
        %1602 = vmatmul.mubr.bf16.gmra.mrb[0].mxu0 %v927
        %v1603 = vpop.f32.mrb[0].mxu0
        %v1604 = vadd.f32 0.0, %v1603
        %v1605 = vpop.f32.mrb[0].mxu0
        %v1606 = vpop.f32.mrb[0].mxu0
        %v1607 = vadd.f32 0.0, %v1606
        %v1608 = vpop.f32.mrb[0].mxu0
        %1609 = vmatprep.mubr.bf16.mxu0 %v1107
        %1610 = vmatmul.mubr.bf16.gmra.mrb[0].mxu0 %v928
        %v1611 = vpop.f32.mrb[0].mxu0
        %v1612 = vadd.f32 0.0, %v1611
        %v1613 = vpop.f32.mrb[0].mxu0
        %v1614 = vpop.f32.mrb[0].mxu0
        %v1615 = vadd.f32 0.0, %v1614
        %v1616 = vpop.f32.mrb[0].mxu0
        %1617 = vmatprep.mubr.bf16.mxu0 %v1119
        %1618 = vmatmul.mubr.bf16.gmra.mrb[0].mxu0 %v929
        %v1619 = vpop.f32.mrb[0].mxu0
        %v1620 = vadd.f32 0.0, %v1619
        %v1621 = vpop.f32.mrb[0].mxu0
        %v1622 = vpop.f32.mrb[0].mxu0
        %v1623 = vadd.f32 0.0, %v1622
        %v1624 = vpop.f32.mrb[0].mxu0
        %1625 = vmatprep.mubr.bf16.mxu0 %v1131
        %1626 = vmatmul.mubr.bf16.gmra.mrb[0].mxu0 %v930
        %v1627 = vpop.f32.mrb[0].mxu0
        %v1628 = vadd.f32 0.0, %v1627
        %v1629 = vpop.f32.mrb[0].mxu0
        %v1630 = vpop.f32.mrb[0].mxu0
        %v1631 = vadd.f32 0.0, %v1630
        %v1632 = vpop.f32.mrb[0].mxu0
        %1633 = vmatprep.mubr.bf16.mxu0 %v1143
        %1634 = vmatmul.mubr.bf16.gmra.mrb[0].mxu0 %v931
        %v1635 = vpop.f32.mrb[0].mxu0
        %v1636 = vadd.f32 0.0, %v1635
        %v1637 = vpop.f32.mrb[0].mxu0
        %v1638 = vpop.f32.mrb[0].mxu0
        %v1639 = vadd.f32 0.0, %v1638
        %v1640 = vpop.f32.mrb[0].mxu0
        %1641 = vmatprep.mubr.bf16.mxu0 %v1155
        %1642 = vmatmul.mubr.bf16.gmra.mrb[0].mxu0 %v932
        %v1643 = vpop.f32.mrb[0].mxu0
        %v1644 = vadd.f32 0.0, %v1643
        %v1645 = vpop.f32.mrb[0].mxu0
        %v1646 = vpop.f32.mrb[0].mxu0
        %v1647 = vadd.f32 0.0, %v1646
        %v1648 = vpop.f32.mrb[0].mxu0
        %1649 = vmatprep.mubr.bf16.mxu0 %v1167
        %1650 = vmatmul.mubr.bf16.gmra.mrb[0].mxu0 %v933
        %v1651 = vpop.f32.mrb[0].mxu0
        %v1652 = vadd.f32 0.0, %v1651
        %v1653 = vpop.f32.mrb[0].mxu0
        %v1654 = vpop.f32.mrb[0].mxu0
        %v1655 = vadd.f32 0.0, %v1654
        %v1656 = vpop.f32.mrb[0].mxu0
        %1657 = vmatprep.mubr.bf16.mxu0 %v1179
        %1658 = vmatmul.mubr.bf16.gmra.mrb[0].mxu0 %v934
        %v1659 = vpop.f32.mrb[0].mxu0
        %v1660 = vadd.f32 0.0, %v1659
        %v1661 = vpop.f32.mrb[0].mxu0
        %v1662 = vpop.f32.mrb[0].mxu0
        %v1663 = vadd.f32 0.0, %v1662
        %v1664 = vpop.f32.mrb[0].mxu0
        %1665 = vmatprep.mubr.bf16.mxu0 %v1191
        %1666 = vmatmul.mubr.bf16.gmra.mrb[0].mxu0 %v935
        %v1667 = vpop.f32.mrb[0].mxu0
        %v1668 = vadd.f32 0.0, %v1667
        %v1669 = vpop.f32.mrb[0].mxu0
        %v1670 = vpop.f32.mrb[0].mxu0
        %v1671 = vadd.f32 0.0, %v1670
        %v1672 = vpop.f32.mrb[0].mxu0
        %1673 = vdwg.mxu0
        %1674 = vmatprep.subr.bf16.mxu0 0
        %1675 = vmatpush1.bf16.msra.mxu0 %v1481
        %1676 = vmatprep.subr.bf16.mxu0 0
        %1677 = vmatpush1.bf16.msra.mxu0 %v1482
        %1678 = vmatprep.subr.bf16.mxu0 0
        %1679 = vmatpush1.bf16.msra.mxu0 %v1483
        %1680 = vmatprep.subr.bf16.mxu0 0
        %1681 = vmatpush1.bf16.msra.mxu0 %v1484
        %1682 = vmatprep.subr.bf16.mxu0 0
        %1683 = vmatpush1.bf16.msra.mxu0 %v1485
        %1684 = vmatprep.subr.bf16.mxu0 0
        %1685 = vmatpush1.bf16.msra.mxu0 %v1486
        %1686 = vmatprep.subr.bf16.mxu0 0
        %1687 = vmatpush1.bf16.msra.mxu0 %v1487
        %1688 = vmatprep.subr.bf16.mxu0 0
        %1689 = vmatpush1.bf16.msra.mxu0 %v1488
        %1690 = vmatprep.subr.bf16.mxu0 0
        %1691 = vmatpush1.bf16.msra.mxu0 0
        %1692 = vmatprep.subr.bf16.mxu0 0
        %1693 = vmatpush1.bf16.msra.mxu0 0
        %1694 = vmatprep.subr.bf16.mxu0 0
        %1695 = vmatpush1.bf16.msra.mxu0 0
        %1696 = vmatprep.subr.bf16.mxu0 0
        %1697 = vmatpush1.bf16.msra.mxu0 0
        %1698 = vmatprep.subr.bf16.mxu0 0
        %1699 = vmatpush1.bf16.msra.mxu0 0
        %1700 = vmatprep.subr.bf16.mxu0 0
        %1701 = vmatpush1.bf16.msra.mxu0 0
        %1702 = vmatprep.subr.bf16.mxu0 0
        %1703 = vmatpush1.bf16.msra.mxu0 0
        %1704 = vmatprep.subr.bf16.mxu0 0
        %1705 = vmatpush1.bf16.msra.mxu0 0
        %1706 = vmatprep.mubr.bf16.mxu0 0
        %1707 = vmatmul.mubr.bf16.gmra.mrb[0].mxu0 %v1258
        %v1708 = vpop.f32.mrb[0].mxu0
        %v1709 = vadd.f32 %v1548, %v1708
        %v1710 = vpop.f32.mrb[0].mxu0
        %v1711 = vpop.f32.mrb[0].mxu0
        %v1712 = vadd.f32 %v1551, %v1711
        %v1713 = vpop.f32.mrb[0].mxu0
        %1714 = vmatprep.mubr.bf16.mxu0 0
        %1715 = vmatmul.mubr.bf16.gmra.mrb[0].mxu0 %v1261
        %v1716 = vpop.f32.mrb[0].mxu0
        %v1717 = vadd.f32 %v1556, %v1716
        %v1718 = vpop.f32.mrb[0].mxu0
        %v1719 = vpop.f32.mrb[0].mxu0
        %v1720 = vadd.f32 %v1559, %v1719
        %v1721 = vpop.f32.mrb[0].mxu0
        %1722 = vmatprep.mubr.bf16.mxu0 0
        %1723 = vmatmul.mubr.bf16.gmra.mrb[0].mxu0 %v1264
        %v1724 = vpop.f32.mrb[0].mxu0
        %v1725 = vadd.f32 %v1564, %v1724
        %v1726 = vpop.f32.mrb[0].mxu0
        %v1727 = vpop.f32.mrb[0].mxu0
        %v1728 = vadd.f32 %v1567, %v1727
        %v1729 = vpop.f32.mrb[0].mxu0
        %1730 = vmatprep.mubr.bf16.mxu0 0
        %1731 = vmatmul.mubr.bf16.gmra.mrb[0].mxu0 %v1267
        %v1732 = vpop.f32.mrb[0].mxu0
        %v1733 = vadd.f32 %v1572, %v1732
        %v1734 = vpop.f32.mrb[0].mxu0
        %v1735 = vpop.f32.mrb[0].mxu0
        %v1736 = vadd.f32 %v1575, %v1735
        %v1737 = vpop.f32.mrb[0].mxu0
        %1738 = vmatprep.mubr.bf16.mxu0 0
        %1739 = vmatmul.mubr.bf16.gmra.mrb[0].mxu0 %v1270
        %v1740 = vpop.f32.mrb[0].mxu0
        %v1741 = vadd.f32 %v1580, %v1740
        %v1742 = vpop.f32.mrb[0].mxu0
        %v1743 = vpop.f32.mrb[0].mxu0
        %v1744 = vadd.f32 %v1583, %v1743
        %v1745 = vpop.f32.mrb[0].mxu0
        %1746 = vmatprep.mubr.bf16.mxu0 0
        %1747 = vmatmul.mubr.bf16.gmra.mrb[0].mxu0 %v1273
        %v1748 = vpop.f32.mrb[0].mxu0
        %v1749 = vadd.f32 %v1588, %v1748
        %v1750 = vpop.f32.mrb[0].mxu0
        %v1751 = vpop.f32.mrb[0].mxu0
        %v1752 = vadd.f32 %v1591, %v1751
        %v1753 = vpop.f32.mrb[0].mxu0
        %1754 = vmatprep.mubr.bf16.mxu0 0
        %1755 = vmatmul.mubr.bf16.gmra.mrb[0].mxu0 %v1276
        %v1756 = vpop.f32.mrb[0].mxu0
        %v1757 = vadd.f32 %v1596, %v1756
        %v1758 = vpop.f32.mrb[0].mxu0
        %v1759 = vpop.f32.mrb[0].mxu0
        %v1760 = vadd.f32 %v1599, %v1759
        %v1761 = vpop.f32.mrb[0].mxu0
        %1762 = vmatprep.mubr.bf16.mxu0 0
        %1763 = vmatmul.mubr.bf16.gmra.mrb[0].mxu0 %v1279
        %v1764 = vpop.f32.mrb[0].mxu0
        %v1765 = vadd.f32 %v1604, %v1764
        %v1766 = vpop.f32.mrb[0].mxu0
        %v1767 = vpop.f32.mrb[0].mxu0
        %v1768 = vadd.f32 %v1607, %v1767
        %v1769 = vpop.f32.mrb[0].mxu0
        %1770 = vmatprep.mubr.bf16.mxu0 0
        %1771 = vmatmul.mubr.bf16.gmra.mrb[0].mxu0 %v1282
        %v1772 = vpop.f32.mrb[0].mxu0
        %v1773 = vadd.f32 %v1612, %v1772
        %v1774 = vpop.f32.mrb[0].mxu0
        %v1775 = vpop.f32.mrb[0].mxu0
        %v1776 = vadd.f32 %v1615, %v1775
        %v1777 = vpop.f32.mrb[0].mxu0
        %1778 = vmatprep.mubr.bf16.mxu0 0
        %1779 = vmatmul.mubr.bf16.gmra.mrb[0].mxu0 %v1285
        %v1780 = vpop.f32.mrb[0].mxu0
        %v1781 = vadd.f32 %v1620, %v1780
        %v1782 = vpop.f32.mrb[0].mxu0
        %v1783 = vpop.f32.mrb[0].mxu0
        %v1784 = vadd.f32 %v1623, %v1783
        %v1785 = vpop.f32.mrb[0].mxu0
        %1786 = vmatprep.mubr.bf16.mxu0 0
        %1787 = vmatmul.mubr.bf16.gmra.mrb[0].mxu0 %v1288
        %v1788 = vpop.f32.mrb[0].mxu0
        %v1789 = vadd.f32 %v1628, %v1788
        %v1790 = vpop.f32.mrb[0].mxu0
        %v1791 = vpop.f32.mrb[0].mxu0
        %v1792 = vadd.f32 %v1631, %v1791
        %v1793 = vpop.f32.mrb[0].mxu0
        %1794 = vmatprep.mubr.bf16.mxu0 0
        %1795 = vmatmul.mubr.bf16.gmra.mrb[0].mxu0 %v1291
        %v1796 = vpop.f32.mrb[0].mxu0
        %v1797 = vadd.f32 %v1636, %v1796
        %v1798 = vpop.f32.mrb[0].mxu0
        %v1799 = vpop.f32.mrb[0].mxu0
        %v1800 = vadd.f32 %v1639, %v1799
        %v1801 = vpop.f32.mrb[0].mxu0
        %1802 = vmatprep.mubr.bf16.mxu0 0
        %1803 = vmatmul.mubr.bf16.gmra.mrb[0].mxu0 %v1294
        %v1804 = vpop.f32.mrb[0].mxu0
        %v1805 = vadd.f32 %v1644, %v1804
        %v1806 = vpop.f32.mrb[0].mxu0
        %v1807 = vpop.f32.mrb[0].mxu0
        %v1808 = vadd.f32 %v1647, %v1807
        %v1809 = vpop.f32.mrb[0].mxu0
        %1810 = vmatprep.mubr.bf16.mxu0 0
        %1811 = vmatmul.mubr.bf16.gmra.mrb[0].mxu0 %v1297
        %v1812 = vpop.f32.mrb[0].mxu0
        %v1813 = vadd.f32 %v1652, %v1812
        %v1814 = vpop.f32.mrb[0].mxu0
        %v1815 = vpop.f32.mrb[0].mxu0
        %v1816 = vadd.f32 %v1655, %v1815
        %v1817 = vpop.f32.mrb[0].mxu0
        %1818 = vmatprep.mubr.bf16.mxu0 0
        %1819 = vmatmul.mubr.bf16.gmra.mrb[0].mxu0 %v1300
        %v1820 = vpop.f32.mrb[0].mxu0
        %v1821 = vadd.f32 %v1660, %v1820
        %v1822 = vpop.f32.mrb[0].mxu0
        %v1823 = vpop.f32.mrb[0].mxu0
        %v1824 = vadd.f32 %v1663, %v1823
        %v1825 = vpop.f32.mrb[0].mxu0
        %1826 = vmatprep.mubr.bf16.mxu0 0
        %1827 = vmatmul.mubr.bf16.gmra.mrb[0].mxu0 %v1303
        %v1828 = vpop.f32.mrb[0].mxu0
        %v1829 = vadd.f32 %v1668, %v1828
        %v1830 = vpop.f32.mrb[0].mxu0
        %v1831 = vpop.f32.mrb[0].mxu0
        %v1832 = vadd.f32 %v1671, %v1831
        %v1833 = vpop.f32.mrb[0].mxu0
        %1834 = vdwg.mxu0
        %v1883 = vunpack.c.l.b16 %v743
        %v1884 = vunpack.c.l.b16 %v744
        %v1885 = vunpack.c.l.b16 %v745
        %v1886 = vunpack.c.l.b16 %v746
        %v1887 = vunpack.c.l.b16 %v747
        %v1888 = vunpack.c.l.b16 %v748
        %v1889 = vunpack.c.l.b16 %v749
        %v1890 = vunpack.c.l.b16 %v750
        %v1891 = vunpack.c.l.b16 %v751
        %v1892 = vunpack.c.l.b16 %v752
        %v1893 = vunpack.c.l.b16 %v753
        %v1894 = vunpack.c.l.b16 %v754
        %v1895 = vunpack.c.l.b16 %v755
        %v1896 = vunpack.c.l.b16 %v756
        %v1897 = vunpack.c.l.b16 %v757
        %v1898 = vunpack.c.l.b16 %v758
        %v1899 = vunpack.c.l.b16 %v759
        %v1900 = vunpack.c.l.b16 %v760
        %v1901 = vunpack.c.l.b16 %v761
        %v1902 = vunpack.c.l.b16 %v762
        %v1903 = vunpack.c.l.b16 %v763
        %v1904 = vunpack.c.l.b16 %v764
        %v1905 = vunpack.c.l.b16 %v765
        %v1906 = vunpack.c.l.b16 %v766
        %v1907 = vunpack.c.l.b16 %v767
        %v1908 = vunpack.c.l.b16 %v768
        %v1909 = vunpack.c.l.b16 %v769
        %v1910 = vunpack.c.l.b16 %v770
        %v1911 = vunpack.c.l.b16 %v771
        %v1912 = vunpack.c.l.b16 %v772
        %v1913 = vunpack.c.l.b16 %v773
        %v1914 = vunpack.c.l.b16 %v774
        %v1915 = vunpack.c.l.b16 %v775
        %v1916 = vunpack.c.l.b16 %v776
        %v1917 = vunpack.c.l.b16 %v777
        %v1918 = vunpack.c.l.b16 %v778
        %v1919 = vunpack.c.l.b16 %v779
        %v1920 = vunpack.c.l.b16 %v780
        %v1921 = vunpack.c.l.b16 %v781
        %v1922 = vunpack.c.l.b16 %v782
        %v1923 = vunpack.c.l.b16 %v783
        %v1924 = vunpack.c.l.b16 %v784
        %v1925 = vunpack.c.l.b16 %v785
        %v1926 = vunpack.c.l.b16 %v786
        %v1927 = vunpack.c.l.b16 %v787
        %v1928 = vunpack.c.l.b16 %v788
        %v1929 = vunpack.c.l.b16 %v789
        %v1930 = vunpack.c.l.b16 %v790
        %v1931 = vpack.c.b16 %v1884, %v1883
        %v1932 = vpack.c.b16 %v1886, %v1885
        %v1933 = vpack.c.b16 %v1888, %v1887
        %v1934 = vpack.c.b16 %v1890, %v1889
        %v1935 = vpack.c.b16 %v1892, %v1891
        %v1936 = vpack.c.b16 %v1894, %v1893
        %v1937 = vpack.c.b16 %v1896, %v1895
        %v1938 = vpack.c.b16 %v1898, %v1897
        %v1939 = vpack.c.b16 %v1900, %v1899
        %v1940 = vpack.c.b16 %v1902, %v1901
        %v1941 = vpack.c.b16 %v1904, %v1903
        %v1942 = vpack.c.b16 %v1906, %v1905
        %v1943 = vpack.c.b16 %v1908, %v1907
        %v1944 = vpack.c.b16 %v1910, %v1909
        %v1945 = vpack.c.b16 %v1912, %v1911
        %v1946 = vpack.c.b16 %v1914, %v1913
        %v1947 = vpack.c.b16 %v1916, %v1915
        %v1948 = vpack.c.b16 %v1918, %v1917
        %v1949 = vpack.c.b16 %v1920, %v1919
        %v1950 = vpack.c.b16 %v1922, %v1921
        %v1951 = vpack.c.b16 %v1924, %v1923
        %v1952 = vpack.c.b16 %v1926, %v1925
        %v1953 = vpack.c.b16 %v1928, %v1927
        %v1954 = vpack.c.b16 %v1930, %v1929
        %1979 = vmatprep.subr.bf16.mxu0 0
        %1980 = vmatpush1.bf16.msra.mxu0 %v1931
        %1981 = vmatprep.subr.bf16.mxu0 0
        %1982 = vmatpush1.bf16.msra.mxu0 %v1932
        %1983 = vmatprep.subr.bf16.mxu0 0
        %1984 = vmatpush1.bf16.msra.mxu0 %v1933
        %1985 = vmatprep.subr.bf16.mxu0 0
        %1986 = vmatpush1.bf16.msra.mxu0 %v1934
        %1987 = vmatprep.subr.bf16.mxu0 0
        %1988 = vmatpush1.bf16.msra.mxu0 %v1935
        %1989 = vmatprep.subr.bf16.mxu0 0
        %1990 = vmatpush1.bf16.msra.mxu0 %v1936
        %1991 = vmatprep.subr.bf16.mxu0 0
        %1992 = vmatpush1.bf16.msra.mxu0 %v1937
        %1993 = vmatprep.subr.bf16.mxu0 0
        %1994 = vmatpush1.bf16.msra.mxu0 %v1938
        %1995 = vmatprep.subr.bf16.mxu0 0
        %1996 = vmatpush1.bf16.msra.mxu0 %v1939
        %1997 = vmatprep.subr.bf16.mxu0 0
        %1998 = vmatpush1.bf16.msra.mxu0 %v1940
        %1999 = vmatprep.subr.bf16.mxu0 0
        %2000 = vmatpush1.bf16.msra.mxu0 %v1941
        %2001 = vmatprep.subr.bf16.mxu0 0
        %2002 = vmatpush1.bf16.msra.mxu0 %v1942
        %2003 = vmatprep.subr.bf16.mxu0 0
        %2004 = vmatpush1.bf16.msra.mxu0 %v1943
        %2005 = vmatprep.subr.bf16.mxu0 0
        %2006 = vmatpush1.bf16.msra.mxu0 %v1944
        %2007 = vmatprep.subr.bf16.mxu0 0
        %2008 = vmatpush1.bf16.msra.mxu0 %v1945
        %2009 = vmatprep.subr.bf16.mxu0 0
        %2010 = vmatpush1.bf16.msra.mxu0 %v1946
        %2011 = vmatprep.mubr.bf16.mxu0 %v433
        %2012 = vmatmul.mubr.bf16.gmra.mrb[0].mxu0 %v341
        %v2013 = vpop.f32.mrb[0].mxu0
        %v2014 = vadd.f32 %v1709, %v2013
        %v2015 = vpop.f32.mrb[0].mxu0
        %v2016 = vpop.f32.mrb[0].mxu0
        %v2017 = vadd.f32 %v1712, %v2016
        %v2018 = vpop.f32.mrb[0].mxu0
        %2019 = vmatprep.mubr.bf16.mxu0 %v445
        %2020 = vmatmul.mubr.bf16.gmra.mrb[0].mxu0 %v342
        %v2021 = vpop.f32.mrb[0].mxu0
        %v2022 = vadd.f32 %v1717, %v2021
        %v2023 = vpop.f32.mrb[0].mxu0
        %v2024 = vpop.f32.mrb[0].mxu0
        %v2025 = vadd.f32 %v1720, %v2024
        %v2026 = vpop.f32.mrb[0].mxu0
        %2027 = vmatprep.mubr.bf16.mxu0 %v457
        %2028 = vmatmul.mubr.bf16.gmra.mrb[0].mxu0 %v343
        %v2029 = vpop.f32.mrb[0].mxu0
        %v2030 = vadd.f32 %v1725, %v2029
        %v2031 = vpop.f32.mrb[0].mxu0
        %v2032 = vpop.f32.mrb[0].mxu0
        %v2033 = vadd.f32 %v1728, %v2032
        %v2034 = vpop.f32.mrb[0].mxu0
        %2035 = vmatprep.mubr.bf16.mxu0 %v469
        %2036 = vmatmul.mubr.bf16.gmra.mrb[0].mxu0 %v344
        %v2037 = vpop.f32.mrb[0].mxu0
        %v2038 = vadd.f32 %v1733, %v2037
        %v2039 = vpop.f32.mrb[0].mxu0
        %v2040 = vpop.f32.mrb[0].mxu0
        %v2041 = vadd.f32 %v1736, %v2040
        %v2042 = vpop.f32.mrb[0].mxu0
        %2043 = vmatprep.mubr.bf16.mxu0 %v481
        %2044 = vmatmul.mubr.bf16.gmra.mrb[0].mxu0 %v345
        %v2045 = vpop.f32.mrb[0].mxu0
        %v2046 = vadd.f32 %v1741, %v2045
        %v2047 = vpop.f32.mrb[0].mxu0
        %v2048 = vpop.f32.mrb[0].mxu0
        %v2049 = vadd.f32 %v1744, %v2048
        %v2050 = vpop.f32.mrb[0].mxu0
        %2051 = vmatprep.mubr.bf16.mxu0 %v493
        %2052 = vmatmul.mubr.bf16.gmra.mrb[0].mxu0 %v346
        %v2053 = vpop.f32.mrb[0].mxu0
        %v2054 = vadd.f32 %v1749, %v2053
        %v2055 = vpop.f32.mrb[0].mxu0
        %v2056 = vpop.f32.mrb[0].mxu0
        %v2057 = vadd.f32 %v1752, %v2056
        %v2058 = vpop.f32.mrb[0].mxu0
        %2059 = vmatprep.mubr.bf16.mxu0 %v505
        %2060 = vmatmul.mubr.bf16.gmra.mrb[0].mxu0 %v347
        %v2061 = vpop.f32.mrb[0].mxu0
        %v2062 = vadd.f32 %v1757, %v2061
        %v2063 = vpop.f32.mrb[0].mxu0
        %v2064 = vpop.f32.mrb[0].mxu0
        %v2065 = vadd.f32 %v1760, %v2064
        %v2066 = vpop.f32.mrb[0].mxu0
        %2067 = vmatprep.mubr.bf16.mxu0 %v517
        %2068 = vmatmul.mubr.bf16.gmra.mrb[0].mxu0 %v348
        %v2069 = vpop.f32.mrb[0].mxu0
        %v2070 = vadd.f32 %v1765, %v2069
        %v2071 = vpop.f32.mrb[0].mxu0
        %v2072 = vpop.f32.mrb[0].mxu0
        %v2073 = vadd.f32 %v1768, %v2072
        %v2074 = vpop.f32.mrb[0].mxu0
        %2075 = vmatprep.mubr.bf16.mxu0 %v529
        %2076 = vmatmul.mubr.bf16.gmra.mrb[0].mxu0 %v349
        %v2077 = vpop.f32.mrb[0].mxu0
        %v2078 = vadd.f32 %v1773, %v2077
        %v2079 = vpop.f32.mrb[0].mxu0
        %v2080 = vpop.f32.mrb[0].mxu0
        %v2081 = vadd.f32 %v1776, %v2080
        %v2082 = vpop.f32.mrb[0].mxu0
        %2083 = vmatprep.mubr.bf16.mxu0 %v541
        %2084 = vmatmul.mubr.bf16.gmra.mrb[0].mxu0 %v350
        %v2085 = vpop.f32.mrb[0].mxu0
        %v2086 = vadd.f32 %v1781, %v2085
        %v2087 = vpop.f32.mrb[0].mxu0
        %v2088 = vpop.f32.mrb[0].mxu0
        %v2089 = vadd.f32 %v1784, %v2088
        %v2090 = vpop.f32.mrb[0].mxu0
        %2091 = vmatprep.mubr.bf16.mxu0 %v553
        %2092 = vmatmul.mubr.bf16.gmra.mrb[0].mxu0 %v351
        %v2093 = vpop.f32.mrb[0].mxu0
        %v2094 = vadd.f32 %v1789, %v2093
        %v2095 = vpop.f32.mrb[0].mxu0
        %v2096 = vpop.f32.mrb[0].mxu0
        %v2097 = vadd.f32 %v1792, %v2096
        %v2098 = vpop.f32.mrb[0].mxu0
        %2099 = vmatprep.mubr.bf16.mxu0 %v565
        %2100 = vmatmul.mubr.bf16.gmra.mrb[0].mxu0 %v352
        %v2101 = vpop.f32.mrb[0].mxu0
        %v2102 = vadd.f32 %v1797, %v2101
        %v2103 = vpop.f32.mrb[0].mxu0
        %v2104 = vpop.f32.mrb[0].mxu0
        %v2105 = vadd.f32 %v1800, %v2104
        %v2106 = vpop.f32.mrb[0].mxu0
        %2107 = vmatprep.mubr.bf16.mxu0 %v577
        %2108 = vmatmul.mubr.bf16.gmra.mrb[0].mxu0 %v353
        %v2109 = vpop.f32.mrb[0].mxu0
        %v2110 = vadd.f32 %v1805, %v2109
        %v2111 = vpop.f32.mrb[0].mxu0
        %v2112 = vpop.f32.mrb[0].mxu0
        %v2113 = vadd.f32 %v1808, %v2112
        %v2114 = vpop.f32.mrb[0].mxu0
        %2115 = vmatprep.mubr.bf16.mxu0 %v589
        %2116 = vmatmul.mubr.bf16.gmra.mrb[0].mxu0 %v354
        %v2117 = vpop.f32.mrb[0].mxu0
        %v2118 = vadd.f32 %v1813, %v2117
        %v2119 = vpop.f32.mrb[0].mxu0
        %v2120 = vpop.f32.mrb[0].mxu0
        %v2121 = vadd.f32 %v1816, %v2120
        %v2122 = vpop.f32.mrb[0].mxu0
        %2123 = vmatprep.mubr.bf16.mxu0 %v601
        %2124 = vmatmul.mubr.bf16.gmra.mrb[0].mxu0 %v355
        %v2125 = vpop.f32.mrb[0].mxu0
        %v2126 = vadd.f32 %v1821, %v2125
        %v2127 = vpop.f32.mrb[0].mxu0
        %v2128 = vpop.f32.mrb[0].mxu0
        %v2129 = vadd.f32 %v1824, %v2128
        %v2130 = vpop.f32.mrb[0].mxu0
        %2131 = vmatprep.mubr.bf16.mxu0 %v613
        %2132 = vmatmul.mubr.bf16.gmra.mrb[0].mxu0 %v356
        %v2133 = vpop.f32.mrb[0].mxu0
        %v2134 = vadd.f32 %v1829, %v2133
        %v2135 = vpop.f32.mrb[0].mxu0
        %v2136 = vpop.f32.mrb[0].mxu0
        %v2137 = vadd.f32 %v1832, %v2136
        %v2138 = vpop.f32.mrb[0].mxu0
        %2139 = vdwg.mxu0
        %2140 = vmatprep.subr.bf16.mxu0 0
        %2141 = vmatpush1.bf16.msra.mxu0 %v1947
        %2142 = vmatprep.subr.bf16.mxu0 0
        %2143 = vmatpush1.bf16.msra.mxu0 %v1948
        %2144 = vmatprep.subr.bf16.mxu0 0
        %2145 = vmatpush1.bf16.msra.mxu0 %v1949
        %2146 = vmatprep.subr.bf16.mxu0 0
        %2147 = vmatpush1.bf16.msra.mxu0 %v1950
        %2148 = vmatprep.subr.bf16.mxu0 0
        %2149 = vmatpush1.bf16.msra.mxu0 %v1951
        %2150 = vmatprep.subr.bf16.mxu0 0
        %2151 = vmatpush1.bf16.msra.mxu0 %v1952
        %2152 = vmatprep.subr.bf16.mxu0 0
        %2153 = vmatpush1.bf16.msra.mxu0 %v1953
        %2154 = vmatprep.subr.bf16.mxu0 0
        %2155 = vmatpush1.bf16.msra.mxu0 %v1954
        %2156 = vmatprep.subr.bf16.mxu0 0
        %2157 = vmatpush1.bf16.msra.mxu0 0
        %2158 = vmatprep.subr.bf16.mxu0 0
        %2159 = vmatpush1.bf16.msra.mxu0 0
        %2160 = vmatprep.subr.bf16.mxu0 0
        %2161 = vmatpush1.bf16.msra.mxu0 0
        %2162 = vmatprep.subr.bf16.mxu0 0
        %2163 = vmatpush1.bf16.msra.mxu0 0
        %2164 = vmatprep.subr.bf16.mxu0 0
        %2165 = vmatpush1.bf16.msra.mxu0 0
        %2166 = vmatprep.subr.bf16.mxu0 0
        %2167 = vmatpush1.bf16.msra.mxu0 0
        %2168 = vmatprep.subr.bf16.mxu0 0
        %2169 = vmatpush1.bf16.msra.mxu0 0
        %2170 = vmatprep.subr.bf16.mxu0 0
        %2171 = vmatpush1.bf16.msra.mxu0 0
        %2172 = vmatprep.mubr.bf16.mxu0 0
        %2173 = vmatmul.mubr.bf16.gmra.mrb[0].mxu0 %v681
        %v2174 = vpop.f32.mrb[0].mxu0
        %v2175 = vadd.f32 %v2014, %v2174
        %v2176 = vpop.f32.mrb[0].mxu0
        %v2177 = vpop.f32.mrb[0].mxu0
        %v2178 = vadd.f32 %v2017, %v2177
        %v2179 = vpop.f32.mrb[0].mxu0
        %2180 = vmatprep.mubr.bf16.mxu0 0
        %2181 = vmatmul.mubr.bf16.gmra.mrb[0].mxu0 %v684
        %v2182 = vpop.f32.mrb[0].mxu0
        %v2183 = vadd.f32 %v2022, %v2182
        %v2184 = vpop.f32.mrb[0].mxu0
        %v2185 = vpop.f32.mrb[0].mxu0
        %v2186 = vadd.f32 %v2025, %v2185
        %v2187 = vpop.f32.mrb[0].mxu0
        %2188 = vmatprep.mubr.bf16.mxu0 0
        %2189 = vmatmul.mubr.bf16.gmra.mrb[0].mxu0 %v687
        %v2190 = vpop.f32.mrb[0].mxu0
        %v2191 = vadd.f32 %v2030, %v2190
        %v2192 = vpop.f32.mrb[0].mxu0
        %v2193 = vpop.f32.mrb[0].mxu0
        %v2194 = vadd.f32 %v2033, %v2193
        %v2195 = vpop.f32.mrb[0].mxu0
        %2196 = vmatprep.mubr.bf16.mxu0 0
        %2197 = vmatmul.mubr.bf16.gmra.mrb[0].mxu0 %v690
        %v2198 = vpop.f32.mrb[0].mxu0
        %v2199 = vadd.f32 %v2038, %v2198
        %v2200 = vpop.f32.mrb[0].mxu0
        %v2201 = vpop.f32.mrb[0].mxu0
        %v2202 = vadd.f32 %v2041, %v2201
        %v2203 = vpop.f32.mrb[0].mxu0
        %2204 = vmatprep.mubr.bf16.mxu0 0
        %2205 = vmatmul.mubr.bf16.gmra.mrb[0].mxu0 %v693
        %v2206 = vpop.f32.mrb[0].mxu0
        %v2207 = vadd.f32 %v2046, %v2206
        %v2208 = vpop.f32.mrb[0].mxu0
        %v2209 = vpop.f32.mrb[0].mxu0
        %v2210 = vadd.f32 %v2049, %v2209
        %v2211 = vpop.f32.mrb[0].mxu0
        %2212 = vmatprep.mubr.bf16.mxu0 0
        %2213 = vmatmul.mubr.bf16.gmra.mrb[0].mxu0 %v696
        %v2214 = vpop.f32.mrb[0].mxu0
        %v2215 = vadd.f32 %v2054, %v2214
        %v2216 = vpop.f32.mrb[0].mxu0
        %v2217 = vpop.f32.mrb[0].mxu0
        %v2218 = vadd.f32 %v2057, %v2217
        %v2219 = vpop.f32.mrb[0].mxu0
        %2220 = vmatprep.mubr.bf16.mxu0 0
        %2221 = vmatmul.mubr.bf16.gmra.mrb[0].mxu0 %v699
        %v2222 = vpop.f32.mrb[0].mxu0
        %v2223 = vadd.f32 %v2062, %v2222
        %v2224 = vpop.f32.mrb[0].mxu0
        %v2225 = vpop.f32.mrb[0].mxu0
        %v2226 = vadd.f32 %v2065, %v2225
        %v2227 = vpop.f32.mrb[0].mxu0
        %2228 = vmatprep.mubr.bf16.mxu0 0
        %2229 = vmatmul.mubr.bf16.gmra.mrb[0].mxu0 %v702
        %v2230 = vpop.f32.mrb[0].mxu0
        %v2231 = vadd.f32 %v2070, %v2230
        %v2232 = vpop.f32.mrb[0].mxu0
        %v2233 = vpop.f32.mrb[0].mxu0
        %v2234 = vadd.f32 %v2073, %v2233
        %v2235 = vpop.f32.mrb[0].mxu0
        %2236 = vmatprep.mubr.bf16.mxu0 0
        %2237 = vmatmul.mubr.bf16.gmra.mrb[0].mxu0 %v705
        %v2238 = vpop.f32.mrb[0].mxu0
        %v2239 = vadd.f32 %v2078, %v2238
        %v2240 = vpop.f32.mrb[0].mxu0
        %v2241 = vpop.f32.mrb[0].mxu0
        %v2242 = vadd.f32 %v2081, %v2241
        %v2243 = vpop.f32.mrb[0].mxu0
        %2244 = vmatprep.mubr.bf16.mxu0 0
        %2245 = vmatmul.mubr.bf16.gmra.mrb[0].mxu0 %v708
        %v2246 = vpop.f32.mrb[0].mxu0
        %v2247 = vadd.f32 %v2086, %v2246
        %v2248 = vpop.f32.mrb[0].mxu0
        %v2249 = vpop.f32.mrb[0].mxu0
        %v2250 = vadd.f32 %v2089, %v2249
        %v2251 = vpop.f32.mrb[0].mxu0
        %2252 = vmatprep.mubr.bf16.mxu0 0
        %2253 = vmatmul.mubr.bf16.gmra.mrb[0].mxu0 %v711
        %v2254 = vpop.f32.mrb[0].mxu0
        %v2255 = vadd.f32 %v2094, %v2254
        %v2256 = vpop.f32.mrb[0].mxu0
        %v2257 = vpop.f32.mrb[0].mxu0
        %v2258 = vadd.f32 %v2097, %v2257
        %v2259 = vpop.f32.mrb[0].mxu0
        %2260 = vmatprep.mubr.bf16.mxu0 0
        %2261 = vmatmul.mubr.bf16.gmra.mrb[0].mxu0 %v714
        %v2262 = vpop.f32.mrb[0].mxu0
        %v2263 = vadd.f32 %v2102, %v2262
        %v2264 = vpop.f32.mrb[0].mxu0
        %v2265 = vpop.f32.mrb[0].mxu0
        %v2266 = vadd.f32 %v2105, %v2265
        %v2267 = vpop.f32.mrb[0].mxu0
        %2268 = vmatprep.mubr.bf16.mxu0 0
        %2269 = vmatmul.mubr.bf16.gmra.mrb[0].mxu0 %v717
        %v2270 = vpop.f32.mrb[0].mxu0
        %v2271 = vadd.f32 %v2110, %v2270
        %v2272 = vpop.f32.mrb[0].mxu0
        %v2273 = vpop.f32.mrb[0].mxu0
        %v2274 = vadd.f32 %v2113, %v2273
        %v2275 = vpop.f32.mrb[0].mxu0
        %2276 = vmatprep.mubr.bf16.mxu0 0
        %2277 = vmatmul.mubr.bf16.gmra.mrb[0].mxu0 %v720
        %v2278 = vpop.f32.mrb[0].mxu0
        %v2279 = vadd.f32 %v2118, %v2278
        %v2280 = vpop.f32.mrb[0].mxu0
        %v2281 = vpop.f32.mrb[0].mxu0
        %v2282 = vadd.f32 %v2121, %v2281
        %v2283 = vpop.f32.mrb[0].mxu0
        %2284 = vmatprep.mubr.bf16.mxu0 0
        %2285 = vmatmul.mubr.bf16.gmra.mrb[0].mxu0 %v723
        %v2286 = vpop.f32.mrb[0].mxu0
        %v2287 = vadd.f32 %v2126, %v2286
        %v2288 = vpop.f32.mrb[0].mxu0
        %v2289 = vpop.f32.mrb[0].mxu0
        %v2290 = vadd.f32 %v2129, %v2289
        %v2291 = vpop.f32.mrb[0].mxu0
        %2292 = vmatprep.mubr.bf16.mxu0 0
        %2293 = vmatmul.mubr.bf16.gmra.mrb[0].mxu0 %v726
        %v2294 = vpop.f32.mrb[0].mxu0
        %v2295 = vadd.f32 %v2134, %v2294
        %v2296 = vpop.f32.mrb[0].mxu0
        %v2297 = vpop.f32.mrb[0].mxu0
        %v2298 = vadd.f32 %v2137, %v2297
        %v2299 = vpop.f32.mrb[0].mxu0
        %2300 = vdwg.mxu0
        %s2301 = scalar_lea.vmem %s211, 24
        %v2302 = vld [vmem:[%s2301] sm:$0xf]
        %v2303 = vld [vmem:[%s2301 + $0x4] sm:$0xf]
        %v2304 = vld [vmem:[%s2301 + $0xc] sm:$0xf]
        %v2305 = vld [vmem:[%s2301 + $0x10] sm:$0xf]
        %v2306 = vld [vmem:[%s2301 + $0x18] sm:$0xf]
        %v2307 = vld [vmem:[%s2301 + $0x1c] sm:$0xf]
        %v2308 = vld [vmem:[%s2301 + $0x24] sm:$0xf]
        %v2309 = vld [vmem:[%s2301 + $0x28] sm:$0xf]
        %v2310 = vld [vmem:[%s2301 + $0x30] sm:$0xf]
        %v2311 = vld [vmem:[%s2301 + $0x34] sm:$0xf]
        %v2312 = vld [vmem:[%s2301 + $0x3c] sm:$0xf]
        %v2313 = vld [vmem:[%s2301 + $0x40] sm:$0xf]
        %v2314 = vld [vmem:[%s2301 + $0x48] sm:$0xf]
        %v2315 = vld [vmem:[%s2301 + $0x4c] sm:$0xf]
        %v2316 = vld [vmem:[%s2301 + $0x54] sm:$0xf]
        %v2317 = vld [vmem:[%s2301 + $0x58] sm:$0xf]
        %v2318 = vld [vmem:[%s2301 + $0x60] sm:$0xf]
        %v2319 = vld [vmem:[%s2301 + $0x64] sm:$0xf]
        %v2320 = vld [vmem:[%s2301 + $0x6c] sm:$0xf]
        %v2321 = vld [vmem:[%s2301 + $0x70] sm:$0xf]
        %v2322 = vld [vmem:[%s2301 + $0x78] sm:$0xf]
        %v2323 = vld [vmem:[%s2301 + $0x7c] sm:$0xf]
        %v2324 = vld [vmem:[%s2301 + $0x84] sm:$0xf]
        %v2325 = vld [vmem:[%s2301 + $0x88] sm:$0xf]
        %v2326 = vld [vmem:[%s2301 + $0x90] sm:$0xf]
        %v2327 = vld [vmem:[%s2301 + $0x94] sm:$0xf]
        %v2328 = vld [vmem:[%s2301 + $0x9c] sm:$0xf]
        %v2329 = vld [vmem:[%s2301 + $0xa0] sm:$0xf]
        %v2330 = vld [vmem:[%s2301 + $0xa8] sm:$0xf]
        %v2331 = vld [vmem:[%s2301 + $0xac] sm:$0xf]
        %v2332 = vld [vmem:[%s2301 + $0xb4] sm:$0xf]
        %v2333 = vld [vmem:[%s2301 + $0xb8] sm:$0xf]
        %v2334 = vld [vmem:[%s2301 + $0x8] sm:$0x1]
        %v2335 = vld [vmem:[%s2301 + $0x14] sm:$0x1]
        %v2336 = vld [vmem:[%s2301 + $0x20] sm:$0x1]
        %v2337 = vld [vmem:[%s2301 + $0x2c] sm:$0x1]
        %v2338 = vld [vmem:[%s2301 + $0x38] sm:$0x1]
        %v2339 = vld [vmem:[%s2301 + $0x44] sm:$0x1]
        %v2340 = vld [vmem:[%s2301 + $0x50] sm:$0x1]
        %v2341 = vld [vmem:[%s2301 + $0x5c] sm:$0x1]
        %v2342 = vld [vmem:[%s2301 + $0x68] sm:$0x1]
        %v2343 = vld [vmem:[%s2301 + $0x74] sm:$0x1]
        %v2344 = vld [vmem:[%s2301 + $0x80] sm:$0x1]
        %v2345 = vld [vmem:[%s2301 + $0x8c] sm:$0x1]
        %v2346 = vld [vmem:[%s2301 + $0x98] sm:$0x1]
        %v2347 = vld [vmem:[%s2301 + $0xa4] sm:$0x1]
        %v2348 = vld [vmem:[%s2301 + $0xb0] sm:$0x1]
        %v2349 = vld [vmem:[%s2301 + $0xbc] sm:$0x1]
        %v2350 = vld [vmem:[%s2301] sm:$0xe]
        %v2351 = vld [vmem:[%s2301 + $0xc] sm:$0xe]
        %v2352 = vld [vmem:[%s2301 + $0x18] sm:$0xe]
        %v2353 = vld [vmem:[%s2301 + $0x24] sm:$0xe]
        %v2354 = vld [vmem:[%s2301 + $0x30] sm:$0xe]
        %v2355 = vld [vmem:[%s2301 + $0x3c] sm:$0xe]
        %v2356 = vld [vmem:[%s2301 + $0x48] sm:$0xe]
        %v2357 = vld [vmem:[%s2301 + $0x54] sm:$0xe]
        %v2358 = vld [vmem:[%s2301 + $0x60] sm:$0xe]
        %v2359 = vld [vmem:[%s2301 + $0x6c] sm:$0xe]
        %v2360 = vld [vmem:[%s2301 + $0x78] sm:$0xe]
        %v2361 = vld [vmem:[%s2301 + $0x84] sm:$0xe]
        %v2362 = vld [vmem:[%s2301 + $0x90] sm:$0xe]
        %v2363 = vld [vmem:[%s2301 + $0x9c] sm:$0xe]
        %v2364 = vld [vmem:[%s2301 + $0xa8] sm:$0xe]
        %v2365 = vld [vmem:[%s2301 + $0xb4] sm:$0xe]
        %v2398 = vunpack.c.l.b16 %v2302
        %v2399 = vunpack.c.l.b16 %v2303
        %v2400 = vunpack.c.l.b16 %v2304
        %v2401 = vunpack.c.l.b16 %v2305
        %v2402 = vunpack.c.l.b16 %v2306
        %v2403 = vunpack.c.l.b16 %v2307
        %v2404 = vunpack.c.l.b16 %v2308
        %v2405 = vunpack.c.l.b16 %v2309
        %v2406 = vunpack.c.l.b16 %v2310
        %v2407 = vunpack.c.l.b16 %v2311
        %v2408 = vunpack.c.l.b16 %v2312
        %v2409 = vunpack.c.l.b16 %v2313
        %v2410 = vunpack.c.l.b16 %v2314
        %v2411 = vunpack.c.l.b16 %v2315
        %v2412 = vunpack.c.l.b16 %v2316
        %v2413 = vunpack.c.l.b16 %v2317
        %v2414 = vunpack.c.l.b16 %v2318
        %v2415 = vunpack.c.l.b16 %v2319
        %v2416 = vunpack.c.l.b16 %v2320
        %v2417 = vunpack.c.l.b16 %v2321
        %v2418 = vunpack.c.l.b16 %v2322
        %v2419 = vunpack.c.l.b16 %v2323
        %v2420 = vunpack.c.l.b16 %v2324
        %v2421 = vunpack.c.l.b16 %v2325
        %v2422 = vunpack.c.l.b16 %v2326
        %v2423 = vunpack.c.l.b16 %v2327
        %v2424 = vunpack.c.l.b16 %v2328
        %v2425 = vunpack.c.l.b16 %v2329
        %v2426 = vunpack.c.l.b16 %v2330
        %v2427 = vunpack.c.l.b16 %v2331
        %v2428 = vunpack.c.l.b16 %v2332
        %v2429 = vunpack.c.l.b16 %v2333
        %v2430 = vpack.c.b16 %v2399, %v2398
        %v2431 = vpack.c.b16 %v2401, %v2400
        %v2432 = vpack.c.b16 %v2403, %v2402
        %v2433 = vpack.c.b16 %v2405, %v2404
        %v2434 = vpack.c.b16 %v2407, %v2406
        %v2435 = vpack.c.b16 %v2409, %v2408
        %v2436 = vpack.c.b16 %v2411, %v2410
        %v2437 = vpack.c.b16 %v2413, %v2412
        %v2438 = vpack.c.b16 %v2415, %v2414
        %v2439 = vpack.c.b16 %v2417, %v2416
        %v2440 = vpack.c.b16 %v2419, %v2418
        %v2441 = vpack.c.b16 %v2421, %v2420
        %v2442 = vpack.c.b16 %v2423, %v2422
        %v2443 = vpack.c.b16 %v2425, %v2424
        %v2444 = vpack.c.b16 %v2427, %v2426
        %v2445 = vpack.c.b16 %v2429, %v2428
        %v2478 = vunpack.c.l.b16 %v2334
        %v2479 = vunpack.c.l.b16 %v2335
        %v2480 = vunpack.c.l.b16 %v2336
        %v2481 = vunpack.c.l.b16 %v2337
        %v2482 = vunpack.c.l.b16 %v2338
        %v2483 = vunpack.c.l.b16 %v2339
        %v2484 = vunpack.c.l.b16 %v2340
        %v2485 = vunpack.c.l.b16 %v2341
        %v2486 = vunpack.c.l.b16 %v2342
        %v2487 = vunpack.c.l.b16 %v2343
        %v2488 = vunpack.c.l.b16 %v2344
        %v2489 = vunpack.c.l.b16 %v2345
        %v2490 = vunpack.c.l.b16 %v2346
        %v2491 = vunpack.c.l.b16 %v2347
        %v2492 = vunpack.c.l.b16 %v2348
        %v2493 = vunpack.c.l.b16 %v2349
        %v2494 = vpack.c.b16 %v2478, %v2478
        %v2495 = vpack.c.b16 %v2479, %v2479
        %v2496 = vpack.c.b16 %v2480, %v2480
        %v2497 = vpack.c.b16 %v2481, %v2481
        %v2498 = vpack.c.b16 %v2482, %v2482
        %v2499 = vpack.c.b16 %v2483, %v2483
        %v2500 = vpack.c.b16 %v2484, %v2484
        %v2501 = vpack.c.b16 %v2485, %v2485
        %v2502 = vpack.c.b16 %v2486, %v2486
        %v2503 = vpack.c.b16 %v2487, %v2487
        %v2504 = vpack.c.b16 %v2488, %v2488
        %v2505 = vpack.c.b16 %v2489, %v2489
        %v2506 = vpack.c.b16 %v2490, %v2490
        %v2507 = vpack.c.b16 %v2491, %v2491
        %v2508 = vpack.c.b16 %v2492, %v2492
        %v2509 = vpack.c.b16 %v2493, %v2493
        %v2511 = vshrl.u32 %v2430, 16
        %v2513 = vshll.u32 %v2430, 16
        %v2515 = vrot.slane %v2513, 1
        %v2516 = vor.u32 %v2511, %v2515
        %v2518 = vshll.u32 %v2494, 16
        %v2520 = vrot.slane %v2518, 1
        %v2521 = vsel %vm421, %v2516, %v2520
        %v2523 = vshrl.u32 %v2431, 16
        %v2525 = vshll.u32 %v2431, 16
        %v2527 = vrot.slane %v2525, 1
        %v2528 = vor.u32 %v2523, %v2527
        %v2530 = vshll.u32 %v2495, 16
        %v2532 = vrot.slane %v2530, 1
        %v2533 = vsel %vm421, %v2528, %v2532
        %v2535 = vshrl.u32 %v2432, 16
        %v2537 = vshll.u32 %v2432, 16
        %v2539 = vrot.slane %v2537, 1
        %v2540 = vor.u32 %v2535, %v2539
        %v2542 = vshll.u32 %v2496, 16
        %v2544 = vrot.slane %v2542, 1
        %v2545 = vsel %vm421, %v2540, %v2544
        %v2547 = vshrl.u32 %v2433, 16
        %v2549 = vshll.u32 %v2433, 16
        %v2551 = vrot.slane %v2549, 1
        %v2552 = vor.u32 %v2547, %v2551
        %v2554 = vshll.u32 %v2497, 16
        %v2556 = vrot.slane %v2554, 1
        %v2557 = vsel %vm421, %v2552, %v2556
        %v2559 = vshrl.u32 %v2434, 16
        %v2561 = vshll.u32 %v2434, 16
        %v2563 = vrot.slane %v2561, 1
        %v2564 = vor.u32 %v2559, %v2563
        %v2566 = vshll.u32 %v2498, 16
        %v2568 = vrot.slane %v2566, 1
        %v2569 = vsel %vm421, %v2564, %v2568
        %v2571 = vshrl.u32 %v2435, 16
        %v2573 = vshll.u32 %v2435, 16
        %v2575 = vrot.slane %v2573, 1
        %v2576 = vor.u32 %v2571, %v2575
        %v2578 = vshll.u32 %v2499, 16
        %v2580 = vrot.slane %v2578, 1
        %v2581 = vsel %vm421, %v2576, %v2580
        %v2583 = vshrl.u32 %v2436, 16
        %v2585 = vshll.u32 %v2436, 16
        %v2587 = vrot.slane %v2585, 1
        %v2588 = vor.u32 %v2583, %v2587
        %v2590 = vshll.u32 %v2500, 16
        %v2592 = vrot.slane %v2590, 1
        %v2593 = vsel %vm421, %v2588, %v2592
        %v2595 = vshrl.u32 %v2437, 16
        %v2597 = vshll.u32 %v2437, 16
        %v2599 = vrot.slane %v2597, 1
        %v2600 = vor.u32 %v2595, %v2599
        %v2602 = vshll.u32 %v2501, 16
        %v2604 = vrot.slane %v2602, 1
        %v2605 = vsel %vm421, %v2600, %v2604
        %v2607 = vshrl.u32 %v2438, 16
        %v2609 = vshll.u32 %v2438, 16
        %v2611 = vrot.slane %v2609, 1
        %v2612 = vor.u32 %v2607, %v2611
        %v2614 = vshll.u32 %v2502, 16
        %v2616 = vrot.slane %v2614, 1
        %v2617 = vsel %vm421, %v2612, %v2616
        %v2619 = vshrl.u32 %v2439, 16
        %v2621 = vshll.u32 %v2439, 16
        %v2623 = vrot.slane %v2621, 1
        %v2624 = vor.u32 %v2619, %v2623
        %v2626 = vshll.u32 %v2503, 16
        %v2628 = vrot.slane %v2626, 1
        %v2629 = vsel %vm421, %v2624, %v2628
        %v2631 = vshrl.u32 %v2440, 16
        %v2633 = vshll.u32 %v2440, 16
        %v2635 = vrot.slane %v2633, 1
        %v2636 = vor.u32 %v2631, %v2635
        %v2638 = vshll.u32 %v2504, 16
        %v2640 = vrot.slane %v2638, 1
        %v2641 = vsel %vm421, %v2636, %v2640
        %v2643 = vshrl.u32 %v2441, 16
        %v2645 = vshll.u32 %v2441, 16
        %v2647 = vrot.slane %v2645, 1
        %v2648 = vor.u32 %v2643, %v2647
        %v2650 = vshll.u32 %v2505, 16
        %v2652 = vrot.slane %v2650, 1
        %v2653 = vsel %vm421, %v2648, %v2652
        %v2655 = vshrl.u32 %v2442, 16
        %v2657 = vshll.u32 %v2442, 16
        %v2659 = vrot.slane %v2657, 1
        %v2660 = vor.u32 %v2655, %v2659
        %v2662 = vshll.u32 %v2506, 16
        %v2664 = vrot.slane %v2662, 1
        %v2665 = vsel %vm421, %v2660, %v2664
        %v2667 = vshrl.u32 %v2443, 16
        %v2669 = vshll.u32 %v2443, 16
        %v2671 = vrot.slane %v2669, 1
        %v2672 = vor.u32 %v2667, %v2671
        %v2674 = vshll.u32 %v2507, 16
        %v2676 = vrot.slane %v2674, 1
        %v2677 = vsel %vm421, %v2672, %v2676
        %v2679 = vshrl.u32 %v2444, 16
        %v2681 = vshll.u32 %v2444, 16
        %v2683 = vrot.slane %v2681, 1
        %v2684 = vor.u32 %v2679, %v2683
        %v2686 = vshll.u32 %v2508, 16
        %v2688 = vrot.slane %v2686, 1
        %v2689 = vsel %vm421, %v2684, %v2688
        %v2691 = vshrl.u32 %v2445, 16
        %v2693 = vshll.u32 %v2445, 16
        %v2695 = vrot.slane %v2693, 1
        %v2696 = vor.u32 %v2691, %v2695
        %v2698 = vshll.u32 %v2509, 16
        %v2700 = vrot.slane %v2698, 1
        %v2701 = vsel %vm421, %v2696, %v2700
        %v2734 = vunpack.c.l.b16 %v2350
        %v2735 = vunpack.c.l.b16 %v2351
        %v2736 = vunpack.c.l.b16 %v2352
        %v2737 = vunpack.c.l.b16 %v2353
        %v2738 = vunpack.c.l.b16 %v2354
        %v2739 = vunpack.c.l.b16 %v2355
        %v2740 = vunpack.c.l.b16 %v2356
        %v2741 = vunpack.c.l.b16 %v2357
        %v2742 = vunpack.c.l.b16 %v2358
        %v2743 = vunpack.c.l.b16 %v2359
        %v2744 = vunpack.c.l.b16 %v2360
        %v2745 = vunpack.c.l.b16 %v2361
        %v2746 = vunpack.c.l.b16 %v2362
        %v2747 = vunpack.c.l.b16 %v2363
        %v2748 = vunpack.c.l.b16 %v2364
        %v2749 = vunpack.c.l.b16 %v2365
        %v2750 = vpack.c.b16 %v2399, %v2734
        %v2751 = vpack.c.b16 %v2401, %v2735
        %v2752 = vpack.c.b16 %v2403, %v2736
        %v2753 = vpack.c.b16 %v2405, %v2737
        %v2754 = vpack.c.b16 %v2407, %v2738
        %v2755 = vpack.c.b16 %v2409, %v2739
        %v2756 = vpack.c.b16 %v2411, %v2740
        %v2757 = vpack.c.b16 %v2413, %v2741
        %v2758 = vpack.c.b16 %v2415, %v2742
        %v2759 = vpack.c.b16 %v2417, %v2743
        %v2760 = vpack.c.b16 %v2419, %v2744
        %v2761 = vpack.c.b16 %v2421, %v2745
        %v2762 = vpack.c.b16 %v2423, %v2746
        %v2763 = vpack.c.b16 %v2425, %v2747
        %v2764 = vpack.c.b16 %v2427, %v2748
        %v2765 = vpack.c.b16 %v2429, %v2749
        %v2766 = vrot.slane %v2750, 1
        %v2767 = vrot.slane %v2494, 1
        %v2768 = vsel %vm678, %v2766, %v2767
        %v2769 = vrot.slane %v2751, 1
        %v2770 = vrot.slane %v2495, 1
        %v2771 = vsel %vm678, %v2769, %v2770
        %v2772 = vrot.slane %v2752, 1
        %v2773 = vrot.slane %v2496, 1
        %v2774 = vsel %vm678, %v2772, %v2773
        %v2775 = vrot.slane %v2753, 1
        %v2776 = vrot.slane %v2497, 1
        %v2777 = vsel %vm678, %v2775, %v2776
        %v2778 = vrot.slane %v2754, 1
        %v2779 = vrot.slane %v2498, 1
        %v2780 = vsel %vm678, %v2778, %v2779
        %v2781 = vrot.slane %v2755, 1
        %v2782 = vrot.slane %v2499, 1
        %v2783 = vsel %vm678, %v2781, %v2782
        %v2784 = vrot.slane %v2756, 1
        %v2785 = vrot.slane %v2500, 1
        %v2786 = vsel %vm678, %v2784, %v2785
        %v2787 = vrot.slane %v2757, 1
        %v2788 = vrot.slane %v2501, 1
        %v2789 = vsel %vm678, %v2787, %v2788
        %v2790 = vrot.slane %v2758, 1
        %v2791 = vrot.slane %v2502, 1
        %v2792 = vsel %vm678, %v2790, %v2791
        %v2793 = vrot.slane %v2759, 1
        %v2794 = vrot.slane %v2503, 1
        %v2795 = vsel %vm678, %v2793, %v2794
        %v2796 = vrot.slane %v2760, 1
        %v2797 = vrot.slane %v2504, 1
        %v2798 = vsel %vm678, %v2796, %v2797
        %v2799 = vrot.slane %v2761, 1
        %v2800 = vrot.slane %v2505, 1
        %v2801 = vsel %vm678, %v2799, %v2800
        %v2802 = vrot.slane %v2762, 1
        %v2803 = vrot.slane %v2506, 1
        %v2804 = vsel %vm678, %v2802, %v2803
        %v2805 = vrot.slane %v2763, 1
        %v2806 = vrot.slane %v2507, 1
        %v2807 = vsel %vm678, %v2805, %v2806
        %v2808 = vrot.slane %v2764, 1
        %v2809 = vrot.slane %v2508, 1
        %v2810 = vsel %vm678, %v2808, %v2809
        %v2811 = vrot.slane %v2765, 1
        %v2812 = vrot.slane %v2509, 1
        %v2813 = vsel %vm678, %v2811, %v2812
        %s2830 = scalar_lea.vmem %s1, 384
        %v2831 = vld [vmem:[%s2830] sm:$0xf]
        %v2832 = vld [vmem:[%s2830 + $0x4] sm:$0xf]
        %v2833 = vld [vmem:[%s2830 + $0x8] sm:$0xf]
        %v2834 = vld [vmem:[%s2830 + $0xc] sm:$0xf]
        %v2835 = vld [vmem:[%s2830 + $0x10] sm:$0xf]
        %v2836 = vld [vmem:[%s2830 + $0x14] sm:$0xf]
        %v2837 = vld [vmem:[%s2830 + $0x18] sm:$0xf]
        %v2838 = vld [vmem:[%s2830 + $0x1c] sm:$0xf]
        %v2839 = vld [vmem:[%s2830 + $0x20] sm:$0xf]
        %v2840 = vld [vmem:[%s2830 + $0x24] sm:$0xf]
        %v2841 = vld [vmem:[%s2830 + $0x28] sm:$0xf]
        %v2842 = vld [vmem:[%s2830 + $0x2c] sm:$0xf]
        %v2843 = vld [vmem:[%s2830 + $0x30] sm:$0xf]
        %v2844 = vld [vmem:[%s2830 + $0x34] sm:$0xf]
        %v2845 = vld [vmem:[%s2830 + $0x38] sm:$0xf]
        %v2846 = vld [vmem:[%s2830 + $0x3c] sm:$0xf]
        %v2847 = vld [vmem:[%s2830 + $0x40] sm:$0xf]
        %v2848 = vld [vmem:[%s2830 + $0x44] sm:$0xf]
        %v2849 = vld [vmem:[%s2830 + $0x48] sm:$0xf]
        %v2850 = vld [vmem:[%s2830 + $0x4c] sm:$0xf]
        %v2851 = vld [vmem:[%s2830 + $0x50] sm:$0xf]
        %v2852 = vld [vmem:[%s2830 + $0x54] sm:$0xf]
        %v2853 = vld [vmem:[%s2830 + $0x58] sm:$0xf]
        %v2854 = vld [vmem:[%s2830 + $0x5c] sm:$0xf]
        %v2855 = vld [vmem:[%s2830 + $0x60] sm:$0xf]
        %v2856 = vld [vmem:[%s2830 + $0x64] sm:$0xf]
        %v2857 = vld [vmem:[%s2830 + $0x68] sm:$0xf]
        %v2858 = vld [vmem:[%s2830 + $0x6c] sm:$0xf]
        %v2859 = vld [vmem:[%s2830 + $0x70] sm:$0xf]
        %v2860 = vld [vmem:[%s2830 + $0x74] sm:$0xf]
        %v2861 = vld [vmem:[%s2830 + $0x78] sm:$0xf]
        %v2862 = vld [vmem:[%s2830 + $0x7c] sm:$0xf]
        %v2863 = vld [vmem:[%s2830 + $0x80] sm:$0xf]
        %v2864 = vld [vmem:[%s2830 + $0x84] sm:$0xf]
        %v2865 = vld [vmem:[%s2830 + $0x88] sm:$0xf]
        %v2866 = vld [vmem:[%s2830 + $0x8c] sm:$0xf]
        %v2867 = vld [vmem:[%s2830 + $0x90] sm:$0xf]
        %v2868 = vld [vmem:[%s2830 + $0x94] sm:$0xf]
        %v2869 = vld [vmem:[%s2830 + $0x98] sm:$0xf]
        %v2870 = vld [vmem:[%s2830 + $0x9c] sm:$0xf]
        %v2871 = vld [vmem:[%s2830 + $0xa0] sm:$0xf]
        %v2872 = vld [vmem:[%s2830 + $0xa4] sm:$0xf]
        %v2873 = vld [vmem:[%s2830 + $0xa8] sm:$0xf]
        %v2874 = vld [vmem:[%s2830 + $0xac] sm:$0xf]
        %v2875 = vld [vmem:[%s2830 + $0xb0] sm:$0xf]
        %v2876 = vld [vmem:[%s2830 + $0xb4] sm:$0xf]
        %v2877 = vld [vmem:[%s2830 + $0xb8] sm:$0xf]
        %v2878 = vld [vmem:[%s2830 + $0xbc] sm:$0xf]
        %v2927 = vunpack.c.l.b16 %v2831
        %v2928 = vunpack.c.l.b16 %v2832
        %v2929 = vunpack.c.l.b16 %v2833
        %v2930 = vunpack.c.l.b16 %v2834
        %v2931 = vunpack.c.l.b16 %v2835
        %v2932 = vunpack.c.l.b16 %v2836
        %v2933 = vunpack.c.l.b16 %v2837
        %v2934 = vunpack.c.l.b16 %v2838
        %v2935 = vunpack.c.l.b16 %v2839
        %v2936 = vunpack.c.l.b16 %v2840
        %v2937 = vunpack.c.l.b16 %v2841
        %v2938 = vunpack.c.l.b16 %v2842
        %v2939 = vunpack.c.l.b16 %v2843
        %v2940 = vunpack.c.l.b16 %v2844
        %v2941 = vunpack.c.l.b16 %v2845
        %v2942 = vunpack.c.l.b16 %v2846
        %v2943 = vunpack.c.l.b16 %v2847
        %v2944 = vunpack.c.l.b16 %v2848
        %v2945 = vunpack.c.l.b16 %v2849
        %v2946 = vunpack.c.l.b16 %v2850
        %v2947 = vunpack.c.l.b16 %v2851
        %v2948 = vunpack.c.l.b16 %v2852
        %v2949 = vunpack.c.l.b16 %v2853
        %v2950 = vunpack.c.l.b16 %v2854
        %v2951 = vunpack.c.l.b16 %v2855
        %v2952 = vunpack.c.l.b16 %v2856
        %v2953 = vunpack.c.l.b16 %v2857
        %v2954 = vunpack.c.l.b16 %v2858
        %v2955 = vunpack.c.l.b16 %v2859
        %v2956 = vunpack.c.l.b16 %v2860
        %v2957 = vunpack.c.l.b16 %v2861
        %v2958 = vunpack.c.l.b16 %v2862
        %v2959 = vunpack.c.l.b16 %v2863
        %v2960 = vunpack.c.l.b16 %v2864
        %v2961 = vunpack.c.l.b16 %v2865
        %v2962 = vunpack.c.l.b16 %v2866
        %v2963 = vunpack.c.l.b16 %v2867
        %v2964 = vunpack.c.l.b16 %v2868
        %v2965 = vunpack.c.l.b16 %v2869
        %v2966 = vunpack.c.l.b16 %v2870
        %v2967 = vunpack.c.l.b16 %v2871
        %v2968 = vunpack.c.l.b16 %v2872
        %v2969 = vunpack.c.l.b16 %v2873
        %v2970 = vunpack.c.l.b16 %v2874
        %v2971 = vunpack.c.l.b16 %v2875
        %v2972 = vunpack.c.l.b16 %v2876
        %v2973 = vunpack.c.l.b16 %v2877
        %v2974 = vunpack.c.l.b16 %v2878
        %v2975 = vpack.c.b16 %v2928, %v2927
        %v2976 = vpack.c.b16 %v2930, %v2929
        %v2977 = vpack.c.b16 %v2932, %v2931
        %v2978 = vpack.c.b16 %v2934, %v2933
        %v2979 = vpack.c.b16 %v2936, %v2935
        %v2980 = vpack.c.b16 %v2938, %v2937
        %v2981 = vpack.c.b16 %v2940, %v2939
        %v2982 = vpack.c.b16 %v2942, %v2941
        %v2983 = vpack.c.b16 %v2944, %v2943
        %v2984 = vpack.c.b16 %v2946, %v2945
        %v2985 = vpack.c.b16 %v2948, %v2947
        %v2986 = vpack.c.b16 %v2950, %v2949
        %v2987 = vpack.c.b16 %v2952, %v2951
        %v2988 = vpack.c.b16 %v2954, %v2953
        %v2989 = vpack.c.b16 %v2956, %v2955
        %v2990 = vpack.c.b16 %v2958, %v2957
        %v2991 = vpack.c.b16 %v2960, %v2959
        %v2992 = vpack.c.b16 %v2962, %v2961
        %v2993 = vpack.c.b16 %v2964, %v2963
        %v2994 = vpack.c.b16 %v2966, %v2965
        %v2995 = vpack.c.b16 %v2968, %v2967
        %v2996 = vpack.c.b16 %v2970, %v2969
        %v2997 = vpack.c.b16 %v2972, %v2971
        %v2998 = vpack.c.b16 %v2974, %v2973
        %3023 = vmatprep.subr.bf16.mxu0 0
        %3024 = vmatpush1.bf16.msra.mxu0 %v2975
        %3025 = vmatprep.subr.bf16.mxu0 0
        %3026 = vmatpush1.bf16.msra.mxu0 %v2976
        %3027 = vmatprep.subr.bf16.mxu0 0
        %3028 = vmatpush1.bf16.msra.mxu0 %v2977
        %3029 = vmatprep.subr.bf16.mxu0 0
        %3030 = vmatpush1.bf16.msra.mxu0 %v2978
        %3031 = vmatprep.subr.bf16.mxu0 0
        %3032 = vmatpush1.bf16.msra.mxu0 %v2979
        %3033 = vmatprep.subr.bf16.mxu0 0
        %3034 = vmatpush1.bf16.msra.mxu0 %v2980
        %3035 = vmatprep.subr.bf16.mxu0 0
        %3036 = vmatpush1.bf16.msra.mxu0 %v2981
        %3037 = vmatprep.subr.bf16.mxu0 0
        %3038 = vmatpush1.bf16.msra.mxu0 %v2982
        %3039 = vmatprep.subr.bf16.mxu0 0
        %3040 = vmatpush1.bf16.msra.mxu0 %v2983
        %3041 = vmatprep.subr.bf16.mxu0 0
        %3042 = vmatpush1.bf16.msra.mxu0 %v2984
        %3043 = vmatprep.subr.bf16.mxu0 0
        %3044 = vmatpush1.bf16.msra.mxu0 %v2985
        %3045 = vmatprep.subr.bf16.mxu0 0
        %3046 = vmatpush1.bf16.msra.mxu0 %v2986
        %3047 = vmatprep.subr.bf16.mxu0 0
        %3048 = vmatpush1.bf16.msra.mxu0 %v2987
        %3049 = vmatprep.subr.bf16.mxu0 0
        %3050 = vmatpush1.bf16.msra.mxu0 %v2988
        %3051 = vmatprep.subr.bf16.mxu0 0
        %3052 = vmatpush1.bf16.msra.mxu0 %v2989
        %3053 = vmatprep.subr.bf16.mxu0 0
        %3054 = vmatpush1.bf16.msra.mxu0 %v2990
        %3055 = vmatprep.mubr.bf16.mxu0 %v2521
        %3056 = vmatmul.mubr.bf16.gmra.mrb[0].mxu0 %v2430
        %v3057 = vpop.f32.mrb[0].mxu0
        %v3058 = vadd.f32 0.0, %v3057
        %v3059 = vpop.f32.mrb[0].mxu0
        %v3060 = vpop.f32.mrb[0].mxu0
        %v3061 = vadd.f32 0.0, %v3060
        %v3062 = vpop.f32.mrb[0].mxu0
        %3063 = vmatprep.mubr.bf16.mxu0 %v2533
        %3064 = vmatmul.mubr.bf16.gmra.mrb[0].mxu0 %v2431
        %v3065 = vpop.f32.mrb[0].mxu0
        %v3066 = vadd.f32 0.0, %v3065
        %v3067 = vpop.f32.mrb[0].mxu0
        %v3068 = vpop.f32.mrb[0].mxu0
        %v3069 = vadd.f32 0.0, %v3068
        %v3070 = vpop.f32.mrb[0].mxu0
        %3071 = vmatprep.mubr.bf16.mxu0 %v2545
        %3072 = vmatmul.mubr.bf16.gmra.mrb[0].mxu0 %v2432
        %v3073 = vpop.f32.mrb[0].mxu0
        %v3074 = vadd.f32 0.0, %v3073
        %v3075 = vpop.f32.mrb[0].mxu0
        %v3076 = vpop.f32.mrb[0].mxu0
        %v3077 = vadd.f32 0.0, %v3076
        %v3078 = vpop.f32.mrb[0].mxu0
        %3079 = vmatprep.mubr.bf16.mxu0 %v2557
        %3080 = vmatmul.mubr.bf16.gmra.mrb[0].mxu0 %v2433
        %v3081 = vpop.f32.mrb[0].mxu0
        %v3082 = vadd.f32 0.0, %v3081
        %v3083 = vpop.f32.mrb[0].mxu0
        %v3084 = vpop.f32.mrb[0].mxu0
        %v3085 = vadd.f32 0.0, %v3084
        %v3086 = vpop.f32.mrb[0].mxu0
        %3087 = vmatprep.mubr.bf16.mxu0 %v2569
        %3088 = vmatmul.mubr.bf16.gmra.mrb[0].mxu0 %v2434
        %v3089 = vpop.f32.mrb[0].mxu0
        %v3090 = vadd.f32 0.0, %v3089
        %v3091 = vpop.f32.mrb[0].mxu0
        %v3092 = vpop.f32.mrb[0].mxu0
        %v3093 = vadd.f32 0.0, %v3092
        %v3094 = vpop.f32.mrb[0].mxu0
        %3095 = vmatprep.mubr.bf16.mxu0 %v2581
        %3096 = vmatmul.mubr.bf16.gmra.mrb[0].mxu0 %v2435
        %v3097 = vpop.f32.mrb[0].mxu0
        %v3098 = vadd.f32 0.0, %v3097
        %v3099 = vpop.f32.mrb[0].mxu0
        %v3100 = vpop.f32.mrb[0].mxu0
        %v3101 = vadd.f32 0.0, %v3100
        %v3102 = vpop.f32.mrb[0].mxu0
        %3103 = vmatprep.mubr.bf16.mxu0 %v2593
        %3104 = vmatmul.mubr.bf16.gmra.mrb[0].mxu0 %v2436
        %v3105 = vpop.f32.mrb[0].mxu0
        %v3106 = vadd.f32 0.0, %v3105
        %v3107 = vpop.f32.mrb[0].mxu0
        %v3108 = vpop.f32.mrb[0].mxu0
        %v3109 = vadd.f32 0.0, %v3108
        %v3110 = vpop.f32.mrb[0].mxu0
        %3111 = vmatprep.mubr.bf16.mxu0 %v2605
        %3112 = vmatmul.mubr.bf16.gmra.mrb[0].mxu0 %v2437
        %v3113 = vpop.f32.mrb[0].mxu0
        %v3114 = vadd.f32 0.0, %v3113
        %v3115 = vpop.f32.mrb[0].mxu0
        %v3116 = vpop.f32.mrb[0].mxu0
        %v3117 = vadd.f32 0.0, %v3116
        %v3118 = vpop.f32.mrb[0].mxu0
        %3119 = vmatprep.mubr.bf16.mxu0 %v2617
        %3120 = vmatmul.mubr.bf16.gmra.mrb[0].mxu0 %v2438
        %v3121 = vpop.f32.mrb[0].mxu0
        %v3122 = vadd.f32 0.0, %v3121
        %v3123 = vpop.f32.mrb[0].mxu0
        %v3124 = vpop.f32.mrb[0].mxu0
        %v3125 = vadd.f32 0.0, %v3124
        %v3126 = vpop.f32.mrb[0].mxu0
        %3127 = vmatprep.mubr.bf16.mxu0 %v2629
        %3128 = vmatmul.mubr.bf16.gmra.mrb[0].mxu0 %v2439
        %v3129 = vpop.f32.mrb[0].mxu0
        %v3130 = vadd.f32 0.0, %v3129
        %v3131 = vpop.f32.mrb[0].mxu0
        %v3132 = vpop.f32.mrb[0].mxu0
        %v3133 = vadd.f32 0.0, %v3132
        %v3134 = vpop.f32.mrb[0].mxu0
        %3135 = vmatprep.mubr.bf16.mxu0 %v2641
        %3136 = vmatmul.mubr.bf16.gmra.mrb[0].mxu0 %v2440
        %v3137 = vpop.f32.mrb[0].mxu0
        %v3138 = vadd.f32 0.0, %v3137
        %v3139 = vpop.f32.mrb[0].mxu0
        %v3140 = vpop.f32.mrb[0].mxu0
        %v3141 = vadd.f32 0.0, %v3140
        %v3142 = vpop.f32.mrb[0].mxu0
        %3143 = vmatprep.mubr.bf16.mxu0 %v2653
        %3144 = vmatmul.mubr.bf16.gmra.mrb[0].mxu0 %v2441
        %v3145 = vpop.f32.mrb[0].mxu0
        %v3146 = vadd.f32 0.0, %v3145
        %v3147 = vpop.f32.mrb[0].mxu0
        %v3148 = vpop.f32.mrb[0].mxu0
        %v3149 = vadd.f32 0.0, %v3148
        %v3150 = vpop.f32.mrb[0].mxu0
        %3151 = vmatprep.mubr.bf16.mxu0 %v2665
        %3152 = vmatmul.mubr.bf16.gmra.mrb[0].mxu0 %v2442
        %v3153 = vpop.f32.mrb[0].mxu0
        %v3154 = vadd.f32 0.0, %v3153
        %v3155 = vpop.f32.mrb[0].mxu0
        %v3156 = vpop.f32.mrb[0].mxu0
        %v3157 = vadd.f32 0.0, %v3156
        %v3158 = vpop.f32.mrb[0].mxu0
        %3159 = vmatprep.mubr.bf16.mxu0 %v2677
        %3160 = vmatmul.mubr.bf16.gmra.mrb[0].mxu0 %v2443
        %v3161 = vpop.f32.mrb[0].mxu0
        %v3162 = vadd.f32 0.0, %v3161
        %v3163 = vpop.f32.mrb[0].mxu0
        %v3164 = vpop.f32.mrb[0].mxu0
        %v3165 = vadd.f32 0.0, %v3164
        %v3166 = vpop.f32.mrb[0].mxu0
        %3167 = vmatprep.mubr.bf16.mxu0 %v2689
        %3168 = vmatmul.mubr.bf16.gmra.mrb[0].mxu0 %v2444
        %v3169 = vpop.f32.mrb[0].mxu0
        %v3170 = vadd.f32 0.0, %v3169
        %v3171 = vpop.f32.mrb[0].mxu0
        %v3172 = vpop.f32.mrb[0].mxu0
        %v3173 = vadd.f32 0.0, %v3172
        %v3174 = vpop.f32.mrb[0].mxu0
        %3175 = vmatprep.mubr.bf16.mxu0 %v2701
        %3176 = vmatmul.mubr.bf16.gmra.mrb[0].mxu0 %v2445
        %v3177 = vpop.f32.mrb[0].mxu0
        %v3178 = vadd.f32 0.0, %v3177
        %v3179 = vpop.f32.mrb[0].mxu0
        %v3180 = vpop.f32.mrb[0].mxu0
        %v3181 = vadd.f32 0.0, %v3180
        %v3182 = vpop.f32.mrb[0].mxu0
        %3183 = vdwg.mxu0
        %3184 = vmatprep.subr.bf16.mxu0 0
        %3185 = vmatpush1.bf16.msra.mxu0 %v2991
        %3186 = vmatprep.subr.bf16.mxu0 0
        %3187 = vmatpush1.bf16.msra.mxu0 %v2992
        %3188 = vmatprep.subr.bf16.mxu0 0
        %3189 = vmatpush1.bf16.msra.mxu0 %v2993
        %3190 = vmatprep.subr.bf16.mxu0 0
        %3191 = vmatpush1.bf16.msra.mxu0 %v2994
        %3192 = vmatprep.subr.bf16.mxu0 0
        %3193 = vmatpush1.bf16.msra.mxu0 %v2995
        %3194 = vmatprep.subr.bf16.mxu0 0
        %3195 = vmatpush1.bf16.msra.mxu0 %v2996
        %3196 = vmatprep.subr.bf16.mxu0 0
        %3197 = vmatpush1.bf16.msra.mxu0 %v2997
        %3198 = vmatprep.subr.bf16.mxu0 0
        %3199 = vmatpush1.bf16.msra.mxu0 %v2998
        %3200 = vmatprep.subr.bf16.mxu0 0
        %3201 = vmatpush1.bf16.msra.mxu0 0
        %3202 = vmatprep.subr.bf16.mxu0 0
        %3203 = vmatpush1.bf16.msra.mxu0 0
        %3204 = vmatprep.subr.bf16.mxu0 0
        %3205 = vmatpush1.bf16.msra.mxu0 0
        %3206 = vmatprep.subr.bf16.mxu0 0
        %3207 = vmatpush1.bf16.msra.mxu0 0
        %3208 = vmatprep.subr.bf16.mxu0 0
        %3209 = vmatpush1.bf16.msra.mxu0 0
        %3210 = vmatprep.subr.bf16.mxu0 0
        %3211 = vmatpush1.bf16.msra.mxu0 0
        %3212 = vmatprep.subr.bf16.mxu0 0
        %3213 = vmatpush1.bf16.msra.mxu0 0
        %3214 = vmatprep.subr.bf16.mxu0 0
        %3215 = vmatpush1.bf16.msra.mxu0 0
        %3216 = vmatprep.mubr.bf16.mxu0 0
        %3217 = vmatmul.mubr.bf16.gmra.mrb[0].mxu0 %v2768
        %v3218 = vpop.f32.mrb[0].mxu0
        %v3219 = vadd.f32 %v3058, %v3218
        %v3220 = vpop.f32.mrb[0].mxu0
        %v3221 = vpop.f32.mrb[0].mxu0
        %v3222 = vadd.f32 %v3061, %v3221
        %v3223 = vpop.f32.mrb[0].mxu0
        %3224 = vmatprep.mubr.bf16.mxu0 0
        %3225 = vmatmul.mubr.bf16.gmra.mrb[0].mxu0 %v2771
        %v3226 = vpop.f32.mrb[0].mxu0
        %v3227 = vadd.f32 %v3066, %v3226
        %v3228 = vpop.f32.mrb[0].mxu0
        %v3229 = vpop.f32.mrb[0].mxu0
        %v3230 = vadd.f32 %v3069, %v3229
        %v3231 = vpop.f32.mrb[0].mxu0
        %3232 = vmatprep.mubr.bf16.mxu0 0
        %3233 = vmatmul.mubr.bf16.gmra.mrb[0].mxu0 %v2774
        %v3234 = vpop.f32.mrb[0].mxu0
        %v3235 = vadd.f32 %v3074, %v3234
        %v3236 = vpop.f32.mrb[0].mxu0
        %v3237 = vpop.f32.mrb[0].mxu0
        %v3238 = vadd.f32 %v3077, %v3237
        %v3239 = vpop.f32.mrb[0].mxu0
        %3240 = vmatprep.mubr.bf16.mxu0 0
        %3241 = vmatmul.mubr.bf16.gmra.mrb[0].mxu0 %v2777
        %v3242 = vpop.f32.mrb[0].mxu0
        %v3243 = vadd.f32 %v3082, %v3242
        %v3244 = vpop.f32.mrb[0].mxu0
        %v3245 = vpop.f32.mrb[0].mxu0
        %v3246 = vadd.f32 %v3085, %v3245
        %v3247 = vpop.f32.mrb[0].mxu0
        %3248 = vmatprep.mubr.bf16.mxu0 0
        %3249 = vmatmul.mubr.bf16.gmra.mrb[0].mxu0 %v2780
        %v3250 = vpop.f32.mrb[0].mxu0
        %v3251 = vadd.f32 %v3090, %v3250
        %v3252 = vpop.f32.mrb[0].mxu0
        %v3253 = vpop.f32.mrb[0].mxu0
        %v3254 = vadd.f32 %v3093, %v3253
        %v3255 = vpop.f32.mrb[0].mxu0
        %3256 = vmatprep.mubr.bf16.mxu0 0
        %3257 = vmatmul.mubr.bf16.gmra.mrb[0].mxu0 %v2783
        %v3258 = vpop.f32.mrb[0].mxu0
        %v3259 = vadd.f32 %v3098, %v3258
        %v3260 = vpop.f32.mrb[0].mxu0
        %v3261 = vpop.f32.mrb[0].mxu0
        %v3262 = vadd.f32 %v3101, %v3261
        %v3263 = vpop.f32.mrb[0].mxu0
        %3264 = vmatprep.mubr.bf16.mxu0 0
        %3265 = vmatmul.mubr.bf16.gmra.mrb[0].mxu0 %v2786
        %v3266 = vpop.f32.mrb[0].mxu0
        %v3267 = vadd.f32 %v3106, %v3266
        %v3268 = vpop.f32.mrb[0].mxu0
        %v3269 = vpop.f32.mrb[0].mxu0
        %v3270 = vadd.f32 %v3109, %v3269
        %v3271 = vpop.f32.mrb[0].mxu0
        %3272 = vmatprep.mubr.bf16.mxu0 0
        %3273 = vmatmul.mubr.bf16.gmra.mrb[0].mxu0 %v2789
        %v3274 = vpop.f32.mrb[0].mxu0
        %v3275 = vadd.f32 %v3114, %v3274
        %v3276 = vpop.f32.mrb[0].mxu0
        %v3277 = vpop.f32.mrb[0].mxu0
        %v3278 = vadd.f32 %v3117, %v3277
        %v3279 = vpop.f32.mrb[0].mxu0
        %3280 = vmatprep.mubr.bf16.mxu0 0
        %3281 = vmatmul.mubr.bf16.gmra.mrb[0].mxu0 %v2792
        %v3282 = vpop.f32.mrb[0].mxu0
        %v3283 = vadd.f32 %v3122, %v3282
        %v3284 = vpop.f32.mrb[0].mxu0
        %v3285 = vpop.f32.mrb[0].mxu0
        %v3286 = vadd.f32 %v3125, %v3285
        %v3287 = vpop.f32.mrb[0].mxu0
        %3288 = vmatprep.mubr.bf16.mxu0 0
        %3289 = vmatmul.mubr.bf16.gmra.mrb[0].mxu0 %v2795
        %v3290 = vpop.f32.mrb[0].mxu0
        %v3291 = vadd.f32 %v3130, %v3290
        %v3292 = vpop.f32.mrb[0].mxu0
        %v3293 = vpop.f32.mrb[0].mxu0
        %v3294 = vadd.f32 %v3133, %v3293
        %v3295 = vpop.f32.mrb[0].mxu0
        %3296 = vmatprep.mubr.bf16.mxu0 0
        %3297 = vmatmul.mubr.bf16.gmra.mrb[0].mxu0 %v2798
        %v3298 = vpop.f32.mrb[0].mxu0
        %v3299 = vadd.f32 %v3138, %v3298
        %v3300 = vpop.f32.mrb[0].mxu0
        %v3301 = vpop.f32.mrb[0].mxu0
        %v3302 = vadd.f32 %v3141, %v3301
        %v3303 = vpop.f32.mrb[0].mxu0
        %3304 = vmatprep.mubr.bf16.mxu0 0
        %3305 = vmatmul.mubr.bf16.gmra.mrb[0].mxu0 %v2801
        %v3306 = vpop.f32.mrb[0].mxu0
        %v3307 = vadd.f32 %v3146, %v3306
        %v3308 = vpop.f32.mrb[0].mxu0
        %v3309 = vpop.f32.mrb[0].mxu0
        %v3310 = vadd.f32 %v3149, %v3309
        %v3311 = vpop.f32.mrb[0].mxu0
        %3312 = vmatprep.mubr.bf16.mxu0 0
        %3313 = vmatmul.mubr.bf16.gmra.mrb[0].mxu0 %v2804
        %v3314 = vpop.f32.mrb[0].mxu0
        %v3315 = vadd.f32 %v3154, %v3314
        %v3316 = vpop.f32.mrb[0].mxu0
        %v3317 = vpop.f32.mrb[0].mxu0
        %v3318 = vadd.f32 %v3157, %v3317
        %v3319 = vpop.f32.mrb[0].mxu0
        %3320 = vmatprep.mubr.bf16.mxu0 0
        %3321 = vmatmul.mubr.bf16.gmra.mrb[0].mxu0 %v2807
        %v3322 = vpop.f32.mrb[0].mxu0
        %v3323 = vadd.f32 %v3162, %v3322
        %v3324 = vpop.f32.mrb[0].mxu0
        %v3325 = vpop.f32.mrb[0].mxu0
        %v3326 = vadd.f32 %v3165, %v3325
        %v3327 = vpop.f32.mrb[0].mxu0
        %3328 = vmatprep.mubr.bf16.mxu0 0
        %3329 = vmatmul.mubr.bf16.gmra.mrb[0].mxu0 %v2810
        %v3330 = vpop.f32.mrb[0].mxu0
        %v3331 = vadd.f32 %v3170, %v3330
        %v3332 = vpop.f32.mrb[0].mxu0
        %v3333 = vpop.f32.mrb[0].mxu0
        %v3334 = vadd.f32 %v3173, %v3333
        %v3335 = vpop.f32.mrb[0].mxu0
        %3336 = vmatprep.mubr.bf16.mxu0 0
        %3337 = vmatmul.mubr.bf16.gmra.mrb[0].mxu0 %v2813
        %v3338 = vpop.f32.mrb[0].mxu0
        %v3339 = vadd.f32 %v3178, %v3338
        %v3340 = vpop.f32.mrb[0].mxu0
        %v3341 = vpop.f32.mrb[0].mxu0
        %v3342 = vadd.f32 %v3181, %v3341
        %v3343 = vpop.f32.mrb[0].mxu0
        %3344 = vdwg.mxu0
        %v3345 = vadd.f32 %v2175, %v3219
        %v3346 = vadd.f32 %v2178, %v3222
        %v3347 = vadd.f32 %v2183, %v3227
        %v3348 = vadd.f32 %v2186, %v3230
        %v3349 = vadd.f32 %v2191, %v3235
        %v3350 = vadd.f32 %v2194, %v3238
        %v3351 = vadd.f32 %v2199, %v3243
        %v3352 = vadd.f32 %v2202, %v3246
        %v3353 = vadd.f32 %v2207, %v3251
        %v3354 = vadd.f32 %v2210, %v3254
        %v3355 = vadd.f32 %v2215, %v3259
        %v3356 = vadd.f32 %v2218, %v3262
        %v3357 = vadd.f32 %v2223, %v3267
        %v3358 = vadd.f32 %v2226, %v3270
        %v3359 = vadd.f32 %v2231, %v3275
        %v3360 = vadd.f32 %v2234, %v3278
        %v3361 = vadd.f32 %v2239, %v3283
        %v3362 = vadd.f32 %v2242, %v3286
        %v3363 = vadd.f32 %v2247, %v3291
        %v3364 = vadd.f32 %v2250, %v3294
        %v3365 = vadd.f32 %v2255, %v3299
        %v3366 = vadd.f32 %v2258, %v3302
        %v3367 = vadd.f32 %v2263, %v3307
        %v3368 = vadd.f32 %v2266, %v3310
        %v3369 = vadd.f32 %v2271, %v3315
        %v3370 = vadd.f32 %v2274, %v3318
        %v3371 = vadd.f32 %v2279, %v3323
        %v3372 = vadd.f32 %v2282, %v3326
        %v3373 = vadd.f32 %v2287, %v3331
        %v3374 = vadd.f32 %v2290, %v3334
        %v3375 = vadd.f32 %v2295, %v3339
        %v3376 = vadd.f32 %v2298, %v3342
        %v3377 = vpack.c.bf16 %v3346, %v3345
        %v3378 = vpack.c.bf16 %v3348, %v3347
        %v3379 = vpack.c.bf16 %v3350, %v3349
        %v3380 = vpack.c.bf16 %v3352, %v3351
        %v3381 = vpack.c.bf16 %v3354, %v3353
        %v3382 = vpack.c.bf16 %v3356, %v3355
        %v3383 = vpack.c.bf16 %v3358, %v3357
        %v3384 = vpack.c.bf16 %v3360, %v3359
        %v3385 = vpack.c.bf16 %v3362, %v3361
        %v3386 = vpack.c.bf16 %v3364, %v3363
        %v3387 = vpack.c.bf16 %v3366, %v3365
        %v3388 = vpack.c.bf16 %v3368, %v3367
        %v3389 = vpack.c.bf16 %v3370, %v3369
        %v3390 = vpack.c.bf16 %v3372, %v3371
        %v3391 = vpack.c.bf16 %v3374, %v3373
        %v3392 = vpack.c.bf16 %v3376, %v3375
        %v3409 = vunpack.c.l.b16 %v3377
        %v3410 = vunpack.c.h.b16 %v3377
        %v3411 = vunpack.c.l.b16 %v3378
        %v3412 = vunpack.c.h.b16 %v3378
        %v3413 = vunpack.c.l.b16 %v3379
        %v3414 = vunpack.c.h.b16 %v3379
        %v3415 = vunpack.c.l.b16 %v3380
        %v3416 = vunpack.c.h.b16 %v3380
        %v3417 = vunpack.c.l.b16 %v3381
        %v3418 = vunpack.c.h.b16 %v3381
        %v3419 = vunpack.c.l.b16 %v3382
        %v3420 = vunpack.c.h.b16 %v3382
        %v3421 = vunpack.c.l.b16 %v3383
        %v3422 = vunpack.c.h.b16 %v3383
        %v3423 = vunpack.c.l.b16 %v3384
        %v3424 = vunpack.c.h.b16 %v3384
        %v3425 = vunpack.c.l.b16 %v3385
        %v3426 = vunpack.c.h.b16 %v3385
        %v3427 = vunpack.c.l.b16 %v3386
        %v3428 = vunpack.c.h.b16 %v3386
        %v3429 = vunpack.c.l.b16 %v3387
        %v3430 = vunpack.c.h.b16 %v3387
        %v3431 = vunpack.c.l.b16 %v3388
        %v3432 = vunpack.c.h.b16 %v3388
        %v3433 = vunpack.c.l.b16 %v3389
        %v3434 = vunpack.c.h.b16 %v3389
        %v3435 = vunpack.c.l.b16 %v3390
        %v3436 = vunpack.c.h.b16 %v3390
        %v3437 = vunpack.c.l.b16 %v3391
        %v3438 = vunpack.c.h.b16 %v3391
        %v3439 = vunpack.c.l.b16 %v3392
        %v3440 = vunpack.c.h.b16 %v3392
        %v3441 = vpack.c.b16 %v3409, %v3409
        %v3442 = vpack.c.b16 %v3410, %v3410
        %v3443 = vpack.c.b16 %v3411, %v3411
        %v3444 = vpack.c.b16 %v3412, %v3412
        %v3445 = vpack.c.b16 %v3413, %v3413
        %v3446 = vpack.c.b16 %v3414, %v3414
        %v3447 = vpack.c.b16 %v3415, %v3415
        %v3448 = vpack.c.b16 %v3416, %v3416
        %v3449 = vpack.c.b16 %v3417, %v3417
        %v3450 = vpack.c.b16 %v3418, %v3418
        %v3451 = vpack.c.b16 %v3419, %v3419
        %v3452 = vpack.c.b16 %v3420, %v3420
        %v3453 = vpack.c.b16 %v3421, %v3421
        %v3454 = vpack.c.b16 %v3422, %v3422
        %v3455 = vpack.c.b16 %v3423, %v3423
        %v3456 = vpack.c.b16 %v3424, %v3424
        %v3457 = vpack.c.b16 %v3425, %v3425
        %v3458 = vpack.c.b16 %v3426, %v3426
        %v3459 = vpack.c.b16 %v3427, %v3427
        %v3460 = vpack.c.b16 %v3428, %v3428
        %v3461 = vpack.c.b16 %v3429, %v3429
        %v3462 = vpack.c.b16 %v3430, %v3430
        %v3463 = vpack.c.b16 %v3431, %v3431
        %v3464 = vpack.c.b16 %v3432, %v3432
        %v3465 = vpack.c.b16 %v3433, %v3433
        %v3466 = vpack.c.b16 %v3434, %v3434
        %v3467 = vpack.c.b16 %v3435, %v3435
        %v3468 = vpack.c.b16 %v3436, %v3436
        %v3469 = vpack.c.b16 %v3437, %v3437
        %v3470 = vpack.c.b16 %v3438, %v3438
        %v3471 = vpack.c.b16 %v3439, %v3439
        %v3472 = vpack.c.b16 %v3440, %v3440
        %3505 = vst [vmem:[%s194] sm:$0xf] %v3441
        %3506 = vst [vmem:[%s194 + $0x4] sm:$0xf] %v3442
        %3507 = vst [vmem:[%s194 + $0x8] sm:$0xf] %v3443
        %3508 = vst [vmem:[%s194 + $0xc] sm:$0xf] %v3444
        %3509 = vst [vmem:[%s194 + $0x10] sm:$0xf] %v3445
        %3510 = vst [vmem:[%s194 + $0x14] sm:$0xf] %v3446
        %3511 = vst [vmem:[%s194 + $0x18] sm:$0xf] %v3447
        %3512 = vst [vmem:[%s194 + $0x1c] sm:$0xf] %v3448
        %3513 = vst [vmem:[%s194 + $0x20] sm:$0xf] %v3449
        %3514 = vst [vmem:[%s194 + $0x24] sm:$0xf] %v3450
        %3515 = vst [vmem:[%s194 + $0x28] sm:$0xf] %v3451
        %3516 = vst [vmem:[%s194 + $0x2c] sm:$0xf] %v3452
        %3517 = vst [vmem:[%s194 + $0x30] sm:$0xf] %v3453
        %3518 = vst [vmem:[%s194 + $0x34] sm:$0xf] %v3454
        %3519 = vst [vmem:[%s194 + $0x38] sm:$0xf] %v3455
        %3520 = vst [vmem:[%s194 + $0x3c] sm:$0xf] %v3456
        %3521 = vst [vmem:[%s194 + $0x40] sm:$0xf] %v3457
        %3522 = vst [vmem:[%s194 + $0x44] sm:$0xf] %v3458
        %3523 = vst [vmem:[%s194 + $0x48] sm:$0xf] %v3459
        %3524 = vst [vmem:[%s194 + $0x4c] sm:$0xf] %v3460
        %3525 = vst [vmem:[%s194 + $0x50] sm:$0xf] %v3461
        %3526 = vst [vmem:[%s194 + $0x54] sm:$0xf] %v3462
        %3527 = vst [vmem:[%s194 + $0x58] sm:$0xf] %v3463
        %3528 = vst [vmem:[%s194 + $0x5c] sm:$0xf] %v3464
        %3529 = vst [vmem:[%s194 + $0x60] sm:$0xf] %v3465
        %3530 = vst [vmem:[%s194 + $0x64] sm:$0xf] %v3466
        %3531 = vst [vmem:[%s194 + $0x68] sm:$0xf] %v3467
        %3532 = vst [vmem:[%s194 + $0x6c] sm:$0xf] %v3468
        %3533 = vst [vmem:[%s194 + $0x70] sm:$0xf] %v3469
        %3534 = vst [vmem:[%s194 + $0x74] sm:$0xf] %v3470
        %3535 = vst [vmem:[%s194 + $0x78] sm:$0xf] %v3471
        %3536 = vst [vmem:[%s194 + $0x7c] sm:$0xf] %v3472
        %v3537 = vadd.f32 %v3345, %v3346
        %v3538 = vadd.f32 %v3537, %v3347
        %v3539 = vadd.f32 %v3538, %v3348
        %v3540 = vadd.f32 %v3539, %v3349
        %v3541 = vadd.f32 %v3540, %v3350
        %v3542 = vadd.f32 %v3541, %v3351
        %v3543 = vadd.f32 %v3542, %v3352
        %v3544 = vadd.f32 %v3543, %v3353
        %v3545 = vadd.f32 %v3544, %v3354
        %v3546 = vadd.f32 %v3545, %v3355
        %v3547 = vadd.f32 %v3546, %v3356
        %v3548 = vadd.f32 %v3547, %v3357
        %v3549 = vadd.f32 %v3548, %v3358
        %v3550 = vadd.f32 %v3549, %v3359
        %v3551 = vadd.f32 %v3550, %v3360
        %v3552 = vadd.f32 %v3551, %v3361
        %v3553 = vadd.f32 %v3552, %v3362
        %v3554 = vadd.f32 %v3553, %v3363
        %v3555 = vadd.f32 %v3554, %v3364
        %v3556 = vadd.f32 %v3555, %v3365
        %v3557 = vadd.f32 %v3556, %v3366
        %v3558 = vadd.f32 %v3557, %v3367
        %v3559 = vadd.f32 %v3558, %v3368
        %v3560 = vadd.f32 %v3559, %v3369
        %v3561 = vadd.f32 %v3560, %v3370
        %v3562 = vadd.f32 %v3561, %v3371
        %v3563 = vadd.f32 %v3562, %v3372
        %v3564 = vadd.f32 %v3563, %v3373
        %v3565 = vadd.f32 %v3564, %v3374
        %v3566 = vadd.f32 %v3565, %v3375
        %v3567 = vadd.f32 %v3566, %v3376
        %v3568 = vrot.slane %v3567, 4
        %v3569 = vadd.f32 %v3567, %v3568
        %v3570 = vrot.slane %v3569, 2
        %v3571 = vadd.f32 %v3569, %v3570
        %v3572 = vrot.slane %v3571, 1
        %v3573 = vadd.f32 %v3571, %v3572
        %3574 = vst [vmem:[%s200] sm:$0x1] %v3573
        %v3575 = vmul.f32 %v3345, %v3345
        %v3576 = vmul.f32 %v3346, %v3346
        %v3577 = vmul.f32 %v3347, %v3347
        %v3578 = vmul.f32 %v3348, %v3348
        %v3579 = vmul.f32 %v3349, %v3349
        %v3580 = vmul.f32 %v3350, %v3350
        %v3581 = vmul.f32 %v3351, %v3351
        %v3582 = vmul.f32 %v3352, %v3352
        %v3583 = vmul.f32 %v3353, %v3353
        %v3584 = vmul.f32 %v3354, %v3354
        %v3585 = vmul.f32 %v3355, %v3355
        %v3586 = vmul.f32 %v3356, %v3356
        %v3587 = vmul.f32 %v3357, %v3357
        %v3588 = vmul.f32 %v3358, %v3358
        %v3589 = vmul.f32 %v3359, %v3359
        %v3590 = vmul.f32 %v3360, %v3360
        %v3591 = vmul.f32 %v3361, %v3361
        %v3592 = vmul.f32 %v3362, %v3362
        %v3593 = vmul.f32 %v3363, %v3363
        %v3594 = vmul.f32 %v3364, %v3364
        %v3595 = vmul.f32 %v3365, %v3365
        %v3596 = vmul.f32 %v3366, %v3366
        %v3597 = vmul.f32 %v3367, %v3367
        %v3598 = vmul.f32 %v3368, %v3368
        %v3599 = vmul.f32 %v3369, %v3369
        %v3600 = vmul.f32 %v3370, %v3370
        %v3601 = vmul.f32 %v3371, %v3371
        %v3602 = vmul.f32 %v3372, %v3372
        %v3603 = vmul.f32 %v3373, %v3373
        %v3604 = vmul.f32 %v3374, %v3374
        %v3605 = vmul.f32 %v3375, %v3375
        %v3606 = vmul.f32 %v3376, %v3376
        %v3607 = vadd.f32 %v3575, %v3576
        %v3608 = vadd.f32 %v3607, %v3577
        %v3609 = vadd.f32 %v3608, %v3578
        %v3610 = vadd.f32 %v3609, %v3579
        %v3611 = vadd.f32 %v3610, %v3580
        %v3612 = vadd.f32 %v3611, %v3581
        %v3613 = vadd.f32 %v3612, %v3582
        %v3614 = vadd.f32 %v3613, %v3583
        %v3615 = vadd.f32 %v3614, %v3584
        %v3616 = vadd.f32 %v3615, %v3585
        %v3617 = vadd.f32 %v3616, %v3586
        %v3618 = vadd.f32 %v3617, %v3587
        %v3619 = vadd.f32 %v3618, %v3588
        %v3620 = vadd.f32 %v3619, %v3589
        %v3621 = vadd.f32 %v3620, %v3590
        %v3622 = vadd.f32 %v3621, %v3591
        %v3623 = vadd.f32 %v3622, %v3592
        %v3624 = vadd.f32 %v3623, %v3593
        %v3625 = vadd.f32 %v3624, %v3594
        %v3626 = vadd.f32 %v3625, %v3595
        %v3627 = vadd.f32 %v3626, %v3596
        %v3628 = vadd.f32 %v3627, %v3597
        %v3629 = vadd.f32 %v3628, %v3598
        %v3630 = vadd.f32 %v3629, %v3599
        %v3631 = vadd.f32 %v3630, %v3600
        %v3632 = vadd.f32 %v3631, %v3601
        %v3633 = vadd.f32 %v3632, %v3602
        %v3634 = vadd.f32 %v3633, %v3603
        %v3635 = vadd.f32 %v3634, %v3604
        %v3636 = vadd.f32 %v3635, %v3605
        %v3637 = vadd.f32 %v3636, %v3606
        %v3638 = vrot.slane %v3637, 4
        %v3639 = vadd.f32 %v3637, %v3638
        %v3640 = vrot.slane %v3639, 2
        %v3641 = vadd.f32 %v3639, %v3640
        %v3642 = vrot.slane %v3641, 1
        %v3643 = vadd.f32 %v3641, %v3642
        %3644 = vst [vmem:[%s206] sm:$0x1] %v3643
        %s3645 = sand.u32 %s77, 1
        %s3646 = scalar_lea.sflag [#allocation3], %s3645
        %s3647 = sand.u32 %s77, 1
        %s3648 = smul.addr %s3647, 128
        %s3649 = scalar_lea.vmem [#allocation2], %s3648
        %s3650 = sand.u32 %s22, 1
        %s3651 = scalar_lea.sflag [#allocation5], %s3650
        %s3652 = sand.u32 %s103, 1
        %s3653 = scalar_lea.vmem [#allocation4], %s3652
        %s3654 = sand.u32 %s22, 1
        %s3655 = scalar_lea.sflag [#allocation5], %s3654
        %s3656 = sand.u32 %s129, 1
        %s3657 = scalar_lea.vmem [#allocation6], %s3656
        // Predicated region
        $region29: #{tpu_custom_call.1} parent=27 // pred_check
          %p3658 = pneg %p87
        $region30: #{tpu_custom_call.1} parent=27 // pred_check_branch
          %3660 = sbr.rel (%p3658) target = $region32
        $region31: #{tpu_custom_call.1} parent=27 // pred_region
          %s3662 = ssub.s32 2048, 2048
          %3663 = vsyncadd %s3646, %s3662
          %s3664 = smul.addr %s22, 32
          %s3665 = smul.addr %s3664, 64
          %s3666 = scalar_lea.hbm %s2, %s3665
          %s3667 = sshll.u32 %s3649, 4
          %s3668 = int_to_ptr.vmem [resolvable:$true] %s3667
          %3673 = dma.vmem_to_hbm [thread:$0]  %s3668, 2048, %s3666, %s3646, 64, 64, 4
        $region32: #{tpu_custom_call.1} parent=27 // pred_fallthru
          _
        // Predicated region
        $region33: #{tpu_custom_call.1} parent=27 // pred_check
          %p3674 = pneg %p113
        $region34: #{tpu_custom_call.1} parent=27 // pred_check_branch
          %3676 = sbr.rel (%p3674) target = $region36
        $region35: #{tpu_custom_call.1} parent=27 // pred_region
          %s3678 = ssub.s32 16, 16
          %3679 = vsyncadd %s3651, %s3678
          %s3680 = smul.addr %s22, 16
          %s3681 = scalar_lea.hbm %s3, %s3680
          %s3683 = sshll.u32 %s3653, 4
          %s3684 = int_to_ptr.vmem [resolvable:$true] %s3683
          %3686 = dma.vmem_to_hbm [thread:$0]  %s3684, 16, %s3681, %s3651
        $region36: #{tpu_custom_call.1} parent=27 // pred_fallthru
          _
        // Predicated region
        $region37: #{tpu_custom_call.1} parent=27 // pred_check
          %p3687 = pneg %p139
        $region38: #{tpu_custom_call.1} parent=27 // pred_check_branch
          %3689 = sbr.rel (%p3687) target = $region40
        $region39: #{tpu_custom_call.1} parent=27 // pred_region
          %s3691 = ssub.s32 16, 16
          %3692 = vsyncadd %s3655, %s3691
          %s3693 = smul.addr %s22, 16
          %s3694 = scalar_lea.hbm %s4, %s3693
          %s3696 = sshll.u32 %s3657, 4
          %s3697 = int_to_ptr.vmem [resolvable:$true] %s3696
          %3699 = dma.vmem_to_hbm [thread:$0]  %s3697, 16, %s3694, %s3655
        $region40: #{tpu_custom_call.1} parent=27 // pred_fallthru
          _
      $region28: #{tpu_custom_call.1} parent=5 // pred_fallthru
        _
      %p3700 = scmp.le.s32.totalorder 2, %s17
      // Predicated region
      $region41: #{tpu_custom_call.1} parent=5 // pred_check
        %p3701 = pneg %p3700
      $region42: #{tpu_custom_call.1} parent=5 // pred_check_branch
        %3703 = sbr.rel (%p3701) target = $region44
      $region43: #{tpu_custom_call.1} parent=5 // pred_region
        %s3704 = ssub.s32 %s17, 2
        // Predicated region
        $region45: #{tpu_custom_call.1} parent=43 // pred_check
          %p3705 = pneg %p93
        $region46: #{tpu_custom_call.1} parent=43 // pred_check_branch
          %3707 = sbr.rel (%p3705) target = $region48
        $region47: #{tpu_custom_call.1} parent=43 // pred_region
          %s3708 = sand.u32 %s78, 1
          %s3709 = scalar_lea.sflag [#allocation3], %s3708
          %s3710 = sand.u32 %s78, 1
          %s3711 = smul.addr %s3710, 128
          %s3712 = scalar_lea.vmem [#allocation2], %s3711
          %3713 = dma.done %s3709, 2048
        $region48: #{tpu_custom_call.1} parent=43 // pred_fallthru
          _
        // Predicated region
        $region49: #{tpu_custom_call.1} parent=43 // pred_check
          %p3714 = pneg %p119
        $region50: #{tpu_custom_call.1} parent=43 // pred_check_branch
          %3716 = sbr.rel (%p3714) target = $region52
        $region51: #{tpu_custom_call.1} parent=43 // pred_region
          %s3717 = sand.u32 %s23, 1
          %s3718 = scalar_lea.sflag [#allocation5], %s3717
          %s3719 = sand.u32 %s104, 1
          %s3720 = scalar_lea.vmem [#allocation4], %s3719
          %3721 = dma.done %s3718, 16
        $region52: #{tpu_custom_call.1} parent=43 // pred_fallthru
          _
        // Predicated region
        $region53: #{tpu_custom_call.1} parent=43 // pred_check
          %p3722 = pneg %p145
        $region54: #{tpu_custom_call.1} parent=43 // pred_check_branch
          %3724 = sbr.rel (%p3722) target = $region56
        $region55: #{tpu_custom_call.1} parent=43 // pred_region
          %s3725 = sand.u32 %s23, 1
          %s3726 = scalar_lea.sflag [#allocation5], %s3725
          %s3727 = sand.u32 %s130, 1
          %s3728 = scalar_lea.vmem [#allocation6], %s3727
          %3729 = dma.done %s3726, 16
        $region56: #{tpu_custom_call.1} parent=43 // pred_fallthru
          _
      $region44: #{tpu_custom_call.1} parent=5 // pred_fallthru
        _
    $region6: #{tpu_custom_call.1} parent=1 // loop_footer
      %s21 = sadd.s32 1, %s17
    $region7: #{tpu_custom_call.1} parent=1 // loop_footer_branch
      %16 = sbr.rel target = $region3
    $region8: #{tpu_custom_call.1} parent=1 // loop_exit
      _
    %3730 = vsyncpa [#allocation3], 1
    %s3731 = scalar_lea.sflag [#allocation3], 1
    %3732 = vsyncpa %s3731, 1
    %3733 = vsyncpa [#allocation5], 1
    %s3734 = scalar_lea.sflag [#allocation5], 1
    %3735 = vsyncpa %s3734, 1

</llo_original>
